<compile_context>
chip_gen: v5e
topology: v5e:2x2
jax: 0.10.0
libtpu: 0.0.40
codegen_flags: <defaults>
</compile_context>

<pallas_src>
import jax
import jax.numpy as jnp
from jax.experimental import pallas as pl
from jax.experimental.pallas import tpu as pltpu

# ----------------------- synthetic (small) config ---------------------------
NUM_BERT_FEATURES = 32
NUM_PHYCHEM_FEATURES = 4
NUM_RESACC_FEATURES = 4
FIN = NUM_BERT_FEATURES + NUM_PHYCHEM_FEATURES + NUM_RESACC_FEATURES  # 40
HIDDEN = 32          # conv_encoder out_channels == GAT in/out dim
NUM_HEADS = 2
NUM_GAT_LAYERS = 2
EDGE_DIM = 2
MAX_SEQ_LEN = 64
BATCH = 2
KSIZE = 7            # Conv1d kernel_size=7, padding=3, stride=1

# column layout of the folded per-layer weight matrix (see wrapper)
SELF_OFF = NUM_HEADS * HIDDEN                 # 64
SV_OFF = (NUM_HEADS + 1) * HIDDEN             # 96
WCAT_COLS = 2 * NUM_HEADS * HIDDEN            # 128 (zero padded past SV_OFF+2H)


def _leaky(x):
    return jnp.maximum(x, 0.01 * x)           # LeakyReLU(0.01), single vmax


# --------------------------- fused forward kernel ---------------------------
def _fused_kernel(ce_ref,                       # scalar prefetch (SMEM): (NL*H*2,)
                  xc_ref, wim_ref, cb_ref,      # conv: im2col x, weight, [bias;scale;shift]
                  adj_ref, ex_ref,              # graph: (1,L,L), (1,2,L,L)
                  wcat_ref, wedge_ref,          # folded GAT weights (stacked over layers)
                  out_ref, alpha_ref):          # outputs: (1,L,64), (1,L,H*L)
    # ---- conv_encoder: one matmul + bias + LeakyReLU + folded eval BatchNorm ----
    feats = jnp.dot(xc_ref[0], wim_ref[...],
                    preferred_element_type=jnp.float32)          # (L, 32)
    feats = feats + cb_ref[0:1, :]                               # conv bias
    feats = _leaky(feats)                                        # LeakyReLU(0.01)
    feats = feats * cb_ref[1:2, :] + cb_ref[2:3, :]              # folded eval BN

    # ---- shared graph tensors, computed once per batch item ----
    adjm = adj_ref[0]                                            # (L, L) 0/1 mask
    bias = (adjm - 1.0) * 1e30                                   # 0 on edges, -1e30 off
    ex0 = ex_ref[0, 0]                                           # (L, L)
    ex1 = ex_ref[0, 1]                                           # (L, L)

    inv_heads = 1.0 / float(NUM_HEADS)
    h_cur = feats
    for l in range(NUM_GAT_LAYERS):                              # static unroll
        # ONE lane-dense (L,32)@(32,128) matmul:
        #   [z_h0 | z_h1 | sum_h self_h | sv_h0(src,dst) | sv_h1(src,dst) | pad]
        zs = jnp.dot(h_cur, wcat_ref[l], preferred_element_type=jnp.float32)
        acc = zs[:, SELF_OFF:SELF_OFF + HIDDEN]                  # self heads, pre-summed

        alphas = []
        for h in range(NUM_HEADS):                               # static unroll
            z_h = zs[:, h * HIDDEN:(h + 1) * HIDDEN]             # (L, 32)
            sv = zs[:, SV_OFF + 2 * h:SV_OFF + 2 * h + 2]        # (L, 2) attn projections
            s_src = sv[:, 0]                                     # (L,)  per src j
            s_dst = sv[:, 1:2]                                   # (L,1) per dst i
            c0 = ce_ref[(l * NUM_HEADS + h) * 2 + 0]             # folded edge-attn coeffs
            c1 = ce_ref[(l * NUM_HEADS + h) * 2 + 1]
            logits = s_dst + s_src[None, :] + ex0 * c0 + ex1 * c1
            logits = _leaky(logits)                              # F.leaky_relu

            # edge_softmax over incoming edges (row-wise), additive mask + 1 mul
            masked = logits + bias
            m = jnp.max(masked, axis=1, keepdims=True)
            e = jnp.exp(masked - m) * adjm                       # 0 off-graph
            denom = jnp.sum(e, axis=1, keepdims=True)
            inv = pl.reciprocal(jnp.maximum(denom, 1e-30), approx=True)
            alpha = e * inv                                      # (L, L); 0 rows if isolated

            # h_i += sum_j alpha_ij * (z_j + fc_edge(ex_ij))
            agg = jnp.dot(alpha, z_h, preferred_element_type=jnp.float32)
            e0 = jnp.sum(alpha * ex0, axis=1, keepdims=True)     # (L,1)
            e1 = jnp.sum(alpha * ex1, axis=1, keepdims=True)
            agg = agg + e0 * wedge_ref[l, h, 0:1, :] + e1 * wedge_ref[l, h, 1:2, :]
            acc = acc + agg
            if l == NUM_GAT_LAYERS - 1:
                alphas.append(alpha)

        h_cur = acc * inv_heads                                  # merge='avg'
        if l == NUM_GAT_LAYERS - 1:
            # lane-dense (L, H*L = 128) attention writeback, last layer only
            alpha_ref[0] = jnp.concatenate(alphas, axis=-1)

    out_ref[0] = jnp.concatenate([h_cur, feats], axis=-1)        # (L, 64)


# ------------------------------- parameters ---------------------------------
def init_params(key):
    keys = jax.random.split(key, 8 + NUM_GAT_LAYERS)
    s = 0.1
    conv_w = s * jax.random.normal(keys[0], (KSIZE, FIN, HIDDEN), jnp.float32)
    conv_b = s * jax.random.normal(keys[1], (1, HIDDEN), jnp.float32)
    gamma = 1.0 + 0.1 * jax.random.normal(keys[2], (HIDDEN,), jnp.float32)
    beta = 0.1 * jax.random.normal(keys[3], (HIDDEN,), jnp.float32)
    rmean = 0.1 * jax.random.normal(keys[4], (HIDDEN,), jnp.float32)
    rvar = 1.0 + 0.1 * jnp.abs(jax.random.normal(keys[5], (HIDDEN,), jnp.float32))
    inv_std = 1.0 / jnp.sqrt(rvar + 1e-5)
    bn_scale = (gamma * inv_std).reshape(1, HIDDEN)
    bn_shift = (beta - rmean * gamma * inv_std).reshape(1, HIDDEN)

    gat = []
    for li in range(NUM_GAT_LAYERS):
        k = jax.random.split(keys[8 + li], 6)
        W = s * jax.random.normal(k[0], (NUM_HEADS, HIDDEN, HIDDEN), jnp.float32)
        Wself = s * jax.random.normal(k[1], (NUM_HEADS, HIDDEN, HIDDEN), jnp.float32)
        Wedge = s * jax.random.normal(k[2], (NUM_HEADS, EDGE_DIM, HIDDEN), jnp.float32)
        avec = s * jax.random.normal(k[3], (NUM_HEADS, HIDDEN, 2), jnp.float32)
        w_eatt = s * jax.random.normal(k[4], (NUM_HEADS, EDGE_DIM, EDGE_DIM), jnp.float32)
        a_e = s * jax.random.normal(k[5], (NUM_HEADS, EDGE_DIM), jnp.float32)
        # fold fc_edge_for_att_calc followed by the edge slice of attn_fc
        ce = jnp.einsum("hij,hj->hi", w_eatt, a_e)        # (H, 2)
        gat.append(dict(W=W, Wself=Wself, Wedge=Wedge, avec=avec, ce=ce))

    return dict(conv_w=conv_w, conv_b=conv_b, bn_scale=bn_scale,
                bn_shift=bn_shift, gat=gat)


def build_graph(key, B, L):
    idx = jnp.arange(L)
    d = jnp.abs(idx[:, None] - idx[None, :])
    band = ((d > 0) & (d <= 5)).astype(jnp.float32)       # every node has neighbors
    adj = jnp.broadcast_to(band, (B, L, L))
    ex = jax.random.normal(key, (B, EDGE_DIM, L, L), jnp.float32)
    ex = ex * adj[:, None, :, :]
    return adj, ex


# ------------------------------ full forward --------------------------------
def egret_ppi_forward(protbert, phychem, resacc, adj, ex, params):
    # torch.cat((bert, phychem, resacc), axis=2) ; squeeze(1) is a no-op on 3-D
    merged = jnp.concatenate([protbert, phychem, resacc], axis=2)   # (B, L, FIN)
    B, L, _ = merged.shape
    pad = KSIZE // 2

    # conv im2col in the wrapper: (B, L, K*FIN)
    xpad = jnp.pad(merged, ((0, 0), (pad, pad), (0, 0)))            # zero padding
    xcols = jnp.concatenate([xpad[:, k:k + L, :] for k in range(KSIZE)], axis=-1)
    wim = params["conv_w"].reshape(KSIZE * FIN, HIDDEN)             # (K*FIN, 32)
    cb = jnp.concatenate([params["conv_b"], params["bn_scale"],
                          params["bn_shift"]], axis=0)              # (3, 32)

    # fold all per-layer projections into ONE lane-dense (32, 128) matrix/layer:
    #   [W_h0 | W_h1 | sum_h Wself_h | W_h0@a_h0 | W_h1@a_h1 | zero pad]
    wcat_layers = []
    for lp in params["gat"]:
        cols = [lp["W"][h] for h in range(NUM_HEADS)]
        cols.append(jnp.sum(lp["Wself"], axis=0))
        cols += [lp["W"][h] @ lp["avec"][h] for h in range(NUM_HEADS)]
        wc = jnp.concatenate(cols, axis=-1)                         # (32, 100)
        wc = jnp.pad(wc, ((0, 0), (0, WCAT_COLS - wc.shape[1])))    # (32, 128)
        wcat_layers.append(wc)
    wcat = jnp.stack(wcat_layers)                                   # (NL, 32, 128)
    wedge = jnp.stack([lp["Wedge"] for lp in params["gat"]])        # (NL, H, 2, 32)
    ce = jnp.stack([lp["ce"] for lp in params["gat"]]).reshape(-1)  # (NL*H*2,)

    out, alpha_dense = pl.pallas_call(
        _fused_kernel,
        out_shape=(
            jax.ShapeDtypeStruct((B, L, 2 * HIDDEN), jnp.float32),
            jax.ShapeDtypeStruct((B, L, NUM_HEADS * L), jnp.float32),
        ),
        grid_spec=pltpu.PrefetchScalarGridSpec(
            num_scalar_prefetch=1,                      # ce -> SMEM scalars
            grid=(B,),
            in_specs=[
                pl.BlockSpec((1, L, KSIZE * FIN), lambda b, ce: (b, 0, 0)),
                pl.BlockSpec((KSIZE * FIN, HIDDEN), lambda b, ce: (0, 0)),
                pl.BlockSpec((3, HIDDEN), lambda b, ce: (0, 0)),
                pl.BlockSpec((1, L, L), lambda b, ce: (b, 0, 0)),
                pl.BlockSpec((1, EDGE_DIM, L, L), lambda b, ce: (b, 0, 0, 0)),
                pl.BlockSpec((NUM_GAT_LAYERS, HIDDEN, WCAT_COLS),
                             lambda b, ce: (0, 0, 0)),
                pl.BlockSpec((NUM_GAT_LAYERS, NUM_HEADS, EDGE_DIM, HIDDEN),
                             lambda b, ce: (0, 0, 0, 0)),
            ],
            out_specs=[
                pl.BlockSpec((1, L, 2 * HIDDEN), lambda b, ce: (b, 0, 0)),
                pl.BlockSpec((1, L, NUM_HEADS * L), lambda b, ce: (b, 0, 0)),
            ],
        ),
        compiler_params=pltpu.CompilerParams(dimension_semantics=("parallel",)),
    )(ce, xcols, wim, cb, adj, ex, wcat, wedge)

    # (B, L, H*L) -> (B, H, L, L) head attention scores of the last layer
    alpha = alpha_dense.reshape(B, L, NUM_HEADS, L).transpose(0, 2, 1, 3)
    return out, alpha


# ---------------------------------- main -------------------------------------
if __name__ == "__main__":
    key = jax.random.PRNGKey(0)
    k1, k2, k3, k4, k5 = jax.random.split(key, 5)
    B, L = BATCH, MAX_SEQ_LEN
    protbert = jax.random.normal(k1, (B, L, NUM_BERT_FEATURES), jnp.float32)
    phychem = jax.random.normal(k2, (B, L, NUM_PHYCHEM_FEATURES), jnp.float32)
    resacc = jax.random.normal(k3, (B, L, NUM_RESACC_FEATURES), jnp.float32)
    adj, ex = build_graph(k4, B, L)
    params = init_params(k5)

    out, attn = egret_ppi_forward(protbert, phychem, resacc, adj, ex, params)
    out, attn = jax.block_until_ready((out, attn))

    assert out.shape == (B, L, 2 * HIDDEN)
    assert attn.shape == (B, NUM_HEADS, L, L)
    assert bool(jnp.all(jnp.isfinite(out))) and bool(jnp.all(jnp.isfinite(attn)))
    print("KERNEL_OK")
</pallas_src>

<mosaic_0001>
module attributes {stable_mosaic.version = 11 : i64} {
  func.func @_fused_kernel(%arg0: i32, %arg1: memref<8xf32, #tpu.memory_space<smem>>, %arg2: memref<1x64x280xf32, #tpu.memory_space<vmem>>, %arg3: memref<280x32xf32, #tpu.memory_space<vmem>>, %arg4: memref<3x32xf32, #tpu.memory_space<vmem>>, %arg5: memref<1x64x64xf32, #tpu.memory_space<vmem>>, %arg6: memref<1x2x64x64xf32, #tpu.memory_space<vmem>>, %arg7: memref<2x32x128xf32, #tpu.memory_space<vmem>>, %arg8: memref<2x2x2x32xf32, #tpu.memory_space<vmem>>, %arg9: memref<1x64x64xf32, #tpu.memory_space<vmem>>, %arg10: memref<1x64x128xf32, #tpu.memory_space<vmem>>) attributes {dimension_semantics = [#tpu.dimension_semantics<parallel>], iteration_bounds = array<i64: 2>, scalar_prefetch = 1 : i64, scratch_operands = 0 : i64, tpu.core_type = #tpu.core_type<tc>, window_params = [{transform_indices = @transform_0, window_bounds = array<i64: 1, 64, 280>}, {pipeline_mode = #tpu.pipeline_mode<synchronous>, transform_indices = @transform_1, window_bounds = array<i64: 280, 32>}, {pipeline_mode = #tpu.pipeline_mode<synchronous>, transform_indices = @transform_2, window_bounds = array<i64: 3, 32>}, {transform_indices = @transform_3, window_bounds = array<i64: 1, 64, 64>}, {transform_indices = @transform_4, window_bounds = array<i64: 1, 2, 64, 64>}, {pipeline_mode = #tpu.pipeline_mode<synchronous>, transform_indices = @transform_5, window_bounds = array<i64: 2, 32, 128>}, {pipeline_mode = #tpu.pipeline_mode<synchronous>, transform_indices = @transform_6, window_bounds = array<i64: 2, 2, 2, 32>}, {transform_indices = @transform_7, window_bounds = array<i64: 1, 64, 64>}, {transform_indices = @transform_8, window_bounds = array<i64: 1, 64, 128>}]} {
    %c0 = arith.constant 0 : index
    %c0_0 = arith.constant 0 : index
    %c0_1 = arith.constant 0 : index
    %0 = vector.load %arg2[%c0, %c0_0, %c0_1] : memref<1x64x280xf32, #tpu.memory_space<vmem>>, vector<1x64x280xf32>
    %1 = vector.shape_cast %0 : vector<1x64x280xf32> to vector<64x280xf32>
    %c0_2 = arith.constant 0 : index
    %c0_3 = arith.constant 0 : index
    %2 = vector.load %arg3[%c0_2, %c0_3] : memref<280x32xf32, #tpu.memory_space<vmem>>, vector<280x32xf32>
    %cst = arith.constant dense<0.000000e+00> : vector<64x32xf32>
    %3 = tpu.matmul %1, %2, %cst {dimension_numbers = #tpu.dot_dimension_numbers<[1], [0], [0], [1], [0, 0, 1, 1], [], []>} : vector<64x280xf32>, vector<280x32xf32>, vector<64x32xf32> -> vector<64x32xf32>
    %c0_4 = arith.constant 0 : index
    %c0_5 = arith.constant 0 : index
    %4 = vector.load %arg4[%c0_4, %c0_5] : memref<3x32xf32, #tpu.memory_space<vmem>>, vector<1x32xf32>
    %5 = vector.broadcast %4 : vector<1x32xf32> to vector<64x32xf32>
    %6 = arith.addf %3, %5 : vector<64x32xf32>
    %cst_6 = arith.constant 0.00999999977 : f32
    %7 = vector.broadcast %cst_6 : f32 to vector<64x32xf32>
    %8 = arith.mulf %7, %6 : vector<64x32xf32>
    %9 = arith.maximumf %6, %8 : vector<64x32xf32>
    %c1 = arith.constant 1 : index
    %c0_7 = arith.constant 0 : index
    %10 = vector.load %arg4[%c1, %c0_7] : memref<3x32xf32, #tpu.memory_space<vmem>>, vector<1x32xf32>
    %11 = vector.broadcast %10 : vector<1x32xf32> to vector<64x32xf32>
    %12 = arith.mulf %9, %11 : vector<64x32xf32>
    %c2 = arith.constant 2 : index
    %c0_8 = arith.constant 0 : index
    %13 = vector.load %arg4[%c2, %c0_8] : memref<3x32xf32, #tpu.memory_space<vmem>>, vector<1x32xf32>
    %14 = vector.broadcast %13 : vector<1x32xf32> to vector<64x32xf32>
    %15 = arith.addf %12, %14 : vector<64x32xf32>
    %c0_9 = arith.constant 0 : index
    %c0_10 = arith.constant 0 : index
    %c0_11 = arith.constant 0 : index
    %16 = vector.load %arg5[%c0_9, %c0_10, %c0_11] : memref<1x64x64xf32, #tpu.memory_space<vmem>>, vector<1x64x64xf32>
    %17 = vector.shape_cast %16 : vector<1x64x64xf32> to vector<64x64xf32>
    %cst_12 = arith.constant 1.000000e+00 : f32
    %18 = vector.broadcast %cst_12 : f32 to vector<64x64xf32>
    %19 = arith.subf %17, %18 : vector<64x64xf32>
    %cst_13 = arith.constant 1.000000e+30 : f32
    %20 = vector.broadcast %cst_13 : f32 to vector<64x64xf32>
    %21 = arith.mulf %19, %20 : vector<64x64xf32>
    %c0_14 = arith.constant 0 : index
    %c0_15 = arith.constant 0 : index
    %c0_16 = arith.constant 0 : index
    %c0_17 = arith.constant 0 : index
    %22 = vector.load %arg6[%c0_14, %c0_15, %c0_16, %c0_17] : memref<1x2x64x64xf32, #tpu.memory_space<vmem>>, vector<1x1x64x64xf32>
    %23 = vector.shape_cast %22 : vector<1x1x64x64xf32> to vector<64x64xf32>
    %c0_18 = arith.constant 0 : index
    %c1_19 = arith.constant 1 : index
    %c0_20 = arith.constant 0 : index
    %c0_21 = arith.constant 0 : index
    %24 = vector.load %arg6[%c0_18, %c1_19, %c0_20, %c0_21] : memref<1x2x64x64xf32, #tpu.memory_space<vmem>>, vector<1x1x64x64xf32>
    %25 = vector.shape_cast %24 : vector<1x1x64x64xf32> to vector<64x64xf32>
    %c0_22 = arith.constant 0 : index
    %c0_23 = arith.constant 0 : index
    %c0_24 = arith.constant 0 : index
    %26 = vector.load %arg7[%c0_22, %c0_23, %c0_24] : memref<2x32x128xf32, #tpu.memory_space<vmem>>, vector<1x32x128xf32>
    %27 = vector.shape_cast %26 : vector<1x32x128xf32> to vector<32x128xf32>
    %cst_25 = arith.constant dense<0.000000e+00> : vector<64x128xf32>
    %28 = tpu.matmul %15, %27, %cst_25 {dimension_numbers = #tpu.dot_dimension_numbers<[1], [0], [0], [1], [0, 0, 1, 1], [], []>} : vector<64x32xf32>, vector<32x128xf32>, vector<64x128xf32> -> vector<64x128xf32>
    %29 = vector.extract_strided_slice %28 {offsets = [0, 64], sizes = [64, 32], strides = [1, 1]} : vector<64x128xf32> to vector<64x32xf32>
    %30 = vector.extract_strided_slice %28 {offsets = [0, 0], sizes = [64, 32], strides = [1, 1]} : vector<64x128xf32> to vector<64x32xf32>
    %31 = vector.extract_strided_slice %28 {offsets = [0, 96], sizes = [64, 2], strides = [1, 1]} : vector<64x128xf32> to vector<64x2xf32>
    %32 = vector.extract_strided_slice %31 {offsets = [0, 0], sizes = [64, 1], strides = [1, 1]} : vector<64x2xf32> to vector<64x1xf32>
    %33 = vector.shape_cast %32 : vector<64x1xf32> to vector<64xf32>
    %34 = vector.extract_strided_slice %31 {offsets = [0, 1], sizes = [64, 1], strides = [1, 1]} : vector<64x2xf32> to vector<64x1xf32>
    %c0_26 = arith.constant 0 : index
    %35 = memref.load %arg1[%c0_26] : memref<8xf32, #tpu.memory_space<smem>>
    %c1_27 = arith.constant 1 : index
    %36 = memref.load %arg1[%c1_27] : memref<8xf32, #tpu.memory_space<smem>>
    %37 = vector.shape_cast %33 : vector<64xf32> to vector<1x64xf32>
    %38 = vector.broadcast %34 : vector<64x1xf32> to vector<64x64xf32>
    %39 = vector.broadcast %37 : vector<1x64xf32> to vector<64x64xf32>
    %40 = arith.addf %38, %39 : vector<64x64xf32>
    %41 = vector.broadcast %35 : f32 to vector<64x64xf32>
    %42 = arith.mulf %23, %41 : vector<64x64xf32>
    %43 = arith.addf %40, %42 : vector<64x64xf32>
    %44 = vector.broadcast %36 : f32 to vector<64x64xf32>
    %45 = arith.mulf %25, %44 : vector<64x64xf32>
    %46 = arith.addf %43, %45 : vector<64x64xf32>
    %cst_28 = arith.constant 0.00999999977 : f32
    %47 = vector.broadcast %cst_28 : f32 to vector<64x64xf32>
    %48 = arith.mulf %47, %46 : vector<64x64xf32>
    %49 = arith.maximumf %46, %48 : vector<64x64xf32>
    %50 = arith.addf %49, %21 : vector<64x64xf32>
    %cst_29 = arith.constant dense<0xFF800000> : vector<64xf32>
    %51 = vector.multi_reduction <maximumf>, %50, %cst_29 [1] : vector<64x64xf32> to vector<64xf32>
    %52 = vector.shape_cast %51 : vector<64xf32> to vector<64x1xf32>
    %53 = vector.broadcast %52 : vector<64x1xf32> to vector<64x64xf32>
    %54 = arith.subf %50, %53 : vector<64x64xf32>
    %55 = math.exp %54 : vector<64x64xf32>
    %56 = arith.mulf %55, %17 : vector<64x64xf32>
    %cst_30 = arith.constant dense<0.000000e+00> : vector<64xf32>
    %57 = vector.multi_reduction <add>, %56, %cst_30 [1] : vector<64x64xf32> to vector<64xf32>
    %58 = vector.shape_cast %57 : vector<64xf32> to vector<64x1xf32>
    %cst_31 = arith.constant 1.000000e-30 : f32
    %59 = vector.broadcast %cst_31 : f32 to vector<64x1xf32>
    %60 = arith.maximumf %58, %59 : vector<64x1xf32>
    %61 = tpu.reciprocal %60 {approx = true} : vector<64x1xf32> -> vector<64x1xf32>
    %62 = vector.broadcast %61 : vector<64x1xf32> to vector<64x64xf32>
    %63 = arith.mulf %56, %62 : vector<64x64xf32>
    %cst_32 = arith.constant dense<0.000000e+00> : vector<64x32xf32>
    %64 = tpu.matmul %63, %30, %cst_32 {dimension_numbers = #tpu.dot_dimension_numbers<[1], [0], [0], [1], [0, 0, 1, 1], [], []>} : vector<64x64xf32>, vector<64x32xf32>, vector<64x32xf32> -> vector<64x32xf32>
    %65 = arith.mulf %63, %23 : vector<64x64xf32>
    %cst_33 = arith.constant dense<0.000000e+00> : vector<64xf32>
    %66 = vector.multi_reduction <add>, %65, %cst_33 [1] : vector<64x64xf32> to vector<64xf32>
    %67 = vector.shape_cast %66 : vector<64xf32> to vector<64x1xf32>
    %68 = arith.mulf %63, %25 : vector<64x64xf32>
    %cst_34 = arith.constant dense<0.000000e+00> : vector<64xf32>
    %69 = vector.multi_reduction <add>, %68, %cst_34 [1] : vector<64x64xf32> to vector<64xf32>
    %70 = vector.shape_cast %69 : vector<64xf32> to vector<64x1xf32>
    %c0_35 = arith.constant 0 : index
    %c0_36 = arith.constant 0 : index
    %c0_37 = arith.constant 0 : index
    %c0_38 = arith.constant 0 : index
    %71 = vector.load %arg8[%c0_35, %c0_36, %c0_37, %c0_38] : memref<2x2x2x32xf32, #tpu.memory_space<vmem>>, vector<1x1x1x32xf32>
    %72 = vector.shape_cast %71 : vector<1x1x1x32xf32> to vector<1x32xf32>
    %73 = vector.broadcast %67 : vector<64x1xf32> to vector<64x32xf32>
    %74 = vector.broadcast %72 : vector<1x32xf32> to vector<64x32xf32>
    %75 = arith.mulf %73, %74 : vector<64x32xf32>
    %76 = arith.addf %64, %75 : vector<64x32xf32>
    %c0_39 = arith.constant 0 : index
    %c0_40 = arith.constant 0 : index
    %c1_41 = arith.constant 1 : index
    %c0_42 = arith.constant 0 : index
    %77 = vector.load %arg8[%c0_39, %c0_40, %c1_41, %c0_42] : memref<2x2x2x32xf32, #tpu.memory_space<vmem>>, vector<1x1x1x32xf32>
    %78 = vector.shape_cast %77 : vector<1x1x1x32xf32> to vector<1x32xf32>
    %79 = vector.broadcast %70 : vector<64x1xf32> to vector<64x32xf32>
    %80 = vector.broadcast %78 : vector<1x32xf32> to vector<64x32xf32>
    %81 = arith.mulf %79, %80 : vector<64x32xf32>
    %82 = arith.addf %76, %81 : vector<64x32xf32>
    %83 = arith.addf %29, %82 : vector<64x32xf32>
    %84 = vector.extract_strided_slice %28 {offsets = [0, 32], sizes = [64, 32], strides = [1, 1]} : vector<64x128xf32> to vector<64x32xf32>
    %85 = vector.extract_strided_slice %28 {offsets = [0, 98], sizes = [64, 2], strides = [1, 1]} : vector<64x128xf32> to vector<64x2xf32>
    %86 = vector.extract_strided_slice %85 {offsets = [0, 0], sizes = [64, 1], strides = [1, 1]} : vector<64x2xf32> to vector<64x1xf32>
    %87 = vector.shape_cast %86 : vector<64x1xf32> to vector<64xf32>
    %88 = vector.extract_strided_slice %85 {offsets = [0, 1], sizes = [64, 1], strides = [1, 1]} : vector<64x2xf32> to vector<64x1xf32>
    %c2_43 = arith.constant 2 : index
    %89 = memref.load %arg1[%c2_43] : memref<8xf32, #tpu.memory_space<smem>>
    %c3 = arith.constant 3 : index
    %90 = memref.load %arg1[%c3] : memref<8xf32, #tpu.memory_space<smem>>
    %91 = vector.shape_cast %87 : vector<64xf32> to vector<1x64xf32>
    %92 = vector.broadcast %88 : vector<64x1xf32> to vector<64x64xf32>
    %93 = vector.broadcast %91 : vector<1x64xf32> to vector<64x64xf32>
    %94 = arith.addf %92, %93 : vector<64x64xf32>
    %95 = vector.broadcast %89 : f32 to vector<64x64xf32>
    %96 = arith.mulf %23, %95 : vector<64x64xf32>
    %97 = arith.addf %94, %96 : vector<64x64xf32>
    %98 = vector.broadcast %90 : f32 to vector<64x64xf32>
    %99 = arith.mulf %25, %98 : vector<64x64xf32>
    %100 = arith.addf %97, %99 : vector<64x64xf32>
    %cst_44 = arith.constant 0.00999999977 : f32
    %101 = vector.broadcast %cst_44 : f32 to vector<64x64xf32>
    %102 = arith.mulf %101, %100 : vector<64x64xf32>
    %103 = arith.maximumf %100, %102 : vector<64x64xf32>
    %104 = arith.addf %103, %21 : vector<64x64xf32>
    %cst_45 = arith.constant dense<0xFF800000> : vector<64xf32>
    %105 = vector.multi_reduction <maximumf>, %104, %cst_45 [1] : vector<64x64xf32> to vector<64xf32>
    %106 = vector.shape_cast %105 : vector<64xf32> to vector<64x1xf32>
    %107 = vector.broadcast %106 : vector<64x1xf32> to vector<64x64xf32>
    %108 = arith.subf %104, %107 : vector<64x64xf32>
    %109 = math.exp %108 : vector<64x64xf32>
    %110 = arith.mulf %109, %17 : vector<64x64xf32>
    %cst_46 = arith.constant dense<0.000000e+00> : vector<64xf32>
    %111 = vector.multi_reduction <add>, %110, %cst_46 [1] : vector<64x64xf32> to vector<64xf32>
    %112 = vector.shape_cast %111 : vector<64xf32> to vector<64x1xf32>
    %cst_47 = arith.constant 1.000000e-30 : f32
    %113 = vector.broadcast %cst_47 : f32 to vector<64x1xf32>
    %114 = arith.maximumf %112, %113 : vector<64x1xf32>
    %115 = tpu.reciprocal %114 {approx = true} : vector<64x1xf32> -> vector<64x1xf32>
    %116 = vector.broadcast %115 : vector<64x1xf32> to vector<64x64xf32>
    %117 = arith.mulf %110, %116 : vector<64x64xf32>
    %cst_48 = arith.constant dense<0.000000e+00> : vector<64x32xf32>
    %118 = tpu.matmul %117, %84, %cst_48 {dimension_numbers = #tpu.dot_dimension_numbers<[1], [0], [0], [1], [0, 0, 1, 1], [], []>} : vector<64x64xf32>, vector<64x32xf32>, vector<64x32xf32> -> vector<64x32xf32>
    %119 = arith.mulf %117, %23 : vector<64x64xf32>
    %cst_49 = arith.constant dense<0.000000e+00> : vector<64xf32>
    %120 = vector.multi_reduction <add>, %119, %cst_49 [1] : vector<64x64xf32> to vector<64xf32>
    %121 = vector.shape_cast %120 : vector<64xf32> to vector<64x1xf32>
    %122 = arith.mulf %117, %25 : vector<64x64xf32>
    %cst_50 = arith.constant dense<0.000000e+00> : vector<64xf32>
    %123 = vector.multi_reduction <add>, %122, %cst_50 [1] : vector<64x64xf32> to vector<64xf32>
    %124 = vector.shape_cast %123 : vector<64xf32> to vector<64x1xf32>
    %c0_51 = arith.constant 0 : index
    %c1_52 = arith.constant 1 : index
    %c0_53 = arith.constant 0 : index
    %c0_54 = arith.constant 0 : index
    %125 = vector.load %arg8[%c0_51, %c1_52, %c0_53, %c0_54] : memref<2x2x2x32xf32, #tpu.memory_space<vmem>>, vector<1x1x1x32xf32>
    %126 = vector.shape_cast %125 : vector<1x1x1x32xf32> to vector<1x32xf32>
    %127 = vector.broadcast %121 : vector<64x1xf32> to vector<64x32xf32>
    %128 = vector.broadcast %126 : vector<1x32xf32> to vector<64x32xf32>
    %129 = arith.mulf %127, %128 : vector<64x32xf32>
    %130 = arith.addf %118, %129 : vector<64x32xf32>
    %c0_55 = arith.constant 0 : index
    %c1_56 = arith.constant 1 : index
    %c1_57 = arith.constant 1 : index
    %c0_58 = arith.constant 0 : index
    %131 = vector.load %arg8[%c0_55, %c1_56, %c1_57, %c0_58] : memref<2x2x2x32xf32, #tpu.memory_space<vmem>>, vector<1x1x1x32xf32>
    %132 = vector.shape_cast %131 : vector<1x1x1x32xf32> to vector<1x32xf32>
    %133 = vector.broadcast %124 : vector<64x1xf32> to vector<64x32xf32>
    %134 = vector.broadcast %132 : vector<1x32xf32> to vector<64x32xf32>
    %135 = arith.mulf %133, %134 : vector<64x32xf32>
    %136 = arith.addf %130, %135 : vector<64x32xf32>
    %137 = arith.addf %83, %136 : vector<64x32xf32>
    %cst_59 = arith.constant 5.000000e-01 : f32
    %138 = vector.broadcast %cst_59 : f32 to vector<64x32xf32>
    %139 = arith.mulf %137, %138 : vector<64x32xf32>
    %c1_60 = arith.constant 1 : index
    %c0_61 = arith.constant 0 : index
    %c0_62 = arith.constant 0 : index
    %140 = vector.load %arg7[%c1_60, %c0_61, %c0_62] : memref<2x32x128xf32, #tpu.memory_space<vmem>>, vector<1x32x128xf32>
    %141 = vector.shape_cast %140 : vector<1x32x128xf32> to vector<32x128xf32>
    %cst_63 = arith.constant dense<0.000000e+00> : vector<64x128xf32>
    %142 = tpu.matmul %139, %141, %cst_63 {dimension_numbers = #tpu.dot_dimension_numbers<[1], [0], [0], [1], [0, 0, 1, 1], [], []>} : vector<64x32xf32>, vector<32x128xf32>, vector<64x128xf32> -> vector<64x128xf32>
    %143 = vector.extract_strided_slice %142 {offsets = [0, 64], sizes = [64, 32], strides = [1, 1]} : vector<64x128xf32> to vector<64x32xf32>
    %144 = vector.extract_strided_slice %142 {offsets = [0, 0], sizes = [64, 32], strides = [1, 1]} : vector<64x128xf32> to vector<64x32xf32>
    %145 = vector.extract_strided_slice %142 {offsets = [0, 96], sizes = [64, 2], strides = [1, 1]} : vector<64x128xf32> to vector<64x2xf32>
    %146 = vector.extract_strided_slice %145 {offsets = [0, 0], sizes = [64, 1], strides = [1, 1]} : vector<64x2xf32> to vector<64x1xf32>
    %147 = vector.shape_cast %146 : vector<64x1xf32> to vector<64xf32>
    %148 = vector.extract_strided_slice %145 {offsets = [0, 1], sizes = [64, 1], strides = [1, 1]} : vector<64x2xf32> to vector<64x1xf32>
    %c4 = arith.constant 4 : index
    %149 = memref.load %arg1[%c4] : memref<8xf32, #tpu.memory_space<smem>>
    %c5 = arith.constant 5 : index
    %150 = memref.load %arg1[%c5] : memref<8xf32, #tpu.memory_space<smem>>
    %151 = vector.shape_cast %147 : vector<64xf32> to vector<1x64xf32>
    %152 = vector.broadcast %148 : vector<64x1xf32> to vector<64x64xf32>
    %153 = vector.broadcast %151 : vector<1x64xf32> to vector<64x64xf32>
    %154 = arith.addf %152, %153 : vector<64x64xf32>
    %155 = vector.broadcast %149 : f32 to vector<64x64xf32>
    %156 = arith.mulf %23, %155 : vector<64x64xf32>
    %157 = arith.addf %154, %156 : vector<64x64xf32>
    %158 = vector.broadcast %150 : f32 to vector<64x64xf32>
    %159 = arith.mulf %25, %158 : vector<64x64xf32>
    %160 = arith.addf %157, %159 : vector<64x64xf32>
    %cst_64 = arith.constant 0.00999999977 : f32
    %161 = vector.broadcast %cst_64 : f32 to vector<64x64xf32>
    %162 = arith.mulf %161, %160 : vector<64x64xf32>
    %163 = arith.maximumf %160, %162 : vector<64x64xf32>
    %164 = arith.addf %163, %21 : vector<64x64xf32>
    %cst_65 = arith.constant dense<0xFF800000> : vector<64xf32>
    %165 = vector.multi_reduction <maximumf>, %164, %cst_65 [1] : vector<64x64xf32> to vector<64xf32>
    %166 = vector.shape_cast %165 : vector<64xf32> to vector<64x1xf32>
    %167 = vector.broadcast %166 : vector<64x1xf32> to vector<64x64xf32>
    %168 = arith.subf %164, %167 : vector<64x64xf32>
    %169 = math.exp %168 : vector<64x64xf32>
    %170 = arith.mulf %169, %17 : vector<64x64xf32>
    %cst_66 = arith.constant dense<0.000000e+00> : vector<64xf32>
    %171 = vector.multi_reduction <add>, %170, %cst_66 [1] : vector<64x64xf32> to vector<64xf32>
    %172 = vector.shape_cast %171 : vector<64xf32> to vector<64x1xf32>
    %cst_67 = arith.constant 1.000000e-30 : f32
    %173 = vector.broadcast %cst_67 : f32 to vector<64x1xf32>
    %174 = arith.maximumf %172, %173 : vector<64x1xf32>
    %175 = tpu.reciprocal %174 {approx = true} : vector<64x1xf32> -> vector<64x1xf32>
    %176 = vector.broadcast %175 : vector<64x1xf32> to vector<64x64xf32>
    %177 = arith.mulf %170, %176 : vector<64x64xf32>
    %cst_68 = arith.constant dense<0.000000e+00> : vector<64x32xf32>
    %178 = tpu.matmul %177, %144, %cst_68 {dimension_numbers = #tpu.dot_dimension_numbers<[1], [0], [0], [1], [0, 0, 1, 1], [], []>} : vector<64x64xf32>, vector<64x32xf32>, vector<64x32xf32> -> vector<64x32xf32>
    %179 = arith.mulf %177, %23 : vector<64x64xf32>
    %cst_69 = arith.constant dense<0.000000e+00> : vector<64xf32>
    %180 = vector.multi_reduction <add>, %179, %cst_69 [1] : vector<64x64xf32> to vector<64xf32>
    %181 = vector.shape_cast %180 : vector<64xf32> to vector<64x1xf32>
    %182 = arith.mulf %177, %25 : vector<64x64xf32>
    %cst_70 = arith.constant dense<0.000000e+00> : vector<64xf32>
    %183 = vector.multi_reduction <add>, %182, %cst_70 [1] : vector<64x64xf32> to vector<64xf32>
    %184 = vector.shape_cast %183 : vector<64xf32> to vector<64x1xf32>
    %c1_71 = arith.constant 1 : index
    %c0_72 = arith.constant 0 : index
    %c0_73 = arith.constant 0 : index
    %c0_74 = arith.constant 0 : index
    %185 = vector.load %arg8[%c1_71, %c0_72, %c0_73, %c0_74] : memref<2x2x2x32xf32, #tpu.memory_space<vmem>>, vector<1x1x1x32xf32>
    %186 = vector.shape_cast %185 : vector<1x1x1x32xf32> to vector<1x32xf32>
    %187 = vector.broadcast %181 : vector<64x1xf32> to vector<64x32xf32>
    %188 = vector.broadcast %186 : vector<1x32xf32> to vector<64x32xf32>
    %189 = arith.mulf %187, %188 : vector<64x32xf32>
    %190 = arith.addf %178, %189 : vector<64x32xf32>
    %c1_75 = arith.constant 1 : index
    %c0_76 = arith.constant 0 : index
    %c1_77 = arith.constant 1 : index
    %c0_78 = arith.constant 0 : index
    %191 = vector.load %arg8[%c1_75, %c0_76, %c1_77, %c0_78] : memref<2x2x2x32xf32, #tpu.memory_space<vmem>>, vector<1x1x1x32xf32>
    %192 = vector.shape_cast %191 : vector<1x1x1x32xf32> to vector<1x32xf32>
    %193 = vector.broadcast %184 : vector<64x1xf32> to vector<64x32xf32>
    %194 = vector.broadcast %192 : vector<1x32xf32> to vector<64x32xf32>
    %195 = arith.mulf %193, %194 : vector<64x32xf32>
    %196 = arith.addf %190, %195 : vector<64x32xf32>
    %197 = arith.addf %143, %196 : vector<64x32xf32>
    %198 = vector.extract_strided_slice %142 {offsets = [0, 32], sizes = [64, 32], strides = [1, 1]} : vector<64x128xf32> to vector<64x32xf32>
    %199 = vector.extract_strided_slice %142 {offsets = [0, 98], sizes = [64, 2], strides = [1, 1]} : vector<64x128xf32> to vector<64x2xf32>
    %200 = vector.extract_strided_slice %199 {offsets = [0, 0], sizes = [64, 1], strides = [1, 1]} : vector<64x2xf32> to vector<64x1xf32>
    %201 = vector.shape_cast %200 : vector<64x1xf32> to vector<64xf32>
    %202 = vector.extract_strided_slice %199 {offsets = [0, 1], sizes = [64, 1], strides = [1, 1]} : vector<64x2xf32> to vector<64x1xf32>
    %c6 = arith.constant 6 : index
    %203 = memref.load %arg1[%c6] : memref<8xf32, #tpu.memory_space<smem>>
    %c7 = arith.constant 7 : index
    %204 = memref.load %arg1[%c7] : memref<8xf32, #tpu.memory_space<smem>>
    %205 = vector.shape_cast %201 : vector<64xf32> to vector<1x64xf32>
    %206 = vector.broadcast %202 : vector<64x1xf32> to vector<64x64xf32>
    %207 = vector.broadcast %205 : vector<1x64xf32> to vector<64x64xf32>
    %208 = arith.addf %206, %207 : vector<64x64xf32>
    %209 = vector.broadcast %203 : f32 to vector<64x64xf32>
    %210 = arith.mulf %23, %209 : vector<64x64xf32>
    %211 = arith.addf %208, %210 : vector<64x64xf32>
    %212 = vector.broadcast %204 : f32 to vector<64x64xf32>
    %213 = arith.mulf %25, %212 : vector<64x64xf32>
    %214 = arith.addf %211, %213 : vector<64x64xf32>
    %cst_79 = arith.constant 0.00999999977 : f32
    %215 = vector.broadcast %cst_79 : f32 to vector<64x64xf32>
    %216 = arith.mulf %215, %214 : vector<64x64xf32>
    %217 = arith.maximumf %214, %216 : vector<64x64xf32>
    %218 = arith.addf %217, %21 : vector<64x64xf32>
    %cst_80 = arith.constant dense<0xFF800000> : vector<64xf32>
    %219 = vector.multi_reduction <maximumf>, %218, %cst_80 [1] : vector<64x64xf32> to vector<64xf32>
    %220 = vector.shape_cast %219 : vector<64xf32> to vector<64x1xf32>
    %221 = vector.broadcast %220 : vector<64x1xf32> to vector<64x64xf32>
    %222 = arith.subf %218, %221 : vector<64x64xf32>
    %223 = math.exp %222 : vector<64x64xf32>
    %224 = arith.mulf %223, %17 : vector<64x64xf32>
    %cst_81 = arith.constant dense<0.000000e+00> : vector<64xf32>
    %225 = vector.multi_reduction <add>, %224, %cst_81 [1] : vector<64x64xf32> to vector<64xf32>
    %226 = vector.shape_cast %225 : vector<64xf32> to vector<64x1xf32>
    %cst_82 = arith.constant 1.000000e-30 : f32
    %227 = vector.broadcast %cst_82 : f32 to vector<64x1xf32>
    %228 = arith.maximumf %226, %227 : vector<64x1xf32>
    %229 = tpu.reciprocal %228 {approx = true} : vector<64x1xf32> -> vector<64x1xf32>
    %230 = vector.broadcast %229 : vector<64x1xf32> to vector<64x64xf32>
    %231 = arith.mulf %224, %230 : vector<64x64xf32>
    %cst_83 = arith.constant dense<0.000000e+00> : vector<64x32xf32>
    %232 = tpu.matmul %231, %198, %cst_83 {dimension_numbers = #tpu.dot_dimension_numbers<[1], [0], [0], [1], [0, 0, 1, 1], [], []>} : vector<64x64xf32>, vector<64x32xf32>, vector<64x32xf32> -> vector<64x32xf32>
    %233 = arith.mulf %231, %23 : vector<64x64xf32>
    %cst_84 = arith.constant dense<0.000000e+00> : vector<64xf32>
    %234 = vector.multi_reduction <add>, %233, %cst_84 [1] : vector<64x64xf32> to vector<64xf32>
    %235 = vector.shape_cast %234 : vector<64xf32> to vector<64x1xf32>
    %236 = arith.mulf %231, %25 : vector<64x64xf32>
    %cst_85 = arith.constant dense<0.000000e+00> : vector<64xf32>
    %237 = vector.multi_reduction <add>, %236, %cst_85 [1] : vector<64x64xf32> to vector<64xf32>
    %238 = vector.shape_cast %237 : vector<64xf32> to vector<64x1xf32>
    %c1_86 = arith.constant 1 : index
    %c1_87 = arith.constant 1 : index
    %c0_88 = arith.constant 0 : index
    %c0_89 = arith.constant 0 : index
    %239 = vector.load %arg8[%c1_86, %c1_87, %c0_88, %c0_89] : memref<2x2x2x32xf32, #tpu.memory_space<vmem>>, vector<1x1x1x32xf32>
    %240 = vector.shape_cast %239 : vector<1x1x1x32xf32> to vector<1x32xf32>
    %241 = vector.broadcast %235 : vector<64x1xf32> to vector<64x32xf32>
    %242 = vector.broadcast %240 : vector<1x32xf32> to vector<64x32xf32>
    %243 = arith.mulf %241, %242 : vector<64x32xf32>
    %244 = arith.addf %232, %243 : vector<64x32xf32>
    %c1_90 = arith.constant 1 : index
    %c1_91 = arith.constant 1 : index
    %c1_92 = arith.constant 1 : index
    %c0_93 = arith.constant 0 : index
    %245 = vector.load %arg8[%c1_90, %c1_91, %c1_92, %c0_93] : memref<2x2x2x32xf32, #tpu.memory_space<vmem>>, vector<1x1x1x32xf32>
    %246 = vector.shape_cast %245 : vector<1x1x1x32xf32> to vector<1x32xf32>
    %247 = vector.broadcast %238 : vector<64x1xf32> to vector<64x32xf32>
    %248 = vector.broadcast %246 : vector<1x32xf32> to vector<64x32xf32>
    %249 = arith.mulf %247, %248 : vector<64x32xf32>
    %250 = arith.addf %244, %249 : vector<64x32xf32>
    %251 = arith.addf %197, %250 : vector<64x32xf32>
    %cst_94 = arith.constant 5.000000e-01 : f32
    %252 = vector.broadcast %cst_94 : f32 to vector<64x32xf32>
    %253 = arith.mulf %251, %252 : vector<64x32xf32>
    %254 = tpu.concatenate %177, %231 in 1 : vector<64x64xf32>, vector<64x64xf32> -> vector<64x128xf32>
    %c0_95 = arith.constant 0 : index
    %c0_96 = arith.constant 0 : index
    %c0_97 = arith.constant 0 : index
    %255 = vector.load %arg10[%c0_95, %c0_96, %c0_97] : memref<1x64x128xf32, #tpu.memory_space<vmem>>, vector<1x64x128xf32>
    %256 = vector.shape_cast %255 : vector<1x64x128xf32> to vector<64x128xf32>
    %257 = vector.shape_cast %254 : vector<64x128xf32> to vector<1x64x128xf32>
    tpu.vector_store %arg10[%c0_95, %c0_96, %c0_97], %257 {strides = array<i32>} : memref<1x64x128xf32, #tpu.memory_space<vmem>>, vector<1x64x128xf32>,
    %258 = tpu.concatenate %253, %15 in 1 : vector<64x32xf32>, vector<64x32xf32> -> vector<64x64xf32>
    %c0_98 = arith.constant 0 : index
    %c0_99 = arith.constant 0 : index
    %c0_100 = arith.constant 0 : index
    %259 = vector.load %arg9[%c0_98, %c0_99, %c0_100] : memref<1x64x64xf32, #tpu.memory_space<vmem>>, vector<1x64x64xf32>
    %260 = vector.shape_cast %259 : vector<1x64x64xf32> to vector<64x64xf32>
    %261 = vector.shape_cast %258 : vector<64x64xf32> to vector<1x64x64xf32>
    tpu.vector_store %arg9[%c0_98, %c0_99, %c0_100], %261 {strides = array<i32>} : memref<1x64x64xf32, #tpu.memory_space<vmem>>, vector<1x64x64xf32>,
    return
  }
  func.func @transform_0(%arg0: i32, %arg1: memref<8xf32, #tpu.memory_space<smem>>) -> (i32, i32, i32) {
    %c0_i32 = arith.constant 0 : i32
    %c0_i32_0 = arith.constant 0 : i32
    %c0_i32_1 = arith.constant 0 : i32
    return %arg0, %c0_i32, %c0_i32_0 : i32, i32, i32
  }
  func.func @transform_1(%arg0: i32, %arg1: memref<8xf32, #tpu.memory_space<smem>>) -> (i32, i32) {
    %c0_i32 = arith.constant 0 : i32
    %c0_i32_0 = arith.constant 0 : i32
    %c0_i32_1 = arith.constant 0 : i32
    return %c0_i32, %c0_i32_0 : i32, i32
  }
  func.func @transform_2(%arg0: i32, %arg1: memref<8xf32, #tpu.memory_space<smem>>) -> (i32, i32) {
    %c0_i32 = arith.constant 0 : i32
    %c0_i32_0 = arith.constant 0 : i32
    %c0_i32_1 = arith.constant 0 : i32
    return %c0_i32, %c0_i32_0 : i32, i32
  }
  func.func @transform_3(%arg0: i32, %arg1: memref<8xf32, #tpu.memory_space<smem>>) -> (i32, i32, i32) {
    %c0_i32 = arith.constant 0 : i32
    %c0_i32_0 = arith.constant 0 : i32
    %c0_i32_1 = arith.constant 0 : i32
    return %arg0, %c0_i32, %c0_i32_0 : i32, i32, i32
  }
  func.func @transform_4(%arg0: i32, %arg1: memref<8xf32, #tpu.memory_space<smem>>) -> (i32, i32, i32, i32) {
    %c0_i32 = arith.constant 0 : i32
    %c0_i32_0 = arith.constant 0 : i32
    %c0_i32_1 = arith.constant 0 : i32
    %c0_i32_2 = arith.constant 0 : i32
    return %arg0, %c0_i32, %c0_i32_0, %c0_i32_1 : i32, i32, i32, i32
  }
  func.func @transform_5(%arg0: i32, %arg1: memref<8xf32, #tpu.memory_space<smem>>) -> (i32, i32, i32) {
    %c0_i32 = arith.constant 0 : i32
    %c0_i32_0 = arith.constant 0 : i32
    %c0_i32_1 = arith.constant 0 : i32
    %c0_i32_2 = arith.constant 0 : i32
    return %c0_i32, %c0_i32_0, %c0_i32_1 : i32, i32, i32
  }
  func.func @transform_6(%arg0: i32, %arg1: memref<8xf32, #tpu.memory_space<smem>>) -> (i32, i32, i32, i32) {
    %c0_i32 = arith.constant 0 : i32
    %c0_i32_0 = arith.constant 0 : i32
    %c0_i32_1 = arith.constant 0 : i32
    %c0_i32_2 = arith.constant 0 : i32
    %c0_i32_3 = arith.constant 0 : i32
    return %c0_i32, %c0_i32_0, %c0_i32_1, %c0_i32_2 : i32, i32, i32, i32
  }
  func.func @transform_7(%arg0: i32, %arg1: memref<8xf32, #tpu.memory_space<smem>>) -> (i32, i32, i32) {
    %c0_i32 = arith.constant 0 : i32
    %c0_i32_0 = arith.constant 0 : i32
    %c0_i32_1 = arith.constant 0 : i32
    return %arg0, %c0_i32, %c0_i32_0 : i32, i32, i32
  }
  func.func @transform_8(%arg0: i32, %arg1: memref<8xf32, #tpu.memory_space<smem>>) -> (i32, i32, i32) {
    %c0_i32 = arith.constant 0 : i32
    %c0_i32_0 = arith.constant 0 : i32
    %c0_i32_1 = arith.constant 0 : i32
    return %arg0, %c0_i32, %c0_i32_0 : i32, i32, i32
  }
}

</mosaic_0001>

<llo_original>
// kernel: tpu_custom_call.1
$region0: #{tpu_custom_call.1}
  #allocation0 [shape = 'u32[]', space=smem, size = 0x4, offset = 0x4, fixed_abs, tag = 'smem constant byte address 0x4 - core index']
  #allocation1 [shape = 'u32[72,128]{1,0:T(1,128)}', space=vmem, size = 0x9000, scoped, tag = 'internal scratch']
  #allocation2 [shape = 's32[1]{0}', space=sflag, size = 0x4, scoped, tag = 'scoped memory for tpu_custom_call.1']
  #allocation3 [shape = 'u8[512]{0}', space=smem, size = 0x200, scoped, tag = 'prefetched SMEM operand 0']
  %s0 = inlined_call_operand.vmem [shape: f32[8], index: 0, kind: input, shape index: {}]
  %s1 = inlined_call_operand.hbm [shape: f32[2,64,280], index: 1, kind: input, shape index: {}]
  %s2 = inlined_call_operand.vmem [shape: f32[280,32], index: 2, kind: input, shape index: {}]
  %s3 = inlined_call_operand.vmem [shape: f32[3,32], index: 3, kind: input, shape index: {}]
  %s4 = inlined_call_operand.hbm [shape: f32[2,64,64], index: 4, kind: input, shape index: {}]
  %s5 = inlined_call_operand.vmem [shape: f32[2,2,64,64], index: 5, kind: input, shape index: {}]
  %s6 = inlined_call_operand.vmem [shape: f32[2,32,128], index: 6, kind: input, shape index: {}]
  %s7 = inlined_call_operand.vmem [shape: f32[2,2,2,32], index: 7, kind: input, shape index: {}]
  %s8 = inlined_call_operand.hbm [shape: f32[2,64,64], index: 8, kind: output, shape index: {0}]
  %s9 = inlined_call_operand.hbm [shape: f32[2,64,128], index: 9, kind: output, shape index: {1}]
  %10 = xla_tuple %s8, %s9
  %s11 = sld [smem:[#allocation0]]
  $region77: #{tpu_custom_call.1} parent=0
    _
  %s13 = ssub.s32 1, %s11
  %s14 = scalar_select 0, %s13, %s11
  %s16 = sshll.u32 %s0, 4
  %s17 = int_to_ptr.vmem [resolvable:$true] %s16
  %19 = dma.vmem_to_smem %s17, 16, [#allocation3], [#allocation2]
  %21 = dma.done [#allocation2], 16
  %22 = sfence
  $region1: #{tpu_custom_call.1} parent=0
    #allocation4 [shape = 'u8[196608]{0}', space=vmem, size = 0x30000, scoped, tag = 'input window, operand 1']
    #allocation5 [shape = 's32[2]{0}', space=sflag, size = 0x8, scoped, tag = 'scoped memory for tpu_custom_call.1']
    #allocation6 [shape = 's32[2]{0}', space=sflag, size = 0x8, scoped, tag = 'scoped memory for tpu_custom_call.1']
    #allocation7 [shape = 'u8[65536]{0}', space=vmem, size = 0x10000, scoped, tag = 'input window, operand 4']
    #allocation8 [shape = 's32[2]{0}', space=sflag, size = 0x8, scoped, tag = 'scoped memory for tpu_custom_call.1']
    #allocation9 [shape = 'u8[65536]{0}', space=vmem, size = 0x10000, scoped, tag = 'output window, operand 0']
    #allocation10 [shape = 'u8[65536]{0}', space=vmem, size = 0x10000, scoped, tag = 'output window, operand 1']
    #allocation11 [shape = 's32[2]{0}', space=sflag, size = 0x8, scoped, tag = 'scoped memory for tpu_custom_call.1']
    %23 = vsyncpa [#allocation5], 0
    %s24 = scalar_lea.sflag [#allocation5], 1
    %25 = vsyncpa %s24, 0
    %26 = vsyncpa [#allocation8], 0
    %s27 = scalar_lea.sflag [#allocation8], 1
    %28 = vsyncpa %s27, 0
    %29 = vsyncpa [#allocation6], 0
    %s30 = scalar_lea.sflag [#allocation6], 1
    %31 = vsyncpa %s30, 0
    %32 = vsyncpa [#allocation11], 0
    %s33 = scalar_lea.sflag [#allocation11], 1
    %34 = vsyncpa %s33, 0
    loop: start=0, step=1, limit=4
    $region2: #{tpu_custom_call.1} parent=1 // loop_pre_header
      _
    $region3: #{tpu_custom_call.1} parent=1 // loop_header
      %s36 = sphi 0, %s40
      %p37 = scmp.ge.s32.totalorder %s36, 4
      %s46 = sphi 0, %s48
      %s49 = sphi 0, %s46
      %s50 = sphi 0, %s49
      %s66 = sphi 0, %s50
      %s70 = sphi 0, %s70
      %s72 = sphi 0, %s70
      %s73 = sphi 0, %s72
      %s87 = sphi 0, %s73
      %s91 = sphi 0, %s91
      %s93 = sphi 0, %s91
      %s94 = sphi 0, %s93
      %s108 = sphi 0, %s94
      %s114 = sphi 0, %s116
      %s117 = sphi 0, %s114
      %s118 = sphi 0, %s117
      %s134 = sphi 0, %s118
      %s140 = sphi 0, %s142
      %s143 = sphi 0, %s140
      %s144 = sphi 0, %s143
      %s160 = sphi 0, %s144
      %s164 = sphi 0, %s164
      %s166 = sphi 0, %s164
      %s167 = sphi 0, %s166
      %s181 = sphi 0, %s167
      %s185 = sphi 0, %s185
      %s187 = sphi 0, %s185
      %s188 = sphi 0, %s187
      %s202 = sphi 0, %s188
      %s208 = sphi 0, %s210
      %s211 = sphi 0, %s208
      %s212 = sphi 0, %s211
      %s228 = sphi 0, %s212
      %s234 = sphi 0, %s236
      %s237 = sphi 0, %s234
      %s238 = sphi 0, %s237
      %s254 = sphi 0, %s238
    $region4: #{tpu_custom_call.1} parent=1 // loop_header_branch
      %39 = sbr.rel (%p37) target = $region8
    $region5: #{tpu_custom_call.1} parent=1 // loop_body
      %s41 = ssub.s32 %s36, 1
      %s42 = ssub.s32 %s36, 2
      %s43 = sadd.s32 %s36, 1
      %s44 = ssub.s32 %s36, %s43
      %p45 = scmp.eq.s32.totalorder %s44, 0
      %s47 = sadd.s32 %s46, 1
      %s48 = scalar_select %p45, %s46, %s47
      %p51 = pneg %p45
      %p52 = scmp.eq.s32.totalorder %s36, 1
      %p53 = por %p51, %p52
      %p54 = scmp.ne.s32.totalorder %s46, %s49
      %p55 = scmp.eq.s32.totalorder %s36, 0
      %p56 = por %p54, %p55
      %p57 = scmp.ne.s32.totalorder %s46, %s49
      %p58 = scmp.eq.s32.totalorder %s41, 1
      %p59 = por %p57, %p58
      %p60 = scmp.ne.s32.totalorder %s49, %s50
      %p61 = scmp.eq.s32.totalorder %s41, 0
      %p62 = por %p60, %p61
      %p63 = scmp.ne.s32.totalorder %s49, %s50
      %p64 = scmp.eq.s32.totalorder %s42, 1
      %p65 = por %p63, %p64
      %p67 = scmp.ne.s32.totalorder %s50, %s66
      %p68 = scmp.eq.s32.totalorder %s42, 0
      %p69 = por %p67, %p68
      %s71 = sadd.s32 %s70, 1
      %p74 = scmp.eq.s32.totalorder %s36, 1
      %p75 = scmp.ne.s32.totalorder %s70, %s72
      %p76 = scmp.eq.s32.totalorder %s36, 0
      %p77 = por %p75, %p76
      %p78 = scmp.ne.s32.totalorder %s70, %s72
      %p79 = scmp.eq.s32.totalorder %s41, 1
      %p80 = por %p78, %p79
      %p81 = scmp.ne.s32.totalorder %s72, %s73
      %p82 = scmp.eq.s32.totalorder %s41, 0
      %p83 = por %p81, %p82
      %p84 = scmp.ne.s32.totalorder %s72, %s73
      %p85 = scmp.eq.s32.totalorder %s42, 1
      %p86 = por %p84, %p85
      %p88 = scmp.ne.s32.totalorder %s73, %s87
      %p89 = scmp.eq.s32.totalorder %s42, 0
      %p90 = por %p88, %p89
      %s92 = sadd.s32 %s91, 1
      %p95 = scmp.eq.s32.totalorder %s36, 1
      %p96 = scmp.ne.s32.totalorder %s91, %s93
      %p97 = scmp.eq.s32.totalorder %s36, 0
      %p98 = por %p96, %p97
      %p99 = scmp.ne.s32.totalorder %s91, %s93
      %p100 = scmp.eq.s32.totalorder %s41, 1
      %p101 = por %p99, %p100
      %p102 = scmp.ne.s32.totalorder %s93, %s94
      %p103 = scmp.eq.s32.totalorder %s41, 0
      %p104 = por %p102, %p103
      %p105 = scmp.ne.s32.totalorder %s93, %s94
      %p106 = scmp.eq.s32.totalorder %s42, 1
      %p107 = por %p105, %p106
      %p109 = scmp.ne.s32.totalorder %s94, %s108
      %p110 = scmp.eq.s32.totalorder %s42, 0
      %p111 = por %p109, %p110
      %s112 = ssub.s32 %s36, %s43
      %p113 = scmp.eq.s32.totalorder %s112, 0
      %s115 = sadd.s32 %s114, 1
      %s116 = scalar_select %p113, %s114, %s115
      %p119 = pneg %p113
      %p120 = scmp.eq.s32.totalorder %s36, 1
      %p121 = por %p119, %p120
      %p122 = scmp.ne.s32.totalorder %s114, %s117
      %p123 = scmp.eq.s32.totalorder %s36, 0
      %p124 = por %p122, %p123
      %p125 = scmp.ne.s32.totalorder %s114, %s117
      %p126 = scmp.eq.s32.totalorder %s41, 1
      %p127 = por %p125, %p126
      %p128 = scmp.ne.s32.totalorder %s117, %s118
      %p129 = scmp.eq.s32.totalorder %s41, 0
      %p130 = por %p128, %p129
      %p131 = scmp.ne.s32.totalorder %s117, %s118
      %p132 = scmp.eq.s32.totalorder %s42, 1
      %p133 = por %p131, %p132
      %p135 = scmp.ne.s32.totalorder %s118, %s134
      %p136 = scmp.eq.s32.totalorder %s42, 0
      %p137 = por %p135, %p136
      %s138 = ssub.s32 %s36, %s43
      %p139 = scmp.eq.s32.totalorder %s138, 0
      %s141 = sadd.s32 %s140, 1
      %s142 = scalar_select %p139, %s140, %s141
      %p145 = pneg %p139
      %p146 = scmp.eq.s32.totalorder %s36, 1
      %p147 = por %p145, %p146
      %p148 = scmp.ne.s32.totalorder %s140, %s143
      %p149 = scmp.eq.s32.totalorder %s36, 0
      %p150 = por %p148, %p149
      %p151 = scmp.ne.s32.totalorder %s140, %s143
      %p152 = scmp.eq.s32.totalorder %s41, 1
      %p153 = por %p151, %p152
      %p154 = scmp.ne.s32.totalorder %s143, %s144
      %p155 = scmp.eq.s32.totalorder %s41, 0
      %p156 = por %p154, %p155
      %p157 = scmp.ne.s32.totalorder %s143, %s144
      %p158 = scmp.eq.s32.totalorder %s42, 1
      %p159 = por %p157, %p158
      %p161 = scmp.ne.s32.totalorder %s144, %s160
      %p162 = scmp.eq.s32.totalorder %s42, 0
      %p163 = por %p161, %p162
      %s165 = sadd.s32 %s164, 1
      %p168 = scmp.eq.s32.totalorder %s36, 1
      %p169 = scmp.ne.s32.totalorder %s164, %s166
      %p170 = scmp.eq.s32.totalorder %s36, 0
      %p171 = por %p169, %p170
      %p172 = scmp.ne.s32.totalorder %s164, %s166
      %p173 = scmp.eq.s32.totalorder %s41, 1
      %p174 = por %p172, %p173
      %p175 = scmp.ne.s32.totalorder %s166, %s167
      %p176 = scmp.eq.s32.totalorder %s41, 0
      %p177 = por %p175, %p176
      %p178 = scmp.ne.s32.totalorder %s166, %s167
      %p179 = scmp.eq.s32.totalorder %s42, 1
      %p180 = por %p178, %p179
      %p182 = scmp.ne.s32.totalorder %s167, %s181
      %p183 = scmp.eq.s32.totalorder %s42, 0
      %p184 = por %p182, %p183
      %s186 = sadd.s32 %s185, 1
      %p189 = scmp.eq.s32.totalorder %s36, 1
      %p190 = scmp.ne.s32.totalorder %s185, %s187
      %p191 = scmp.eq.s32.totalorder %s36, 0
      %p192 = por %p190, %p191
      %p193 = scmp.ne.s32.totalorder %s185, %s187
      %p194 = scmp.eq.s32.totalorder %s41, 1
      %p195 = por %p193, %p194
      %p196 = scmp.ne.s32.totalorder %s187, %s188
      %p197 = scmp.eq.s32.totalorder %s41, 0
      %p198 = por %p196, %p197
      %p199 = scmp.ne.s32.totalorder %s187, %s188
      %p200 = scmp.eq.s32.totalorder %s42, 1
      %p201 = por %p199, %p200
      %p203 = scmp.ne.s32.totalorder %s188, %s202
      %p204 = scmp.eq.s32.totalorder %s42, 0
      %p205 = por %p203, %p204
      %s206 = ssub.s32 %s36, %s43
      %p207 = scmp.eq.s32.totalorder %s206, 0
      %s209 = sadd.s32 %s208, 1
      %s210 = scalar_select %p207, %s208, %s209
      %p213 = pneg %p207
      %p214 = scmp.eq.s32.totalorder %s36, 1
      %p215 = por %p213, %p214
      %p216 = scmp.ne.s32.totalorder %s208, %s211
      %p217 = scmp.eq.s32.totalorder %s36, 0
      %p218 = por %p216, %p217
      %p219 = scmp.ne.s32.totalorder %s208, %s211
      %p220 = scmp.eq.s32.totalorder %s41, 1
      %p221 = por %p219, %p220
      %p222 = scmp.ne.s32.totalorder %s211, %s212
      %p223 = scmp.eq.s32.totalorder %s41, 0
      %p224 = por %p222, %p223
      %p225 = scmp.ne.s32.totalorder %s211, %s212
      %p226 = scmp.eq.s32.totalorder %s42, 1
      %p227 = por %p225, %p226
      %p229 = scmp.ne.s32.totalorder %s212, %s228
      %p230 = scmp.eq.s32.totalorder %s42, 0
      %p231 = por %p229, %p230
      %s232 = ssub.s32 %s36, %s43
      %p233 = scmp.eq.s32.totalorder %s232, 0
      %s235 = sadd.s32 %s234, 1
      %s236 = scalar_select %p233, %s234, %s235
      %p239 = pneg %p233
      %p240 = scmp.eq.s32.totalorder %s36, 1
      %p241 = por %p239, %p240
      %p242 = scmp.ne.s32.totalorder %s234, %s237
      %p243 = scmp.eq.s32.totalorder %s36, 0
      %p244 = por %p242, %p243
      %p245 = scmp.ne.s32.totalorder %s234, %s237
      %p246 = scmp.eq.s32.totalorder %s41, 1
      %p247 = por %p245, %p246
      %p248 = scmp.ne.s32.totalorder %s237, %s238
      %p249 = scmp.eq.s32.totalorder %s41, 0
      %p250 = por %p248, %p249
      %p251 = scmp.ne.s32.totalorder %s237, %s238
      %p252 = scmp.eq.s32.totalorder %s42, 1
      %p253 = por %p251, %p252
      %p255 = scmp.ne.s32.totalorder %s238, %s254
      %p256 = scmp.eq.s32.totalorder %s42, 0
      %p257 = por %p255, %p256
      %p258 = scmp.le.s32.totalorder 1, %s36
      %p259 = scmp.lt.s32.totalorder %s36, 3
      %p260 = pnand %p258, %p259
      %p261 = pneg %p260
      // Predicated region
      $region9: #{tpu_custom_call.1} parent=5 // pred_check
        _
      $region10: #{tpu_custom_call.1} parent=5 // pred_check_branch
        %263 = sbr.rel (%p260) target = $region12
      $region11: #{tpu_custom_call.1} parent=5 // pred_region
        %s264 = ssub.s32 %s36, 1
        // Predicated region
        $region13: #{tpu_custom_call.1} parent=11 // pred_check
          %p265 = pneg %p83
        $region14: #{tpu_custom_call.1} parent=11 // pred_check_branch
          %267 = sbr.rel (%p265) target = $region16
        $region15: #{tpu_custom_call.1} parent=11 // pred_region
          _
        $region16: #{tpu_custom_call.1} parent=11 // pred_fallthru
          _
        // Predicated region
        $region17: #{tpu_custom_call.1} parent=11 // pred_check
          %p268 = pneg %p104
        $region18: #{tpu_custom_call.1} parent=11 // pred_check_branch
          %270 = sbr.rel (%p268) target = $region20
        $region19: #{tpu_custom_call.1} parent=11 // pred_region
          _
        $region20: #{tpu_custom_call.1} parent=11 // pred_fallthru
          _
        // Predicated region
        $region21: #{tpu_custom_call.1} parent=11 // pred_check
          %p271 = pneg %p177
        $region22: #{tpu_custom_call.1} parent=11 // pred_check_branch
          %273 = sbr.rel (%p271) target = $region24
        $region23: #{tpu_custom_call.1} parent=11 // pred_region
          _
        $region24: #{tpu_custom_call.1} parent=11 // pred_fallthru
          _
        // Predicated region
        $region25: #{tpu_custom_call.1} parent=11 // pred_check
          %p274 = pneg %p198
        $region26: #{tpu_custom_call.1} parent=11 // pred_check_branch
          %276 = sbr.rel (%p274) target = $region28
        $region27: #{tpu_custom_call.1} parent=11 // pred_region
          _
        $region28: #{tpu_custom_call.1} parent=11 // pred_fallthru
          _
      $region12: #{tpu_custom_call.1} parent=5 // pred_fallthru
        _
      %p277 = scmp.lt.s32.totalorder %s36, 2
      // Predicated region
      $region29: #{tpu_custom_call.1} parent=5 // pred_check
        %p278 = pneg %p277
      $region30: #{tpu_custom_call.1} parent=5 // pred_check_branch
        %280 = sbr.rel (%p278) target = $region32
      $region31: #{tpu_custom_call.1} parent=5 // pred_region
        // Predicated region
        $region33: #{tpu_custom_call.1} parent=31 // pred_check
          %p281 = pneg %p56
        $region34: #{tpu_custom_call.1} parent=31 // pred_check_branch
          %283 = sbr.rel (%p281) target = $region36
        $region35: #{tpu_custom_call.1} parent=31 // pred_region
          %s284 = sand.u32 %s46, 1
          %s285 = scalar_lea.sflag [#allocation5], %s284
          %s286 = sand.u32 %s46, 1
          %s287 = smul.addr %s286, 192
          %s288 = scalar_lea.vmem [#allocation4], %s287
          %290 = vsyncadd %s285, 0
          %s291 = smul.addr %s36, 24
          %s292 = smul.addr %s291, 8
          %s293 = scalar_lea.hbm %s1, %s292
          %s294 = sshll.u32 %s293, 4
          %s295 = int_to_ptr.hbm [resolvable:$true] %s294
          %s296 = sshll.u32 %s288, 4
          %s297 = int_to_ptr.vmem [resolvable:$true] %s296
          %302 = dma.hbm_to_vmem [thread:$0]  %s295, 3072, %s297, %s285, 384, 384, 24
        $region36: #{tpu_custom_call.1} parent=31 // pred_fallthru
          _
        // Predicated region
        $region37: #{tpu_custom_call.1} parent=31 // pred_check
          %p303 = pneg %p124
        $region38: #{tpu_custom_call.1} parent=31 // pred_check_branch
          %305 = sbr.rel (%p303) target = $region40
        $region39: #{tpu_custom_call.1} parent=31 // pred_region
          %s306 = sand.u32 %s114, 1
          %s307 = scalar_lea.sflag [#allocation8], %s306
          %s308 = sand.u32 %s114, 1
          %s309 = smul.addr %s308, 64
          %s310 = scalar_lea.vmem [#allocation7], %s309
          %312 = vsyncadd %s307, 0
          %s313 = smul.addr %s36, 8
          %s314 = smul.addr %s313, 8
          %s315 = scalar_lea.hbm %s4, %s314
          %s316 = sshll.u32 %s315, 4
          %s317 = int_to_ptr.hbm [resolvable:$true] %s316
          %s318 = sshll.u32 %s310, 4
          %s319 = int_to_ptr.vmem [resolvable:$true] %s318
          %324 = dma.hbm_to_vmem [thread:$0]  %s317, 1024, %s319, %s307, 128, 128, 8
        $region40: #{tpu_custom_call.1} parent=31 // pred_fallthru
          _
        // Predicated region
        $region41: #{tpu_custom_call.1} parent=31 // pred_check
          %p325 = pneg %p150
        $region42: #{tpu_custom_call.1} parent=31 // pred_check_branch
          %327 = sbr.rel (%p325) target = $region44
        $region43: #{tpu_custom_call.1} parent=31 // pred_region
          %p328 = scmp.lt.s32.totalorder %s36, 1
          %s329 = scalar_select %p328, %s36, 1
          %s330 = smul.addr %s329, 16
          %s331 = smul.addr %s330, 8
          %s332 = scalar_lea.vmem %s5, %s331
        $region44: #{tpu_custom_call.1} parent=31 // pred_fallthru
          _
      $region32: #{tpu_custom_call.1} parent=5 // pred_fallthru
        _
      %p333 = scmp.le.s32.totalorder 1, %s36
      %p334 = scmp.lt.s32.totalorder %s36, 3
      %p335 = pnand %p333, %p334
      %p336 = pneg %p335
      // Predicated region
      $region45: #{tpu_custom_call.1} parent=5 // pred_check
        _
      $region46: #{tpu_custom_call.1} parent=5 // pred_check_branch
        %338 = sbr.rel (%p335) target = $region48
      $region47: #{tpu_custom_call.1} parent=5 // pred_region
        %s339 = ssub.s32 %s36, 1
        %s340 = sand.u32 %s49, 1
        %s341 = scalar_lea.sflag [#allocation5], %s340
        %s342 = sand.u32 %s49, 1
        %s343 = smul.addr %s342, 192
        %s344 = scalar_lea.vmem [#allocation4], %s343
        // Predicated region
        $region49: #{tpu_custom_call.1} parent=47 // pred_check
          %p345 = pneg %p62
        $region50: #{tpu_custom_call.1} parent=47 // pred_check_branch
          %347 = sbr.rel (%p345) target = $region52
        $region51: #{tpu_custom_call.1} parent=47 // pred_region
          %349 = dma.done %s341, 3072
        $region52: #{tpu_custom_call.1} parent=47 // pred_fallthru
          _
        %s350 = sand.u32 %s117, 1
        %s351 = scalar_lea.sflag [#allocation8], %s350
        %s352 = sand.u32 %s117, 1
        %s353 = smul.addr %s352, 64
        %s354 = scalar_lea.vmem [#allocation7], %s353
        // Predicated region
        $region53: #{tpu_custom_call.1} parent=47 // pred_check
          %p355 = pneg %p130
        $region54: #{tpu_custom_call.1} parent=47 // pred_check_branch
          %357 = sbr.rel (%p355) target = $region56
        $region55: #{tpu_custom_call.1} parent=47 // pred_region
          %359 = dma.done %s351, 1024
        $region56: #{tpu_custom_call.1} parent=47 // pred_fallthru
          _
        %s360 = sand.u32 %s49, 1
        %s361 = scalar_lea.sflag [#allocation5], %s360
        %s362 = sand.u32 %s49, 1
        %s363 = smul.addr %s362, 192
        %s364 = scalar_lea.vmem [#allocation4], %s363
        %p365 = pneg %p62
        %p366 = pneg %p59
        %p367 = pneg %p83
        %p368 = pneg %p80
        %p369 = pneg %p104
        %p370 = pneg %p101
        %s371 = sand.u32 %s117, 1
        %s372 = scalar_lea.sflag [#allocation8], %s371
        %s373 = sand.u32 %s117, 1
        %s374 = smul.addr %s373, 64
        %s375 = scalar_lea.vmem [#allocation7], %s374
        %p376 = pneg %p130
        %p377 = pneg %p127
        %p378 = scmp.lt.s32.totalorder %s41, 1
        %s379 = scalar_select %p378, %s41, 1
        %s380 = smul.addr %s379, 16
        %s381 = smul.addr %s380, 8
        %s382 = scalar_lea.vmem %s5, %s381
        %p383 = pneg %p156
        %p384 = pneg %p153
        %p385 = pneg %p177
        %p386 = pneg %p174
        %p387 = pneg %p198
        %p388 = pneg %p195
        %p389 = pneg %p224
        %p390 = pneg %p221
        %s391 = sand.u32 %s211, 1
        %s392 = scalar_lea.sflag [#allocation6], %s391
        %s393 = sand.u32 %s211, 1
        %s394 = smul.addr %s393, 64
        %s395 = scalar_lea.vmem [#allocation9], %s394
        %p396 = pneg %p250
        %p397 = pneg %p247
        %s398 = sand.u32 %s237, 1
        %s399 = scalar_lea.sflag [#allocation11], %s398
        %s400 = sand.u32 %s237, 1
        %s401 = smul.addr %s400, 64
        %s402 = scalar_lea.vmem [#allocation10], %s401
        %p403 = scmp.lt.s32.totalorder %s41, 1
        %s404 = scalar_select %p403, %s41, 1
        %s405 = smul.addr %s404, 16
        %s406 = smul.addr %s405, 8
        %s407 = scalar_lea.vmem %s5, %s406
        %v408 = vld [vmem:[%s344] sm:$0xff]
        %v409 = vld [vmem:[%s344 + $0x8] sm:$0xff]
        %v410 = vld [vmem:[%s344 + $0x10] sm:$0xff]
        %v411 = vld [vmem:[%s344 + $0x18] sm:$0xff]
        %v412 = vld [vmem:[%s344 + $0x20] sm:$0xff]
        %v413 = vld [vmem:[%s344 + $0x28] sm:$0xff]
        %v414 = vld [vmem:[%s344 + $0x30] sm:$0xff]
        %v415 = vld [vmem:[%s344 + $0x38] sm:$0xff]
        %v416 = vld [vmem:[%s344 + $0x40] sm:$0xff]
        %v417 = vld [vmem:[%s344 + $0x48] sm:$0xff]
        %v418 = vld [vmem:[%s344 + $0x50] sm:$0xff]
        %v419 = vld [vmem:[%s344 + $0x58] sm:$0xff]
        %v420 = vld [vmem:[%s344 + $0x60] sm:$0xff]
        %v421 = vld [vmem:[%s344 + $0x68] sm:$0xff]
        %v422 = vld [vmem:[%s344 + $0x70] sm:$0xff]
        %v423 = vld [vmem:[%s344 + $0x78] sm:$0xff]
        %v424 = vld [vmem:[%s344 + $0x80] sm:$0xff]
        %v425 = vld [vmem:[%s344 + $0x88] sm:$0xff]
        %v426 = vld [vmem:[%s344 + $0x90] sm:$0xff]
        %v427 = vld [vmem:[%s344 + $0x98] sm:$0xff]
        %v428 = vld [vmem:[%s344 + $0xa0] sm:$0xff]
        %v429 = vld [vmem:[%s344 + $0xa8] sm:$0xff]
        %v430 = vld [vmem:[%s344 + $0xb0] sm:$0xff]
        %v431 = vld [vmem:[%s344 + $0xb8] sm:$0xff]
        %v432 = vld [vmem:[%s2] sm:$0xff]
        %v433 = vld [vmem:[%s2 + $0x8] sm:$0xff]
        %v434 = vld [vmem:[%s2 + $0x10] sm:$0xff]
        %v435 = vld [vmem:[%s2 + $0x18] sm:$0xff]
        %v436 = vld [vmem:[%s2 + $0x20] sm:$0xff]
        %v437 = vld [vmem:[%s2 + $0x28] sm:$0xff]
        %v438 = vld [vmem:[%s2 + $0x30] sm:$0xff]
        %v439 = vld [vmem:[%s2 + $0x38] sm:$0xff]
        %v440 = vld [vmem:[%s2 + $0x40] sm:$0xff]
        %v441 = vld [vmem:[%s2 + $0x48] sm:$0xff]
        %v442 = vld [vmem:[%s2 + $0x50] sm:$0xff]
        %v443 = vld [vmem:[%s2 + $0x58] sm:$0xff]
        %v444 = vld [vmem:[%s2 + $0x60] sm:$0xff]
        %v445 = vld [vmem:[%s2 + $0x68] sm:$0xff]
        %v446 = vld [vmem:[%s2 + $0x70] sm:$0xff]
        %v447 = vld [vmem:[%s2 + $0x78] sm:$0xff]
        %v448 = vld [vmem:[%s2 + $0x80] sm:$0xff]
        %v449 = vld [vmem:[%s2 + $0x88] sm:$0xff]
        %v450 = vld [vmem:[%s2 + $0x90] sm:$0xff]
        %v451 = vld [vmem:[%s2 + $0x98] sm:$0xff]
        %v452 = vld [vmem:[%s2 + $0xa0] sm:$0xff]
        %v453 = vld [vmem:[%s2 + $0xa8] sm:$0xff]
        %v454 = vld [vmem:[%s2 + $0xb0] sm:$0xff]
        %v455 = vld [vmem:[%s2 + $0xb8] sm:$0xff]
        %v456 = vld [vmem:[%s2 + $0xc0] sm:$0xff]
        %v457 = vld [vmem:[%s2 + $0xc8] sm:$0xff]
        %v458 = vld [vmem:[%s2 + $0xd0] sm:$0xff]
        %v459 = vld [vmem:[%s2 + $0xd8] sm:$0xff]
        %v460 = vld [vmem:[%s2 + $0xe0] sm:$0xff]
        %v461 = vld [vmem:[%s2 + $0xe8] sm:$0xff]
        %v462 = vld [vmem:[%s2 + $0xf0] sm:$0xff]
        %v463 = vld [vmem:[%s2 + $0xf8] sm:$0xff]
        %v464 = vld [vmem:[%s2 + $0x100] sm:$0xff]
        %v465 = vld [vmem:[%s2 + $0x108] sm:$0xff]
        %v466 = vld [vmem:[%s2 + $0x110] sm:$0xff]
        %v467 = vld [vmem:[%s3] sm:$0x1]
        %v468 = vperm.slane %v467, 0
        %vm469 = vcmask 195584
        %v471 = vsel %vm469, %v410, 0
        %v474 = vsel %vm469, %v413, 0
        %v477 = vsel %vm469, %v416, 0
        %v480 = vsel %vm469, %v419, 0
        %v483 = vsel %vm469, %v422, 0
        %v486 = vsel %vm469, %v425, 0
        %v489 = vsel %vm469, %v428, 0
        %v492 = vsel %vm469, %v431, 0
        %494 = vmatpush.msra.mxu0 %v447
        %495 = vmatpush.msra.mxu0 %v446
        %496 = vmatpush.msra.mxu0 %v445
        %497 = vmatpush.msra.mxu0 %v444
        %498 = vmatpush.msra.mxu0 %v443
        %499 = vmatpush.msra.mxu0 %v442
        %500 = vmatpush.msra.mxu0 %v441
        %501 = vmatpush.msra.mxu0 %v440
        %502 = vmatpush.msra.mxu0 %v439
        %503 = vmatpush.msra.mxu0 %v438
        %504 = vmatpush.msra.mxu0 %v437
        %505 = vmatpush.msra.mxu0 %v436
        %506 = vmatpush.msra.mxu0 %v435
        %507 = vmatpush.msra.mxu0 %v434
        %508 = vmatpush.msra.mxu0 %v433
        %509 = vmatpush.msra.mxu0 %v432
        %510 = vmatmul.f32.gmra.mxu0 %v408
        %v511 = vpop.f32.mrf.mxu0
        %v512 = vadd.f32 %v468, %v511
        %513 = vmatmul.f32.gmra.mxu0 %v411
        %v514 = vpop.f32.mrf.mxu0
        %v515 = vadd.f32 %v468, %v514
        %516 = vmatmul.f32.gmra.mxu0 %v414
        %v517 = vpop.f32.mrf.mxu0
        %v518 = vadd.f32 %v468, %v517
        %519 = vmatmul.f32.gmra.mxu0 %v417
        %v520 = vpop.f32.mrf.mxu0
        %v521 = vadd.f32 %v468, %v520
        %522 = vmatmul.f32.gmra.mxu0 %v420
        %v523 = vpop.f32.mrf.mxu0
        %v524 = vadd.f32 %v468, %v523
        %525 = vmatmul.f32.gmra.mxu0 %v423
        %v526 = vpop.f32.mrf.mxu0
        %v527 = vadd.f32 %v468, %v526
        %528 = vmatmul.f32.gmra.mxu0 %v426
        %v529 = vpop.f32.mrf.mxu0
        %v530 = vadd.f32 %v468, %v529
        %531 = vmatmul.f32.gmra.mxu0 %v429
        %v532 = vpop.f32.mrf.mxu0
        %v533 = vadd.f32 %v468, %v532
        %534 = vdwg.mxu0
        %535 = vmatpush.msra.mxu0 %v463
        %536 = vmatpush.msra.mxu0 %v462
        %537 = vmatpush.msra.mxu0 %v461
        %538 = vmatpush.msra.mxu0 %v460
        %539 = vmatpush.msra.mxu0 %v459
        %540 = vmatpush.msra.mxu0 %v458
        %541 = vmatpush.msra.mxu0 %v457
        %542 = vmatpush.msra.mxu0 %v456
        %543 = vmatpush.msra.mxu0 %v455
        %544 = vmatpush.msra.mxu0 %v454
        %545 = vmatpush.msra.mxu0 %v453
        %546 = vmatpush.msra.mxu0 %v452
        %547 = vmatpush.msra.mxu0 %v451
        %548 = vmatpush.msra.mxu0 %v450
        %549 = vmatpush.msra.mxu0 %v449
        %550 = vmatpush.msra.mxu0 %v448
        %551 = vmatmul.f32.gmra.mxu0 %v409
        %v552 = vpop.f32.mrf.mxu0
        %v553 = vadd.f32 %v512, %v552
        %554 = vmatmul.f32.gmra.mxu0 %v412
        %v555 = vpop.f32.mrf.mxu0
        %v556 = vadd.f32 %v515, %v555
        %557 = vmatmul.f32.gmra.mxu0 %v415
        %v558 = vpop.f32.mrf.mxu0
        %v559 = vadd.f32 %v518, %v558
        %560 = vmatmul.f32.gmra.mxu0 %v418
        %v561 = vpop.f32.mrf.mxu0
        %v562 = vadd.f32 %v521, %v561
        %563 = vmatmul.f32.gmra.mxu0 %v421
        %v564 = vpop.f32.mrf.mxu0
        %v565 = vadd.f32 %v524, %v564
        %566 = vmatmul.f32.gmra.mxu0 %v424
        %v567 = vpop.f32.mrf.mxu0
        %v568 = vadd.f32 %v527, %v567
        %569 = vmatmul.f32.gmra.mxu0 %v427
        %v570 = vpop.f32.mrf.mxu0
        %v571 = vadd.f32 %v530, %v570
        %572 = vmatmul.f32.gmra.mxu0 %v430
        %v573 = vpop.f32.mrf.mxu0
        %v574 = vadd.f32 %v533, %v573
        %575 = vdwg.mxu0
        %576 = vmatpush.msra.mxu0 0.0
        %577 = vmatpush.msra.mxu0 0.0
        %578 = vmatpush.msra.mxu0 0.0
        %579 = vmatpush.msra.mxu0 0.0
        %580 = vmatpush.msra.mxu0 0.0
        %581 = vmatpush.msra.mxu0 0.0
        %582 = vmatpush.msra.mxu0 0.0
        %583 = vmatpush.msra.mxu0 0.0
        %584 = vmatpush.msra.mxu0 0.0
        %585 = vmatpush.msra.mxu0 0.0
        %586 = vmatpush.msra.mxu0 0.0
        %587 = vmatpush.msra.mxu0 0.0
        %588 = vmatpush.msra.mxu0 0.0
        %589 = vmatpush.msra.mxu0 %v466
        %590 = vmatpush.msra.mxu0 %v465
        %591 = vmatpush.msra.mxu0 %v464
        %592 = vmatmul.f32.gmra.mxu0 %v471
        %v593 = vpop.f32.mrf.mxu0
        %v594 = vadd.f32 %v553, %v593
        %595 = vmatmul.f32.gmra.mxu0 %v474
        %v596 = vpop.f32.mrf.mxu0
        %v597 = vadd.f32 %v556, %v596
        %598 = vmatmul.f32.gmra.mxu0 %v477
        %v599 = vpop.f32.mrf.mxu0
        %v600 = vadd.f32 %v559, %v599
        %601 = vmatmul.f32.gmra.mxu0 %v480
        %v602 = vpop.f32.mrf.mxu0
        %v603 = vadd.f32 %v562, %v602
        %604 = vmatmul.f32.gmra.mxu0 %v483
        %v605 = vpop.f32.mrf.mxu0
        %v606 = vadd.f32 %v565, %v605
        %607 = vmatmul.f32.gmra.mxu0 %v486
        %v608 = vpop.f32.mrf.mxu0
        %v609 = vadd.f32 %v568, %v608
        %610 = vmatmul.f32.gmra.mxu0 %v489
        %v611 = vpop.f32.mrf.mxu0
        %v612 = vadd.f32 %v571, %v611
        %613 = vmatmul.f32.gmra.mxu0 %v492
        %v614 = vpop.f32.mrf.mxu0
        %v615 = vadd.f32 %v574, %v614
        %616 = vdwg.mxu0
        %v617 = vmul.f32 %v594, 0.01
        %v618 = vmul.f32 %v597, 0.01
        %v619 = vmul.f32 %v600, 0.01
        %v620 = vmul.f32 %v603, 0.01
        %v621 = vmul.f32 %v606, 0.01
        %v622 = vmul.f32 %v609, 0.01
        %v623 = vmul.f32 %v612, 0.01
        %v624 = vmul.f32 %v615, 0.01
        %v625 = vmax.f32 %v594, %v617
        %v626 = vmax.f32 %v597, %v618
        %v627 = vmax.f32 %v600, %v619
        %v628 = vmax.f32 %v603, %v620
        %v629 = vmax.f32 %v606, %v621
        %v630 = vmax.f32 %v609, %v622
        %v631 = vmax.f32 %v612, %v623
        %v632 = vmax.f32 %v615, %v624
        %v633 = vld [vmem:[%s3 + $0x1] sm:$0x1]
        %v634 = vperm.slane %v633, 0
        %v635 = vmul.f32 %v625, %v634
        %v636 = vmul.f32 %v626, %v634
        %v637 = vmul.f32 %v627, %v634
        %v638 = vmul.f32 %v628, %v634
        %v639 = vmul.f32 %v629, %v634
        %v640 = vmul.f32 %v630, %v634
        %v641 = vmul.f32 %v631, %v634
        %v642 = vmul.f32 %v632, %v634
        %v643 = vld [vmem:[%s3 + $0x2] sm:$0x1]
        %v644 = vperm.slane %v643, 0
        %v645 = vadd.f32 %v635, %v644
        %v646 = vadd.f32 %v636, %v644
        %v647 = vadd.f32 %v637, %v644
        %v648 = vadd.f32 %v638, %v644
        %v649 = vadd.f32 %v639, %v644
        %v650 = vadd.f32 %v640, %v644
        %v651 = vadd.f32 %v641, %v644
        %v652 = vadd.f32 %v642, %v644
        %v653 = vld [vmem:[%s354] sm:$0xff]
        %v654 = vld [vmem:[%s354 + $0x8] sm:$0xff]
        %v655 = vld [vmem:[%s354 + $0x10] sm:$0xff]
        %v656 = vld [vmem:[%s354 + $0x18] sm:$0xff]
        %v657 = vld [vmem:[%s354 + $0x20] sm:$0xff]
        %v658 = vld [vmem:[%s354 + $0x28] sm:$0xff]
        %v659 = vld [vmem:[%s354 + $0x30] sm:$0xff]
        %v660 = vld [vmem:[%s354 + $0x38] sm:$0xff]
        %v661 = vsub.f32 %v653, 1.0
        %v662 = vsub.f32 %v654, 1.0
        %v663 = vsub.f32 %v655, 1.0
        %v664 = vsub.f32 %v656, 1.0
        %v665 = vsub.f32 %v657, 1.0
        %v666 = vsub.f32 %v658, 1.0
        %v667 = vsub.f32 %v659, 1.0
        %v668 = vsub.f32 %v660, 1.0
        %v669 = vmul.f32 %v661, 1e+30
        %v670 = vmul.f32 %v662, 1e+30
        %v671 = vmul.f32 %v663, 1e+30
        %v672 = vmul.f32 %v664, 1e+30
        %v673 = vmul.f32 %v665, 1e+30
        %v674 = vmul.f32 %v666, 1e+30
        %v675 = vmul.f32 %v667, 1e+30
        %v676 = vmul.f32 %v668, 1e+30
        %v677 = vld [vmem:[%s407] sm:$0xff]
        %v678 = vld [vmem:[%s407 + $0x8] sm:$0xff]
        %v679 = vld [vmem:[%s407 + $0x10] sm:$0xff]
        %v680 = vld [vmem:[%s407 + $0x18] sm:$0xff]
        %v681 = vld [vmem:[%s407 + $0x20] sm:$0xff]
        %v682 = vld [vmem:[%s407 + $0x28] sm:$0xff]
        %v683 = vld [vmem:[%s407 + $0x30] sm:$0xff]
        %v684 = vld [vmem:[%s407 + $0x38] sm:$0xff]
        %s685 = scalar_lea.vmem %s407, 64
        %v686 = vld [vmem:[%s685] sm:$0xff]
        %v687 = vld [vmem:[%s685 + $0x8] sm:$0xff]
        %v688 = vld [vmem:[%s685 + $0x10] sm:$0xff]
        %v689 = vld [vmem:[%s685 + $0x18] sm:$0xff]
        %v690 = vld [vmem:[%s685 + $0x20] sm:$0xff]
        %v691 = vld [vmem:[%s685 + $0x28] sm:$0xff]
        %v692 = vld [vmem:[%s685 + $0x30] sm:$0xff]
        %v693 = vld [vmem:[%s685 + $0x38] sm:$0xff]
        %v694 = vld [vmem:[%s6] sm:$0xff]
        %v695 = vld [vmem:[%s6 + $0x8] sm:$0xff]
        %v696 = vld [vmem:[%s6 + $0x10] sm:$0xff]
        %v697 = vld [vmem:[%s6 + $0x18] sm:$0xff]
        %vm698 = vcmask 261120
        %v700 = vsel %vm698, %v645, 0
        %v703 = vsel %vm698, %v646, 0
        %v706 = vsel %vm698, %v647, 0
        %v709 = vsel %vm698, %v648, 0
        %v712 = vsel %vm698, %v649, 0
        %v715 = vsel %vm698, %v650, 0
        %v718 = vsel %vm698, %v651, 0
        %v721 = vsel %vm698, %v652, 0
        %723 = vmatpush.msra.mxu0 0.0
        %724 = vmatpush.msra.mxu0 0.0
        %725 = vmatpush.msra.mxu0 0.0
        %726 = vmatpush.msra.mxu0 0.0
        %727 = vmatpush.msra.mxu0 0.0
        %728 = vmatpush.msra.mxu0 0.0
        %729 = vmatpush.msra.mxu0 0.0
        %730 = vmatpush.msra.mxu0 0.0
        %731 = vmatpush.msra.mxu0 0.0
        %732 = vmatpush.msra.mxu0 0.0
        %733 = vmatpush.msra.mxu0 0.0
        %734 = vmatpush.msra.mxu0 0.0
        %735 = vmatpush.msra.mxu0 %v697
        %736 = vmatpush.msra.mxu0 %v696
        %737 = vmatpush.msra.mxu0 %v695
        %738 = vmatpush.msra.mxu0 %v694
        %739 = vmatmul.f32.gmra.mxu0 %v700
        %v740 = vpop.f32.mrf.mxu0
        %v741 = vadd.f32 0.0, %v740
        %742 = vmatmul.f32.gmra.mxu0 %v703
        %v743 = vpop.f32.mrf.mxu0
        %v744 = vadd.f32 0.0, %v743
        %745 = vmatmul.f32.gmra.mxu0 %v706
        %v746 = vpop.f32.mrf.mxu0
        %v747 = vadd.f32 0.0, %v746
        %748 = vmatmul.f32.gmra.mxu0 %v709
        %v749 = vpop.f32.mrf.mxu0
        %v750 = vadd.f32 0.0, %v749
        %751 = vmatmul.f32.gmra.mxu0 %v712
        %v752 = vpop.f32.mrf.mxu0
        %v753 = vadd.f32 0.0, %v752
        %754 = vmatmul.f32.gmra.mxu0 %v715
        %v755 = vpop.f32.mrf.mxu0
        %v756 = vadd.f32 0.0, %v755
        %757 = vmatmul.f32.gmra.mxu0 %v718
        %v758 = vpop.f32.mrf.mxu0
        %v759 = vadd.f32 0.0, %v758
        %760 = vmatmul.f32.gmra.mxu0 %v721
        %v761 = vpop.f32.mrf.mxu0
        %v762 = vadd.f32 0.0, %v761
        %763 = vdwg.mxu0
        %s764 = sld [smem:[#allocation3]]
        %s765 = sld [smem:[#allocation3 + $0x1]]
        %767 = vset.pattern.permute.xlu0 97
        %768 = vperm.xlu0 %767, %v741
        %v769 = vpop.permute.xlu0 %768
        %772 = vset.pattern.permute.xlu0 97
        %773 = vperm.xlu0 %772, %v744
        %v774 = vpop.permute.xlu0 %773
        %777 = vset.pattern.permute.xlu0 97
        %778 = vperm.xlu0 %777, %v747
        %v779 = vpop.permute.xlu0 %778
        %782 = vset.pattern.permute.xlu0 97
        %783 = vperm.xlu0 %782, %v750
        %v784 = vpop.permute.xlu0 %783
        %787 = vset.pattern.permute.xlu0 97
        %788 = vperm.xlu0 %787, %v753
        %v789 = vpop.permute.xlu0 %788
        %792 = vset.pattern.permute.xlu0 97
        %793 = vperm.xlu0 %792, %v756
        %v794 = vpop.permute.xlu0 %793
        %797 = vset.pattern.permute.xlu0 97
        %798 = vperm.xlu0 %797, %v759
        %v799 = vpop.permute.xlu0 %798
        %802 = vset.pattern.permute.xlu0 97
        %803 = vperm.xlu0 %802, %v762
        %v804 = vpop.permute.xlu0 %803
        %806 = vset.pattern.permute.xlu0 96
        %807 = vperm.xlu0 %806, %v741
        %v808 = vpop.permute.xlu0 %807
        %809 = vset.pattern.permute.xlu0 96
        %810 = vperm.xlu0 %809, %v744
        %v811 = vpop.permute.xlu0 %810
        %812 = vset.pattern.permute.xlu0 96
        %813 = vperm.xlu0 %812, %v747
        %v814 = vpop.permute.xlu0 %813
        %815 = vset.pattern.permute.xlu0 96
        %816 = vperm.xlu0 %815, %v750
        %v817 = vpop.permute.xlu0 %816
        %818 = vset.pattern.permute.xlu0 96
        %819 = vperm.xlu0 %818, %v753
        %v820 = vpop.permute.xlu0 %819
        %821 = vset.pattern.permute.xlu0 96
        %822 = vperm.xlu0 %821, %v756
        %v823 = vpop.permute.xlu0 %822
        %824 = vset.pattern.permute.xlu0 96
        %825 = vperm.xlu0 %824, %v759
        %v826 = vpop.permute.xlu0 %825
        %827 = vset.pattern.permute.xlu0 96
        %828 = vperm.xlu0 %827, %v762
        %v829 = vpop.permute.xlu0 %828
        %v830 = vlaneseq
        %v831 = vand.u32 %v830, 127
        %v832 = vperm.slane %v808, %v831
        %v833 = vadd.s32 %v831, 4294967288
        %v834 = vperm.slane %v811, %v833
        %vm835 = vcmask 130112
        %v836 = vsel %vm835, %v834, %v832
        %v837 = vadd.s32 %v831, 4294967280
        %v838 = vperm.slane %v814, %v837
        %vm839 = vcmask 195712
        %v840 = vsel %vm839, %v838, %v836
        %v841 = vadd.s32 %v831, 4294967272
        %v842 = vperm.slane %v817, %v841
        %vm843 = vcmask 261312
        %v844 = vsel %vm843, %v842, %v840
        %v845 = vadd.s32 %v831, 4294967264
        %v846 = vperm.slane %v820, %v845
        %vm847 = vcmask 326912
        %v848 = vsel %vm847, %v846, %v844
        %v849 = vadd.s32 %v831, 4294967256
        %v850 = vperm.slane %v823, %v849
        %vm851 = vcmask 392512
        %v852 = vsel %vm851, %v850, %v848
        %v853 = vadd.s32 %v831, 4294967248
        %v854 = vperm.slane %v826, %v853
        %vm855 = vcmask 458112
        %v856 = vsel %vm855, %v854, %v852
        %v857 = vadd.s32 %v831, 4294967240
        %v858 = vperm.slane %v829, %v857
        %vm859 = vcmask 523712
        %v860 = vsel %vm859, %v858, %v856
        %vm861 = vcmask 1042434
        %v862 = vsel %vm861, %v860, %v860
        %vm863 = vcmask 1043459
        %v864 = vsel %vm863, %v860, %v862
        %vm865 = vcmask 1044484
        %v866 = vsel %vm865, %v860, %v864
        %vm867 = vcmask 1045509
        %v868 = vsel %vm867, %v860, %v866
        %vm869 = vcmask 1046534
        %v870 = vsel %vm869, %v860, %v868
        %vm871 = vcmask 1047559
        %v872 = vsel %vm871, %v860, %v870
        %v874 = vadd.f32 %v769, %v872
        %v875 = vadd.f32 %v774, %v872
        %v876 = vadd.f32 %v779, %v872
        %v877 = vadd.f32 %v784, %v872
        %v878 = vadd.f32 %v789, %v872
        %v879 = vadd.f32 %v794, %v872
        %v880 = vadd.f32 %v799, %v872
        %v881 = vadd.f32 %v804, %v872
        %v882 = vstv %s764
        %v883 = vmul.f32 %v677, %v882
        %v884 = vmul.f32 %v678, %v882
        %v885 = vmul.f32 %v679, %v882
        %v886 = vmul.f32 %v680, %v882
        %v887 = vmul.f32 %v681, %v882
        %v888 = vmul.f32 %v682, %v882
        %v889 = vmul.f32 %v683, %v882
        %v890 = vmul.f32 %v684, %v882
        %v891 = vadd.f32 %v874, %v883
        %v892 = vadd.f32 %v875, %v884
        %v893 = vadd.f32 %v876, %v885
        %v894 = vadd.f32 %v877, %v886
        %v895 = vadd.f32 %v878, %v887
        %v896 = vadd.f32 %v879, %v888
        %v897 = vadd.f32 %v880, %v889
        %v898 = vadd.f32 %v881, %v890
        %v899 = vstv %s765
        %v900 = vmul.f32 %v686, %v899
        %v901 = vmul.f32 %v687, %v899
        %v902 = vmul.f32 %v688, %v899
        %v903 = vmul.f32 %v689, %v899
        %v904 = vmul.f32 %v690, %v899
        %v905 = vmul.f32 %v691, %v899
        %v906 = vmul.f32 %v692, %v899
        %v907 = vmul.f32 %v693, %v899
        %v908 = vadd.f32 %v891, %v900
        %v909 = vadd.f32 %v892, %v901
        %v910 = vadd.f32 %v893, %v902
        %v911 = vadd.f32 %v894, %v903
        %v912 = vadd.f32 %v895, %v904
        %v913 = vadd.f32 %v896, %v905
        %v914 = vadd.f32 %v897, %v906
        %v915 = vadd.f32 %v898, %v907
        %v916 = vmul.f32 %v908, 0.01
        %v917 = vmul.f32 %v909, 0.01
        %v918 = vmul.f32 %v910, 0.01
        %v919 = vmul.f32 %v911, 0.01
        %v920 = vmul.f32 %v912, 0.01
        %v921 = vmul.f32 %v913, 0.01
        %v922 = vmul.f32 %v914, 0.01
        %v923 = vmul.f32 %v915, 0.01
        %v924 = vmax.f32 %v908, %v916
        %v925 = vmax.f32 %v909, %v917
        %v926 = vmax.f32 %v910, %v918
        %v927 = vmax.f32 %v911, %v919
        %v928 = vmax.f32 %v912, %v920
        %v929 = vmax.f32 %v913, %v921
        %v930 = vmax.f32 %v914, %v922
        %v931 = vmax.f32 %v915, %v923
        %v932 = vadd.f32 %v924, %v669
        %v933 = vadd.f32 %v925, %v670
        %v934 = vadd.f32 %v926, %v671
        %v935 = vadd.f32 %v927, %v672
        %v936 = vadd.f32 %v928, %v673
        %v937 = vadd.f32 %v929, %v674
        %v938 = vadd.f32 %v930, %v675
        %v939 = vadd.f32 %v931, %v676
        %vm940 = vcmask 523264
        %v941 = vsel %vm940, %v932, -inf
        %942 = vmax.xlane.f32.xlu0 %v941
        %v943 = vpop.xlane.xlu0 %942
        %v944 = vsel %vm940, %v933, -inf
        %945 = vmax.xlane.f32.xlu0 %v944
        %v946 = vpop.xlane.xlu0 %945
        %v947 = vsel %vm940, %v934, -inf
        %948 = vmax.xlane.f32.xlu0 %v947
        %v949 = vpop.xlane.xlu0 %948
        %v950 = vsel %vm940, %v935, -inf
        %951 = vmax.xlane.f32.xlu0 %v950
        %v952 = vpop.xlane.xlu0 %951
        %v953 = vsel %vm940, %v936, -inf
        %954 = vmax.xlane.f32.xlu0 %v953
        %v955 = vpop.xlane.xlu0 %954
        %v956 = vsel %vm940, %v937, -inf
        %957 = vmax.xlane.f32.xlu0 %v956
        %v958 = vpop.xlane.xlu0 %957
        %v959 = vsel %vm940, %v938, -inf
        %960 = vmax.xlane.f32.xlu0 %v959
        %v961 = vpop.xlane.xlu0 %960
        %v962 = vsel %vm940, %v939, -inf
        %963 = vmax.xlane.f32.xlu0 %v962
        %v964 = vpop.xlane.xlu0 %963
        %v965 = vsub.f32 %v932, %v943
        %v966 = vsub.f32 %v933, %v946
        %v967 = vsub.f32 %v934, %v949
        %v968 = vsub.f32 %v935, %v952
        %v969 = vsub.f32 %v936, %v955
        %v970 = vsub.f32 %v937, %v958
        %v971 = vsub.f32 %v938, %v961
        %v972 = vsub.f32 %v939, %v964
        %v973 = vmul.f32 %v965, 1.442695
        %v974 = vpow.pop %v973
        %v975 = vmul.f32 %v966, 1.442695
        %v976 = vpow.pop %v975
        %v977 = vmul.f32 %v967, 1.442695
        %v978 = vpow.pop %v977
        %v979 = vmul.f32 %v968, 1.442695
        %v980 = vpow.pop %v979
        %v981 = vmul.f32 %v969, 1.442695
        %v982 = vpow.pop %v981
        %v983 = vmul.f32 %v970, 1.442695
        %v984 = vpow.pop %v983
        %v985 = vmul.f32 %v971, 1.442695
        %v986 = vpow.pop %v985
        %v987 = vmul.f32 %v972, 1.442695
        %v988 = vpow.pop %v987
        %v989 = vmul.f32 %v974, %v653
        %v990 = vmul.f32 %v976, %v654
        %v991 = vmul.f32 %v978, %v655
        %v992 = vmul.f32 %v980, %v656
        %v993 = vmul.f32 %v982, %v657
        %v994 = vmul.f32 %v984, %v658
        %v995 = vmul.f32 %v986, %v659
        %v996 = vmul.f32 %v988, %v660
        %v997 = vsel %vm940, %v989, 0.0
        %998 = vadd.xlane.f32.xlu0 %v997
        %v999 = vpop.xlane.xlu0 %998
        %v1000 = vsel %vm940, %v990, 0.0
        %1001 = vadd.xlane.f32.xlu0 %v1000
        %v1002 = vpop.xlane.xlu0 %1001
        %v1003 = vsel %vm940, %v991, 0.0
        %1004 = vadd.xlane.f32.xlu0 %v1003
        %v1005 = vpop.xlane.xlu0 %1004
        %v1006 = vsel %vm940, %v992, 0.0
        %1007 = vadd.xlane.f32.xlu0 %v1006
        %v1008 = vpop.xlane.xlu0 %1007
        %v1009 = vsel %vm940, %v993, 0.0
        %1010 = vadd.xlane.f32.xlu0 %v1009
        %v1011 = vpop.xlane.xlu0 %1010
        %v1012 = vsel %vm940, %v994, 0.0
        %1013 = vadd.xlane.f32.xlu0 %v1012
        %v1014 = vpop.xlane.xlu0 %1013
        %v1015 = vsel %vm940, %v995, 0.0
        %1016 = vadd.xlane.f32.xlu0 %v1015
        %v1017 = vpop.xlane.xlu0 %1016
        %v1018 = vsel %vm940, %v996, 0.0
        %1019 = vadd.xlane.f32.xlu0 %v1018
        %v1020 = vpop.xlane.xlu0 %1019
        %v1021 = vmax.f32 %v999, 1e-30
        %v1022 = vmax.f32 %v1002, 1e-30
        %v1023 = vmax.f32 %v1005, 1e-30
        %v1024 = vmax.f32 %v1008, 1e-30
        %v1025 = vmax.f32 %v1011, 1e-30
        %v1026 = vmax.f32 %v1014, 1e-30
        %v1027 = vmax.f32 %v1017, 1e-30
        %v1028 = vmax.f32 %v1020, 1e-30
        %v1029 = vrcp.pop %v1021
        %v1030 = vrcp.pop %v1022
        %v1031 = vrcp.pop %v1023
        %v1032 = vrcp.pop %v1024
        %v1033 = vrcp.pop %v1025
        %v1034 = vrcp.pop %v1026
        %v1035 = vrcp.pop %v1027
        %v1036 = vrcp.pop %v1028
        %v1037 = vmul.f32 %v989, %v1029
        %v1038 = vmul.f32 %v990, %v1030
        %v1039 = vmul.f32 %v991, %v1031
        %v1040 = vmul.f32 %v992, %v1032
        %v1041 = vmul.f32 %v993, %v1033
        %v1042 = vmul.f32 %v994, %v1034
        %v1043 = vmul.f32 %v995, %v1035
        %v1044 = vmul.f32 %v996, %v1036
        %v1045 = vmul.f32 %v1037, %v677
        %v1046 = vmul.f32 %v1038, %v678
        %v1047 = vmul.f32 %v1039, %v679
        %v1048 = vmul.f32 %v1040, %v680
        %v1049 = vmul.f32 %v1041, %v681
        %v1050 = vmul.f32 %v1042, %v682
        %v1051 = vmul.f32 %v1043, %v683
        %v1052 = vmul.f32 %v1044, %v684
        %v1053 = vsel %vm940, %v1045, 0.0
        %1054 = vadd.xlane.f32.xlu0 %v1053
        %v1055 = vpop.xlane.xlu0 %1054
        %v1056 = vsel %vm940, %v1046, 0.0
        %1057 = vadd.xlane.f32.xlu0 %v1056
        %v1058 = vpop.xlane.xlu0 %1057
        %v1059 = vsel %vm940, %v1047, 0.0
        %1060 = vadd.xlane.f32.xlu0 %v1059
        %v1061 = vpop.xlane.xlu0 %1060
        %v1062 = vsel %vm940, %v1048, 0.0
        %1063 = vadd.xlane.f32.xlu0 %v1062
        %v1064 = vpop.xlane.xlu0 %1063
        %v1065 = vsel %vm940, %v1049, 0.0
        %1066 = vadd.xlane.f32.xlu0 %v1065
        %v1067 = vpop.xlane.xlu0 %1066
        %v1068 = vsel %vm940, %v1050, 0.0
        %1069 = vadd.xlane.f32.xlu0 %v1068
        %v1070 = vpop.xlane.xlu0 %1069
        %v1071 = vsel %vm940, %v1051, 0.0
        %1072 = vadd.xlane.f32.xlu0 %v1071
        %v1073 = vpop.xlane.xlu0 %1072
        %v1074 = vsel %vm940, %v1052, 0.0
        %1075 = vadd.xlane.f32.xlu0 %v1074
        %v1076 = vpop.xlane.xlu0 %1075
        %v1077 = vmul.f32 %v1037, %v686
        %v1078 = vmul.f32 %v1038, %v687
        %v1079 = vmul.f32 %v1039, %v688
        %v1080 = vmul.f32 %v1040, %v689
        %v1081 = vmul.f32 %v1041, %v690
        %v1082 = vmul.f32 %v1042, %v691
        %v1083 = vmul.f32 %v1043, %v692
        %v1084 = vmul.f32 %v1044, %v693
        %v1085 = vsel %vm940, %v1077, 0.0
        %1086 = vadd.xlane.f32.xlu0 %v1085
        %v1087 = vpop.xlane.xlu0 %1086
        %v1088 = vsel %vm940, %v1078, 0.0
        %1089 = vadd.xlane.f32.xlu0 %v1088
        %v1090 = vpop.xlane.xlu0 %1089
        %v1091 = vsel %vm940, %v1079, 0.0
        %1092 = vadd.xlane.f32.xlu0 %v1091
        %v1093 = vpop.xlane.xlu0 %1092
        %v1094 = vsel %vm940, %v1080, 0.0
        %1095 = vadd.xlane.f32.xlu0 %v1094
        %v1096 = vpop.xlane.xlu0 %1095
        %v1097 = vsel %vm940, %v1081, 0.0
        %1098 = vadd.xlane.f32.xlu0 %v1097
        %v1099 = vpop.xlane.xlu0 %1098
        %v1100 = vsel %vm940, %v1082, 0.0
        %1101 = vadd.xlane.f32.xlu0 %v1100
        %v1102 = vpop.xlane.xlu0 %1101
        %v1103 = vsel %vm940, %v1083, 0.0
        %1104 = vadd.xlane.f32.xlu0 %v1103
        %v1105 = vpop.xlane.xlu0 %1104
        %v1106 = vsel %vm940, %v1084, 0.0
        %1107 = vadd.xlane.f32.xlu0 %v1106
        %v1108 = vpop.xlane.xlu0 %1107
        %v1109 = vld [vmem:[%s7] sm:$0x1]
        %v1110 = vperm.slane %v1109, 0
        %v1111 = vmul.f32 %v1055, %v1110
        %v1112 = vmul.f32 %v1058, %v1110
        %v1113 = vmul.f32 %v1061, %v1110
        %v1114 = vmul.f32 %v1064, %v1110
        %v1115 = vmul.f32 %v1067, %v1110
        %v1116 = vmul.f32 %v1070, %v1110
        %v1117 = vmul.f32 %v1073, %v1110
        %v1118 = vmul.f32 %v1076, %v1110
        %v1120 = vsel %vm940, %v1037, 0
        %v1123 = vsel %vm940, %v1038, 0
        %v1126 = vsel %vm940, %v1039, 0
        %v1129 = vsel %vm940, %v1040, 0
        %v1132 = vsel %vm940, %v1041, 0
        %v1135 = vsel %vm940, %v1042, 0
        %v1138 = vsel %vm940, %v1043, 0
        %v1141 = vsel %vm940, %v1044, 0
        %1143 = vmatpush.msra.mxu0 0.0
        %1144 = vmatpush.msra.mxu0 0.0
        %1145 = vmatpush.msra.mxu0 0.0
        %1146 = vmatpush.msra.mxu0 0.0
        %1147 = vmatpush.msra.mxu0 0.0
        %1148 = vmatpush.msra.mxu0 0.0
        %1149 = vmatpush.msra.mxu0 0.0
        %1150 = vmatpush.msra.mxu0 0.0
        %1151 = vmatpush.msra.mxu0 %v762
        %1152 = vmatpush.msra.mxu0 %v759
        %1153 = vmatpush.msra.mxu0 %v756
        %1154 = vmatpush.msra.mxu0 %v753
        %1155 = vmatpush.msra.mxu0 %v750
        %1156 = vmatpush.msra.mxu0 %v747
        %1157 = vmatpush.msra.mxu0 %v744
        %1158 = vmatpush.msra.mxu0 %v741
        %1159 = vmatmul.f32.gmra.mxu0 %v1120
        %v1160 = vpop.f32.mrf.mxu0
        %v1161 = vadd.f32 %v1111, %v1160
        %1162 = vmatmul.f32.gmra.mxu0 %v1123
        %v1163 = vpop.f32.mrf.mxu0
        %v1164 = vadd.f32 %v1112, %v1163
        %1165 = vmatmul.f32.gmra.mxu0 %v1126
        %v1166 = vpop.f32.mrf.mxu0
        %v1167 = vadd.f32 %v1113, %v1166
        %1168 = vmatmul.f32.gmra.mxu0 %v1129
        %v1169 = vpop.f32.mrf.mxu0
        %v1170 = vadd.f32 %v1114, %v1169
        %1171 = vmatmul.f32.gmra.mxu0 %v1132
        %v1172 = vpop.f32.mrf.mxu0
        %v1173 = vadd.f32 %v1115, %v1172
        %1174 = vmatmul.f32.gmra.mxu0 %v1135
        %v1175 = vpop.f32.mrf.mxu0
        %v1176 = vadd.f32 %v1116, %v1175
        %1177 = vmatmul.f32.gmra.mxu0 %v1138
        %v1178 = vpop.f32.mrf.mxu0
        %v1179 = vadd.f32 %v1117, %v1178
        %1180 = vmatmul.f32.gmra.mxu0 %v1141
        %v1181 = vpop.f32.mrf.mxu0
        %v1182 = vadd.f32 %v1118, %v1181
        %1183 = vdwg.mxu0
        %v1184 = vld [vmem:[%s7 + $0x1] sm:$0x1]
        %v1185 = vperm.slane %v1184, 0
        %v1186 = vmul.f32 %v1087, %v1185
        %v1187 = vmul.f32 %v1090, %v1185
        %v1188 = vmul.f32 %v1093, %v1185
        %v1189 = vmul.f32 %v1096, %v1185
        %v1190 = vmul.f32 %v1099, %v1185
        %v1191 = vmul.f32 %v1102, %v1185
        %v1192 = vmul.f32 %v1105, %v1185
        %v1193 = vmul.f32 %v1108, %v1185
        %v1194 = vadd.f32 %v1161, %v1186
        %v1195 = vadd.f32 %v1164, %v1187
        %v1196 = vadd.f32 %v1167, %v1188
        %v1197 = vadd.f32 %v1170, %v1189
        %v1198 = vadd.f32 %v1173, %v1190
        %v1199 = vadd.f32 %v1176, %v1191
        %v1200 = vadd.f32 %v1179, %v1192
        %v1201 = vadd.f32 %v1182, %v1193
        %1210 = vrot.lane.b32.xlu0 %v1194, 64
        %v1211 = vpop.permute.xlu0 %1210
        %1212 = vrot.lane.b32.xlu0 %v1195, 64
        %v1213 = vpop.permute.xlu0 %1212
        %1214 = vrot.lane.b32.xlu0 %v1196, 64
        %v1215 = vpop.permute.xlu0 %1214
        %1216 = vrot.lane.b32.xlu0 %v1197, 64
        %v1217 = vpop.permute.xlu0 %1216
        %1218 = vrot.lane.b32.xlu0 %v1198, 64
        %v1219 = vpop.permute.xlu0 %1218
        %1220 = vrot.lane.b32.xlu0 %v1199, 64
        %v1221 = vpop.permute.xlu0 %1220
        %1222 = vrot.lane.b32.xlu0 %v1200, 64
        %v1223 = vpop.permute.xlu0 %1222
        %1224 = vrot.lane.b32.xlu0 %v1201, 64
        %v1225 = vpop.permute.xlu0 %1224
        %v1234 = vadd.f32 %v741, %v1211
        %v1235 = vadd.f32 %v744, %v1213
        %v1236 = vadd.f32 %v747, %v1215
        %v1237 = vadd.f32 %v750, %v1217
        %v1238 = vadd.f32 %v753, %v1219
        %v1239 = vadd.f32 %v756, %v1221
        %v1240 = vadd.f32 %v759, %v1223
        %v1241 = vadd.f32 %v762, %v1225
        %s1242 = sld [smem:[#allocation3 + $0x2]]
        %s1243 = sld [smem:[#allocation3 + $0x3]]
        %1244 = vset.pattern.permute.xlu0 99
        %1245 = vperm.xlu0 %1244, %v741
        %v1246 = vpop.permute.xlu0 %1245
        %1248 = vset.pattern.permute.xlu0 99
        %1249 = vperm.xlu0 %1248, %v744
        %v1250 = vpop.permute.xlu0 %1249
        %1252 = vset.pattern.permute.xlu0 99
        %1253 = vperm.xlu0 %1252, %v747
        %v1254 = vpop.permute.xlu0 %1253
        %1256 = vset.pattern.permute.xlu0 99
        %1257 = vperm.xlu0 %1256, %v750
        %v1258 = vpop.permute.xlu0 %1257
        %1260 = vset.pattern.permute.xlu0 99
        %1261 = vperm.xlu0 %1260, %v753
        %v1262 = vpop.permute.xlu0 %1261
        %1264 = vset.pattern.permute.xlu0 99
        %1265 = vperm.xlu0 %1264, %v756
        %v1266 = vpop.permute.xlu0 %1265
        %1268 = vset.pattern.permute.xlu0 99
        %1269 = vperm.xlu0 %1268, %v759
        %v1270 = vpop.permute.xlu0 %1269
        %1272 = vset.pattern.permute.xlu0 99
        %1273 = vperm.xlu0 %1272, %v762
        %v1274 = vpop.permute.xlu0 %1273
        %1276 = vset.pattern.permute.xlu0 98
        %1277 = vperm.xlu0 %1276, %v741
        %v1278 = vpop.permute.xlu0 %1277
        %1279 = vset.pattern.permute.xlu0 98
        %1280 = vperm.xlu0 %1279, %v744
        %v1281 = vpop.permute.xlu0 %1280
        %1282 = vset.pattern.permute.xlu0 98
        %1283 = vperm.xlu0 %1282, %v747
        %v1284 = vpop.permute.xlu0 %1283
        %1285 = vset.pattern.permute.xlu0 98
        %1286 = vperm.xlu0 %1285, %v750
        %v1287 = vpop.permute.xlu0 %1286
        %1288 = vset.pattern.permute.xlu0 98
        %1289 = vperm.xlu0 %1288, %v753
        %v1290 = vpop.permute.xlu0 %1289
        %1291 = vset.pattern.permute.xlu0 98
        %1292 = vperm.xlu0 %1291, %v756
        %v1293 = vpop.permute.xlu0 %1292
        %1294 = vset.pattern.permute.xlu0 98
        %1295 = vperm.xlu0 %1294, %v759
        %v1296 = vpop.permute.xlu0 %1295
        %1297 = vset.pattern.permute.xlu0 98
        %1298 = vperm.xlu0 %1297, %v762
        %v1299 = vpop.permute.xlu0 %1298
        %v1300 = vperm.slane %v1278, %v831
        %v1301 = vperm.slane %v1281, %v833
        %v1302 = vsel %vm835, %v1301, %v1300
        %v1303 = vperm.slane %v1284, %v837
        %v1304 = vsel %vm839, %v1303, %v1302
        %v1305 = vperm.slane %v1287, %v841
        %v1306 = vsel %vm843, %v1305, %v1304
        %v1307 = vperm.slane %v1290, %v845
        %v1308 = vsel %vm847, %v1307, %v1306
        %v1309 = vperm.slane %v1293, %v849
        %v1310 = vsel %vm851, %v1309, %v1308
        %v1311 = vperm.slane %v1296, %v853
        %v1312 = vsel %vm855, %v1311, %v1310
        %v1313 = vperm.slane %v1299, %v857
        %v1314 = vsel %vm859, %v1313, %v1312
        %v1315 = vsel %vm861, %v1314, %v1314
        %v1316 = vsel %vm863, %v1314, %v1315
        %v1317 = vsel %vm865, %v1314, %v1316
        %v1318 = vsel %vm867, %v1314, %v1317
        %v1319 = vsel %vm869, %v1314, %v1318
        %v1320 = vsel %vm871, %v1314, %v1319
        %v1322 = vadd.f32 %v1246, %v1320
        %v1323 = vadd.f32 %v1250, %v1320
        %v1324 = vadd.f32 %v1254, %v1320
        %v1325 = vadd.f32 %v1258, %v1320
        %v1326 = vadd.f32 %v1262, %v1320
        %v1327 = vadd.f32 %v1266, %v1320
        %v1328 = vadd.f32 %v1270, %v1320
        %v1329 = vadd.f32 %v1274, %v1320
        %v1330 = vstv %s1242
        %v1331 = vmul.f32 %v677, %v1330
        %v1332 = vmul.f32 %v678, %v1330
        %v1333 = vmul.f32 %v679, %v1330
        %v1334 = vmul.f32 %v680, %v1330
        %v1335 = vmul.f32 %v681, %v1330
        %v1336 = vmul.f32 %v682, %v1330
        %v1337 = vmul.f32 %v683, %v1330
        %v1338 = vmul.f32 %v684, %v1330
        %v1339 = vadd.f32 %v1322, %v1331
        %v1340 = vadd.f32 %v1323, %v1332
        %v1341 = vadd.f32 %v1324, %v1333
        %v1342 = vadd.f32 %v1325, %v1334
        %v1343 = vadd.f32 %v1326, %v1335
        %v1344 = vadd.f32 %v1327, %v1336
        %v1345 = vadd.f32 %v1328, %v1337
        %v1346 = vadd.f32 %v1329, %v1338
        %v1347 = vstv %s1243
        %v1348 = vmul.f32 %v686, %v1347
        %v1349 = vmul.f32 %v687, %v1347
        %v1350 = vmul.f32 %v688, %v1347
        %v1351 = vmul.f32 %v689, %v1347
        %v1352 = vmul.f32 %v690, %v1347
        %v1353 = vmul.f32 %v691, %v1347
        %v1354 = vmul.f32 %v692, %v1347
        %v1355 = vmul.f32 %v693, %v1347
        %v1356 = vadd.f32 %v1339, %v1348
        %v1357 = vadd.f32 %v1340, %v1349
        %v1358 = vadd.f32 %v1341, %v1350
        %v1359 = vadd.f32 %v1342, %v1351
        %v1360 = vadd.f32 %v1343, %v1352
        %v1361 = vadd.f32 %v1344, %v1353
        %v1362 = vadd.f32 %v1345, %v1354
        %v1363 = vadd.f32 %v1346, %v1355
        %v1364 = vmul.f32 %v1356, 0.01
        %v1365 = vmul.f32 %v1357, 0.01
        %v1366 = vmul.f32 %v1358, 0.01
        %v1367 = vmul.f32 %v1359, 0.01
        %v1368 = vmul.f32 %v1360, 0.01
        %v1369 = vmul.f32 %v1361, 0.01
        %v1370 = vmul.f32 %v1362, 0.01
        %v1371 = vmul.f32 %v1363, 0.01
        %v1372 = vmax.f32 %v1356, %v1364
        %v1373 = vmax.f32 %v1357, %v1365
        %v1374 = vmax.f32 %v1358, %v1366
        %v1375 = vmax.f32 %v1359, %v1367
        %v1376 = vmax.f32 %v1360, %v1368
        %v1377 = vmax.f32 %v1361, %v1369
        %v1378 = vmax.f32 %v1362, %v1370
        %v1379 = vmax.f32 %v1363, %v1371
        %v1380 = vadd.f32 %v1372, %v669
        %v1381 = vadd.f32 %v1373, %v670
        %v1382 = vadd.f32 %v1374, %v671
        %v1383 = vadd.f32 %v1375, %v672
        %v1384 = vadd.f32 %v1376, %v673
        %v1385 = vadd.f32 %v1377, %v674
        %v1386 = vadd.f32 %v1378, %v675
        %v1387 = vadd.f32 %v1379, %v676
        %v1388 = vsel %vm940, %v1380, -inf
        %1389 = vmax.xlane.f32.xlu0 %v1388
        %v1390 = vpop.xlane.xlu0 %1389
        %v1391 = vsel %vm940, %v1381, -inf
        %1392 = vmax.xlane.f32.xlu0 %v1391
        %v1393 = vpop.xlane.xlu0 %1392
        %v1394 = vsel %vm940, %v1382, -inf
        %1395 = vmax.xlane.f32.xlu0 %v1394
        %v1396 = vpop.xlane.xlu0 %1395
        %v1397 = vsel %vm940, %v1383, -inf
        %1398 = vmax.xlane.f32.xlu0 %v1397
        %v1399 = vpop.xlane.xlu0 %1398
        %v1400 = vsel %vm940, %v1384, -inf
        %1401 = vmax.xlane.f32.xlu0 %v1400
        %v1402 = vpop.xlane.xlu0 %1401
        %v1403 = vsel %vm940, %v1385, -inf
        %1404 = vmax.xlane.f32.xlu0 %v1403
        %v1405 = vpop.xlane.xlu0 %1404
        %v1406 = vsel %vm940, %v1386, -inf
        %1407 = vmax.xlane.f32.xlu0 %v1406
        %v1408 = vpop.xlane.xlu0 %1407
        %v1409 = vsel %vm940, %v1387, -inf
        %1410 = vmax.xlane.f32.xlu0 %v1409
        %v1411 = vpop.xlane.xlu0 %1410
        %v1412 = vsub.f32 %v1380, %v1390
        %v1413 = vsub.f32 %v1381, %v1393
        %v1414 = vsub.f32 %v1382, %v1396
        %v1415 = vsub.f32 %v1383, %v1399
        %v1416 = vsub.f32 %v1384, %v1402
        %v1417 = vsub.f32 %v1385, %v1405
        %v1418 = vsub.f32 %v1386, %v1408
        %v1419 = vsub.f32 %v1387, %v1411
        %v1420 = vmul.f32 %v1412, 1.442695
        %v1421 = vpow.pop %v1420
        %v1422 = vmul.f32 %v1413, 1.442695
        %v1423 = vpow.pop %v1422
        %v1424 = vmul.f32 %v1414, 1.442695
        %v1425 = vpow.pop %v1424
        %v1426 = vmul.f32 %v1415, 1.442695
        %v1427 = vpow.pop %v1426
        %v1428 = vmul.f32 %v1416, 1.442695
        %v1429 = vpow.pop %v1428
        %v1430 = vmul.f32 %v1417, 1.442695
        %v1431 = vpow.pop %v1430
        %v1432 = vmul.f32 %v1418, 1.442695
        %v1433 = vpow.pop %v1432
        %v1434 = vmul.f32 %v1419, 1.442695
        %v1435 = vpow.pop %v1434
        %v1436 = vmul.f32 %v1421, %v653
        %v1437 = vmul.f32 %v1423, %v654
        %v1438 = vmul.f32 %v1425, %v655
        %v1439 = vmul.f32 %v1427, %v656
        %v1440 = vmul.f32 %v1429, %v657
        %v1441 = vmul.f32 %v1431, %v658
        %v1442 = vmul.f32 %v1433, %v659
        %v1443 = vmul.f32 %v1435, %v660
        %v1444 = vsel %vm940, %v1436, 0.0
        %1445 = vadd.xlane.f32.xlu0 %v1444
        %v1446 = vpop.xlane.xlu0 %1445
        %v1447 = vsel %vm940, %v1437, 0.0
        %1448 = vadd.xlane.f32.xlu0 %v1447
        %v1449 = vpop.xlane.xlu0 %1448
        %v1450 = vsel %vm940, %v1438, 0.0
        %1451 = vadd.xlane.f32.xlu0 %v1450
        %v1452 = vpop.xlane.xlu0 %1451
        %v1453 = vsel %vm940, %v1439, 0.0
        %1454 = vadd.xlane.f32.xlu0 %v1453
        %v1455 = vpop.xlane.xlu0 %1454
        %v1456 = vsel %vm940, %v1440, 0.0
        %1457 = vadd.xlane.f32.xlu0 %v1456
        %v1458 = vpop.xlane.xlu0 %1457
        %v1459 = vsel %vm940, %v1441, 0.0
        %1460 = vadd.xlane.f32.xlu0 %v1459
        %v1461 = vpop.xlane.xlu0 %1460
        %v1462 = vsel %vm940, %v1442, 0.0
        %1463 = vadd.xlane.f32.xlu0 %v1462
        %v1464 = vpop.xlane.xlu0 %1463
        %v1465 = vsel %vm940, %v1443, 0.0
        %1466 = vadd.xlane.f32.xlu0 %v1465
        %v1467 = vpop.xlane.xlu0 %1466
        %v1468 = vmax.f32 %v1446, 1e-30
        %v1469 = vmax.f32 %v1449, 1e-30
        %v1470 = vmax.f32 %v1452, 1e-30
        %v1471 = vmax.f32 %v1455, 1e-30
        %v1472 = vmax.f32 %v1458, 1e-30
        %v1473 = vmax.f32 %v1461, 1e-30
        %v1474 = vmax.f32 %v1464, 1e-30
        %v1475 = vmax.f32 %v1467, 1e-30
        %v1476 = vrcp.pop %v1468
        %v1477 = vrcp.pop %v1469
        %v1478 = vrcp.pop %v1470
        %v1479 = vrcp.pop %v1471
        %v1480 = vrcp.pop %v1472
        %v1481 = vrcp.pop %v1473
        %v1482 = vrcp.pop %v1474
        %v1483 = vrcp.pop %v1475
        %v1484 = vmul.f32 %v1436, %v1476
        %v1485 = vmul.f32 %v1437, %v1477
        %v1486 = vmul.f32 %v1438, %v1478
        %v1487 = vmul.f32 %v1439, %v1479
        %v1488 = vmul.f32 %v1440, %v1480
        %v1489 = vmul.f32 %v1441, %v1481
        %v1490 = vmul.f32 %v1442, %v1482
        %v1491 = vmul.f32 %v1443, %v1483
        %v1492 = vmul.f32 %v1484, %v677
        %v1493 = vmul.f32 %v1485, %v678
        %v1494 = vmul.f32 %v1486, %v679
        %v1495 = vmul.f32 %v1487, %v680
        %v1496 = vmul.f32 %v1488, %v681
        %v1497 = vmul.f32 %v1489, %v682
        %v1498 = vmul.f32 %v1490, %v683
        %v1499 = vmul.f32 %v1491, %v684
        %v1500 = vsel %vm940, %v1492, 0.0
        %1501 = vadd.xlane.f32.xlu0 %v1500
        %v1502 = vpop.xlane.xlu0 %1501
        %v1503 = vsel %vm940, %v1493, 0.0
        %1504 = vadd.xlane.f32.xlu0 %v1503
        %v1505 = vpop.xlane.xlu0 %1504
        %v1506 = vsel %vm940, %v1494, 0.0
        %1507 = vadd.xlane.f32.xlu0 %v1506
        %v1508 = vpop.xlane.xlu0 %1507
        %v1509 = vsel %vm940, %v1495, 0.0
        %1510 = vadd.xlane.f32.xlu0 %v1509
        %v1511 = vpop.xlane.xlu0 %1510
        %v1512 = vsel %vm940, %v1496, 0.0
        %1513 = vadd.xlane.f32.xlu0 %v1512
        %v1514 = vpop.xlane.xlu0 %1513
        %v1515 = vsel %vm940, %v1497, 0.0
        %1516 = vadd.xlane.f32.xlu0 %v1515
        %v1517 = vpop.xlane.xlu0 %1516
        %v1518 = vsel %vm940, %v1498, 0.0
        %1519 = vadd.xlane.f32.xlu0 %v1518
        %v1520 = vpop.xlane.xlu0 %1519
        %v1521 = vsel %vm940, %v1499, 0.0
        %1522 = vadd.xlane.f32.xlu0 %v1521
        %v1523 = vpop.xlane.xlu0 %1522
        %v1524 = vmul.f32 %v1484, %v686
        %v1525 = vmul.f32 %v1485, %v687
        %v1526 = vmul.f32 %v1486, %v688
        %v1527 = vmul.f32 %v1487, %v689
        %v1528 = vmul.f32 %v1488, %v690
        %v1529 = vmul.f32 %v1489, %v691
        %v1530 = vmul.f32 %v1490, %v692
        %v1531 = vmul.f32 %v1491, %v693
        %v1532 = vsel %vm940, %v1524, 0.0
        %1533 = vadd.xlane.f32.xlu0 %v1532
        %v1534 = vpop.xlane.xlu0 %1533
        %v1535 = vsel %vm940, %v1525, 0.0
        %1536 = vadd.xlane.f32.xlu0 %v1535
        %v1537 = vpop.xlane.xlu0 %1536
        %v1538 = vsel %vm940, %v1526, 0.0
        %1539 = vadd.xlane.f32.xlu0 %v1538
        %v1540 = vpop.xlane.xlu0 %1539
        %v1541 = vsel %vm940, %v1527, 0.0
        %1542 = vadd.xlane.f32.xlu0 %v1541
        %v1543 = vpop.xlane.xlu0 %1542
        %v1544 = vsel %vm940, %v1528, 0.0
        %1545 = vadd.xlane.f32.xlu0 %v1544
        %v1546 = vpop.xlane.xlu0 %1545
        %v1547 = vsel %vm940, %v1529, 0.0
        %1548 = vadd.xlane.f32.xlu0 %v1547
        %v1549 = vpop.xlane.xlu0 %1548
        %v1550 = vsel %vm940, %v1530, 0.0
        %1551 = vadd.xlane.f32.xlu0 %v1550
        %v1552 = vpop.xlane.xlu0 %1551
        %v1553 = vsel %vm940, %v1531, 0.0
        %1554 = vadd.xlane.f32.xlu0 %v1553
        %v1555 = vpop.xlane.xlu0 %1554
        %s1556 = scalar_lea.vmem %s7, 2
        %v1557 = vld [vmem:[%s1556] sm:$0x1]
        %v1558 = vperm.slane %v1557, 0
        %v1559 = vmul.f32 %v1502, %v1558
        %v1560 = vmul.f32 %v1505, %v1558
        %v1561 = vmul.f32 %v1508, %v1558
        %v1562 = vmul.f32 %v1511, %v1558
        %v1563 = vmul.f32 %v1514, %v1558
        %v1564 = vmul.f32 %v1517, %v1558
        %v1565 = vmul.f32 %v1520, %v1558
        %v1566 = vmul.f32 %v1523, %v1558
        %1567 = vrot.lane.b32.xlu0 %v741, 96
        %v1568 = vpop.permute.xlu0 %1567
        %1569 = vrot.lane.b32.xlu0 %v744, 96
        %v1570 = vpop.permute.xlu0 %1569
        %1571 = vrot.lane.b32.xlu0 %v747, 96
        %v1572 = vpop.permute.xlu0 %1571
        %1573 = vrot.lane.b32.xlu0 %v750, 96
        %v1574 = vpop.permute.xlu0 %1573
        %1575 = vrot.lane.b32.xlu0 %v753, 96
        %v1576 = vpop.permute.xlu0 %1575
        %1577 = vrot.lane.b32.xlu0 %v756, 96
        %v1578 = vpop.permute.xlu0 %1577
        %1579 = vrot.lane.b32.xlu0 %v759, 96
        %v1580 = vpop.permute.xlu0 %1579
        %1581 = vrot.lane.b32.xlu0 %v762, 96
        %v1582 = vpop.permute.xlu0 %1581
        %v1592 = vsel %vm940, %v1484, 0
        %v1595 = vsel %vm940, %v1485, 0
        %v1598 = vsel %vm940, %v1486, 0
        %v1601 = vsel %vm940, %v1487, 0
        %v1604 = vsel %vm940, %v1488, 0
        %v1607 = vsel %vm940, %v1489, 0
        %v1610 = vsel %vm940, %v1490, 0
        %v1613 = vsel %vm940, %v1491, 0
        %1615 = vmatpush.msra.mxu0 0.0
        %1616 = vmatpush.msra.mxu0 0.0
        %1617 = vmatpush.msra.mxu0 0.0
        %1618 = vmatpush.msra.mxu0 0.0
        %1619 = vmatpush.msra.mxu0 0.0
        %1620 = vmatpush.msra.mxu0 0.0
        %1621 = vmatpush.msra.mxu0 0.0
        %1622 = vmatpush.msra.mxu0 0.0
        %1623 = vmatpush.msra.mxu0 %v1582
        %1624 = vmatpush.msra.mxu0 %v1580
        %1625 = vmatpush.msra.mxu0 %v1578
        %1626 = vmatpush.msra.mxu0 %v1576
        %1627 = vmatpush.msra.mxu0 %v1574
        %1628 = vmatpush.msra.mxu0 %v1572
        %1629 = vmatpush.msra.mxu0 %v1570
        %1630 = vmatpush.msra.mxu0 %v1568
        %1631 = vmatmul.f32.gmra.mxu0 %v1592
        %v1632 = vpop.f32.mrf.mxu0
        %v1633 = vadd.f32 %v1559, %v1632
        %1634 = vmatmul.f32.gmra.mxu0 %v1595
        %v1635 = vpop.f32.mrf.mxu0
        %v1636 = vadd.f32 %v1560, %v1635
        %1637 = vmatmul.f32.gmra.mxu0 %v1598
        %v1638 = vpop.f32.mrf.mxu0
        %v1639 = vadd.f32 %v1561, %v1638
        %1640 = vmatmul.f32.gmra.mxu0 %v1601
        %v1641 = vpop.f32.mrf.mxu0
        %v1642 = vadd.f32 %v1562, %v1641
        %1643 = vmatmul.f32.gmra.mxu0 %v1604
        %v1644 = vpop.f32.mrf.mxu0
        %v1645 = vadd.f32 %v1563, %v1644
        %1646 = vmatmul.f32.gmra.mxu0 %v1607
        %v1647 = vpop.f32.mrf.mxu0
        %v1648 = vadd.f32 %v1564, %v1647
        %1649 = vmatmul.f32.gmra.mxu0 %v1610
        %v1650 = vpop.f32.mrf.mxu0
        %v1651 = vadd.f32 %v1565, %v1650
        %1652 = vmatmul.f32.gmra.mxu0 %v1613
        %v1653 = vpop.f32.mrf.mxu0
        %v1654 = vadd.f32 %v1566, %v1653
        %1655 = vdwg.mxu0
        %v1656 = vld [vmem:[%s1556 + $0x1] sm:$0x1]
        %v1657 = vperm.slane %v1656, 0
        %v1658 = vmul.f32 %v1534, %v1657
        %v1659 = vmul.f32 %v1537, %v1657
        %v1660 = vmul.f32 %v1540, %v1657
        %v1661 = vmul.f32 %v1543, %v1657
        %v1662 = vmul.f32 %v1546, %v1657
        %v1663 = vmul.f32 %v1549, %v1657
        %v1664 = vmul.f32 %v1552, %v1657
        %v1665 = vmul.f32 %v1555, %v1657
        %v1666 = vadd.f32 %v1633, %v1658
        %v1667 = vadd.f32 %v1636, %v1659
        %v1668 = vadd.f32 %v1639, %v1660
        %v1669 = vadd.f32 %v1642, %v1661
        %v1670 = vadd.f32 %v1645, %v1662
        %v1671 = vadd.f32 %v1648, %v1663
        %v1672 = vadd.f32 %v1651, %v1664
        %v1673 = vadd.f32 %v1654, %v1665
        %1682 = vrot.lane.b32.xlu0 %v1666, 64
        %v1683 = vpop.permute.xlu0 %1682
        %1684 = vrot.lane.b32.xlu0 %v1667, 64
        %v1685 = vpop.permute.xlu0 %1684
        %1686 = vrot.lane.b32.xlu0 %v1668, 64
        %v1687 = vpop.permute.xlu0 %1686
        %1688 = vrot.lane.b32.xlu0 %v1669, 64
        %v1689 = vpop.permute.xlu0 %1688
        %1690 = vrot.lane.b32.xlu0 %v1670, 64
        %v1691 = vpop.permute.xlu0 %1690
        %1692 = vrot.lane.b32.xlu0 %v1671, 64
        %v1693 = vpop.permute.xlu0 %1692
        %1694 = vrot.lane.b32.xlu0 %v1672, 64
        %v1695 = vpop.permute.xlu0 %1694
        %1696 = vrot.lane.b32.xlu0 %v1673, 64
        %v1697 = vpop.permute.xlu0 %1696
        %v1706 = vadd.f32 %v1234, %v1683
        %v1707 = vadd.f32 %v1235, %v1685
        %v1708 = vadd.f32 %v1236, %v1687
        %v1709 = vadd.f32 %v1237, %v1689
        %v1710 = vadd.f32 %v1238, %v1691
        %v1711 = vadd.f32 %v1239, %v1693
        %v1712 = vadd.f32 %v1240, %v1695
        %v1713 = vadd.f32 %v1241, %v1697
        %v1714 = vmul.f32 %v1706, 0.5
        %v1715 = vmul.f32 %v1707, 0.5
        %v1716 = vmul.f32 %v1708, 0.5
        %v1717 = vmul.f32 %v1709, 0.5
        %v1718 = vmul.f32 %v1710, 0.5
        %v1719 = vmul.f32 %v1711, 0.5
        %v1720 = vmul.f32 %v1712, 0.5
        %v1721 = vmul.f32 %v1713, 0.5
        %s1722 = scalar_lea.vmem %s6, 32
        %v1723 = vld [vmem:[%s1722] sm:$0xff]
        %v1724 = vld [vmem:[%s1722 + $0x8] sm:$0xff]
        %v1725 = vld [vmem:[%s1722 + $0x10] sm:$0xff]
        %v1726 = vld [vmem:[%s1722 + $0x18] sm:$0xff]
        %1735 = vrot.lane.b32.xlu0 %v1714, 64
        %v1736 = vpop.permute.xlu0 %1735
        %1737 = vrot.lane.b32.xlu0 %v1715, 64
        %v1738 = vpop.permute.xlu0 %1737
        %1739 = vrot.lane.b32.xlu0 %v1716, 64
        %v1740 = vpop.permute.xlu0 %1739
        %1741 = vrot.lane.b32.xlu0 %v1717, 64
        %v1742 = vpop.permute.xlu0 %1741
        %1743 = vrot.lane.b32.xlu0 %v1718, 64
        %v1744 = vpop.permute.xlu0 %1743
        %1745 = vrot.lane.b32.xlu0 %v1719, 64
        %v1746 = vpop.permute.xlu0 %1745
        %1747 = vrot.lane.b32.xlu0 %v1720, 64
        %v1748 = vpop.permute.xlu0 %1747
        %1749 = vrot.lane.b32.xlu0 %v1721, 64
        %v1750 = vpop.permute.xlu0 %1749
        %v1751 = vsel %vm698, %v1736, 0
        %v1753 = vsel %vm698, %v1738, 0
        %v1755 = vsel %vm698, %v1740, 0
        %v1757 = vsel %vm698, %v1742, 0
        %v1759 = vsel %vm698, %v1744, 0
        %v1761 = vsel %vm698, %v1746, 0
        %v1763 = vsel %vm698, %v1748, 0
        %v1765 = vsel %vm698, %v1750, 0
        %1767 = vmatpush.msra.mxu0 0.0
        %1768 = vmatpush.msra.mxu0 0.0
        %1769 = vmatpush.msra.mxu0 0.0
        %1770 = vmatpush.msra.mxu0 0.0
        %1771 = vmatpush.msra.mxu0 0.0
        %1772 = vmatpush.msra.mxu0 0.0
        %1773 = vmatpush.msra.mxu0 0.0
        %1774 = vmatpush.msra.mxu0 0.0
        %1775 = vmatpush.msra.mxu0 0.0
        %1776 = vmatpush.msra.mxu0 0.0
        %1777 = vmatpush.msra.mxu0 0.0
        %1778 = vmatpush.msra.mxu0 0.0
        %1779 = vmatpush.msra.mxu0 %v1726
        %1780 = vmatpush.msra.mxu0 %v1725
        %1781 = vmatpush.msra.mxu0 %v1724
        %1782 = vmatpush.msra.mxu0 %v1723
        %1783 = vmatmul.f32.gmra.mxu0 %v1751
        %v1784 = vpop.f32.mrf.mxu0
        %v1785 = vadd.f32 0.0, %v1784
        %1786 = vmatmul.f32.gmra.mxu0 %v1753
        %v1787 = vpop.f32.mrf.mxu0
        %v1788 = vadd.f32 0.0, %v1787
        %1789 = vmatmul.f32.gmra.mxu0 %v1755
        %v1790 = vpop.f32.mrf.mxu0
        %v1791 = vadd.f32 0.0, %v1790
        %1792 = vmatmul.f32.gmra.mxu0 %v1757
        %v1793 = vpop.f32.mrf.mxu0
        %v1794 = vadd.f32 0.0, %v1793
        %1795 = vmatmul.f32.gmra.mxu0 %v1759
        %v1796 = vpop.f32.mrf.mxu0
        %v1797 = vadd.f32 0.0, %v1796
        %1798 = vmatmul.f32.gmra.mxu0 %v1761
        %v1799 = vpop.f32.mrf.mxu0
        %v1800 = vadd.f32 0.0, %v1799
        %1801 = vmatmul.f32.gmra.mxu0 %v1763
        %v1802 = vpop.f32.mrf.mxu0
        %v1803 = vadd.f32 0.0, %v1802
        %1804 = vmatmul.f32.gmra.mxu0 %v1765
        %v1805 = vpop.f32.mrf.mxu0
        %v1806 = vadd.f32 0.0, %v1805
        %1807 = vdwg.mxu0
        %s1808 = sld [smem:[#allocation3 + $0x4]]
        %s1809 = sld [smem:[#allocation3 + $0x5]]
        %1811 = vset.pattern.permute.xlu0 97
        %1812 = vperm.xlu0 %1811, %v1785
        %v1813 = vpop.permute.xlu0 %1812
        %1816 = vset.pattern.permute.xlu0 97
        %1817 = vperm.xlu0 %1816, %v1788
        %v1818 = vpop.permute.xlu0 %1817
        %1821 = vset.pattern.permute.xlu0 97
        %1822 = vperm.xlu0 %1821, %v1791
        %v1823 = vpop.permute.xlu0 %1822
        %1826 = vset.pattern.permute.xlu0 97
        %1827 = vperm.xlu0 %1826, %v1794
        %v1828 = vpop.permute.xlu0 %1827
        %1831 = vset.pattern.permute.xlu0 97
        %1832 = vperm.xlu0 %1831, %v1797
        %v1833 = vpop.permute.xlu0 %1832
        %1836 = vset.pattern.permute.xlu0 97
        %1837 = vperm.xlu0 %1836, %v1800
        %v1838 = vpop.permute.xlu0 %1837
        %1841 = vset.pattern.permute.xlu0 97
        %1842 = vperm.xlu0 %1841, %v1803
        %v1843 = vpop.permute.xlu0 %1842
        %1846 = vset.pattern.permute.xlu0 97
        %1847 = vperm.xlu0 %1846, %v1806
        %v1848 = vpop.permute.xlu0 %1847
        %1850 = vset.pattern.permute.xlu0 96
        %1851 = vperm.xlu0 %1850, %v1785
        %v1852 = vpop.permute.xlu0 %1851
        %1853 = vset.pattern.permute.xlu0 96
        %1854 = vperm.xlu0 %1853, %v1788
        %v1855 = vpop.permute.xlu0 %1854
        %1856 = vset.pattern.permute.xlu0 96
        %1857 = vperm.xlu0 %1856, %v1791
        %v1858 = vpop.permute.xlu0 %1857
        %1859 = vset.pattern.permute.xlu0 96
        %1860 = vperm.xlu0 %1859, %v1794
        %v1861 = vpop.permute.xlu0 %1860
        %1862 = vset.pattern.permute.xlu0 96
        %1863 = vperm.xlu0 %1862, %v1797
        %v1864 = vpop.permute.xlu0 %1863
        %1865 = vset.pattern.permute.xlu0 96
        %1866 = vperm.xlu0 %1865, %v1800
        %v1867 = vpop.permute.xlu0 %1866
        %1868 = vset.pattern.permute.xlu0 96
        %1869 = vperm.xlu0 %1868, %v1803
        %v1870 = vpop.permute.xlu0 %1869
        %1871 = vset.pattern.permute.xlu0 96
        %1872 = vperm.xlu0 %1871, %v1806
        %v1873 = vpop.permute.xlu0 %1872
        %v1874 = vperm.slane %v1852, %v831
        %v1875 = vperm.slane %v1855, %v833
        %v1876 = vsel %vm835, %v1875, %v1874
        %v1877 = vperm.slane %v1858, %v837
        %v1878 = vsel %vm839, %v1877, %v1876
        %v1879 = vperm.slane %v1861, %v841
        %v1880 = vsel %vm843, %v1879, %v1878
        %v1881 = vperm.slane %v1864, %v845
        %v1882 = vsel %vm847, %v1881, %v1880
        %v1883 = vperm.slane %v1867, %v849
        %v1884 = vsel %vm851, %v1883, %v1882
        %v1885 = vperm.slane %v1870, %v853
        %v1886 = vsel %vm855, %v1885, %v1884
        %v1887 = vperm.slane %v1873, %v857
        %v1888 = vsel %vm859, %v1887, %v1886
        %v1889 = vsel %vm861, %v1888, %v1888
        %v1890 = vsel %vm863, %v1888, %v1889
        %v1891 = vsel %vm865, %v1888, %v1890
        %v1892 = vsel %vm867, %v1888, %v1891
        %v1893 = vsel %vm869, %v1888, %v1892
        %v1894 = vsel %vm871, %v1888, %v1893
        %v1896 = vadd.f32 %v1813, %v1894
        %v1897 = vadd.f32 %v1818, %v1894
        %v1898 = vadd.f32 %v1823, %v1894
        %v1899 = vadd.f32 %v1828, %v1894
        %v1900 = vadd.f32 %v1833, %v1894
        %v1901 = vadd.f32 %v1838, %v1894
        %v1902 = vadd.f32 %v1843, %v1894
        %v1903 = vadd.f32 %v1848, %v1894
        %v1904 = vstv %s1808
        %v1905 = vmul.f32 %v677, %v1904
        %v1906 = vmul.f32 %v678, %v1904
        %v1907 = vmul.f32 %v679, %v1904
        %v1908 = vmul.f32 %v680, %v1904
        %v1909 = vmul.f32 %v681, %v1904
        %v1910 = vmul.f32 %v682, %v1904
        %v1911 = vmul.f32 %v683, %v1904
        %v1912 = vmul.f32 %v684, %v1904
        %v1913 = vadd.f32 %v1896, %v1905
        %v1914 = vadd.f32 %v1897, %v1906
        %v1915 = vadd.f32 %v1898, %v1907
        %v1916 = vadd.f32 %v1899, %v1908
        %v1917 = vadd.f32 %v1900, %v1909
        %v1918 = vadd.f32 %v1901, %v1910
        %v1919 = vadd.f32 %v1902, %v1911
        %v1920 = vadd.f32 %v1903, %v1912
        %v1921 = vstv %s1809
        %v1922 = vmul.f32 %v686, %v1921
        %v1923 = vmul.f32 %v687, %v1921
        %v1924 = vmul.f32 %v688, %v1921
        %v1925 = vmul.f32 %v689, %v1921
        %v1926 = vmul.f32 %v690, %v1921
        %v1927 = vmul.f32 %v691, %v1921
        %v1928 = vmul.f32 %v692, %v1921
        %v1929 = vmul.f32 %v693, %v1921
        %v1930 = vadd.f32 %v1913, %v1922
        %v1931 = vadd.f32 %v1914, %v1923
        %v1932 = vadd.f32 %v1915, %v1924
        %v1933 = vadd.f32 %v1916, %v1925
        %v1934 = vadd.f32 %v1917, %v1926
        %v1935 = vadd.f32 %v1918, %v1927
        %v1936 = vadd.f32 %v1919, %v1928
        %v1937 = vadd.f32 %v1920, %v1929
        %v1938 = vmul.f32 %v1930, 0.01
        %v1939 = vmul.f32 %v1931, 0.01
        %v1940 = vmul.f32 %v1932, 0.01
        %v1941 = vmul.f32 %v1933, 0.01
        %v1942 = vmul.f32 %v1934, 0.01
        %v1943 = vmul.f32 %v1935, 0.01
        %v1944 = vmul.f32 %v1936, 0.01
        %v1945 = vmul.f32 %v1937, 0.01
        %v1946 = vmax.f32 %v1930, %v1938
        %v1947 = vmax.f32 %v1931, %v1939
        %v1948 = vmax.f32 %v1932, %v1940
        %v1949 = vmax.f32 %v1933, %v1941
        %v1950 = vmax.f32 %v1934, %v1942
        %v1951 = vmax.f32 %v1935, %v1943
        %v1952 = vmax.f32 %v1936, %v1944
        %v1953 = vmax.f32 %v1937, %v1945
        %v1954 = vadd.f32 %v1946, %v669
        %v1955 = vadd.f32 %v1947, %v670
        %v1956 = vadd.f32 %v1948, %v671
        %v1957 = vadd.f32 %v1949, %v672
        %v1958 = vadd.f32 %v1950, %v673
        %v1959 = vadd.f32 %v1951, %v674
        %v1960 = vadd.f32 %v1952, %v675
        %v1961 = vadd.f32 %v1953, %v676
        %v1962 = vsel %vm940, %v1954, -inf
        %1963 = vmax.xlane.f32.xlu0 %v1962
        %v1964 = vpop.xlane.xlu0 %1963
        %v1965 = vsel %vm940, %v1955, -inf
        %1966 = vmax.xlane.f32.xlu0 %v1965
        %v1967 = vpop.xlane.xlu0 %1966
        %v1968 = vsel %vm940, %v1956, -inf
        %1969 = vmax.xlane.f32.xlu0 %v1968
        %v1970 = vpop.xlane.xlu0 %1969
        %v1971 = vsel %vm940, %v1957, -inf
        %1972 = vmax.xlane.f32.xlu0 %v1971
        %v1973 = vpop.xlane.xlu0 %1972
        %v1974 = vsel %vm940, %v1958, -inf
        %1975 = vmax.xlane.f32.xlu0 %v1974
        %v1976 = vpop.xlane.xlu0 %1975
        %v1977 = vsel %vm940, %v1959, -inf
        %1978 = vmax.xlane.f32.xlu0 %v1977
        %v1979 = vpop.xlane.xlu0 %1978
        %v1980 = vsel %vm940, %v1960, -inf
        %1981 = vmax.xlane.f32.xlu0 %v1980
        %v1982 = vpop.xlane.xlu0 %1981
        %v1983 = vsel %vm940, %v1961, -inf
        %1984 = vmax.xlane.f32.xlu0 %v1983
        %v1985 = vpop.xlane.xlu0 %1984
        %v1986 = vsub.f32 %v1954, %v1964
        %v1987 = vsub.f32 %v1955, %v1967
        %v1988 = vsub.f32 %v1956, %v1970
        %v1989 = vsub.f32 %v1957, %v1973
        %v1990 = vsub.f32 %v1958, %v1976
        %v1991 = vsub.f32 %v1959, %v1979
        %v1992 = vsub.f32 %v1960, %v1982
        %v1993 = vsub.f32 %v1961, %v1985
        %v1994 = vmul.f32 %v1986, 1.442695
        %v1995 = vpow.pop %v1994
        %v1996 = vmul.f32 %v1987, 1.442695
        %v1997 = vpow.pop %v1996
        %v1998 = vmul.f32 %v1988, 1.442695
        %v1999 = vpow.pop %v1998
        %v2000 = vmul.f32 %v1989, 1.442695
        %v2001 = vpow.pop %v2000
        %v2002 = vmul.f32 %v1990, 1.442695
        %v2003 = vpow.pop %v2002
        %v2004 = vmul.f32 %v1991, 1.442695
        %v2005 = vpow.pop %v2004
        %v2006 = vmul.f32 %v1992, 1.442695
        %v2007 = vpow.pop %v2006
        %v2008 = vmul.f32 %v1993, 1.442695
        %v2009 = vpow.pop %v2008
        %v2010 = vmul.f32 %v1995, %v653
        %v2011 = vmul.f32 %v1997, %v654
        %v2012 = vmul.f32 %v1999, %v655
        %v2013 = vmul.f32 %v2001, %v656
        %v2014 = vmul.f32 %v2003, %v657
        %v2015 = vmul.f32 %v2005, %v658
        %v2016 = vmul.f32 %v2007, %v659
        %v2017 = vmul.f32 %v2009, %v660
        %v2018 = vsel %vm940, %v2010, 0.0
        %2019 = vadd.xlane.f32.xlu0 %v2018
        %v2020 = vpop.xlane.xlu0 %2019
        %v2021 = vsel %vm940, %v2011, 0.0
        %2022 = vadd.xlane.f32.xlu0 %v2021
        %v2023 = vpop.xlane.xlu0 %2022
        %v2024 = vsel %vm940, %v2012, 0.0
        %2025 = vadd.xlane.f32.xlu0 %v2024
        %v2026 = vpop.xlane.xlu0 %2025
        %v2027 = vsel %vm940, %v2013, 0.0
        %2028 = vadd.xlane.f32.xlu0 %v2027
        %v2029 = vpop.xlane.xlu0 %2028
        %v2030 = vsel %vm940, %v2014, 0.0
        %2031 = vadd.xlane.f32.xlu0 %v2030
        %v2032 = vpop.xlane.xlu0 %2031
        %v2033 = vsel %vm940, %v2015, 0.0
        %2034 = vadd.xlane.f32.xlu0 %v2033
        %v2035 = vpop.xlane.xlu0 %2034
        %v2036 = vsel %vm940, %v2016, 0.0
        %2037 = vadd.xlane.f32.xlu0 %v2036
        %v2038 = vpop.xlane.xlu0 %2037
        %v2039 = vsel %vm940, %v2017, 0.0
        %2040 = vadd.xlane.f32.xlu0 %v2039
        %v2041 = vpop.xlane.xlu0 %2040
        %v2042 = vmax.f32 %v2020, 1e-30
        %v2043 = vmax.f32 %v2023, 1e-30
        %v2044 = vmax.f32 %v2026, 1e-30
        %v2045 = vmax.f32 %v2029, 1e-30
        %v2046 = vmax.f32 %v2032, 1e-30
        %v2047 = vmax.f32 %v2035, 1e-30
        %v2048 = vmax.f32 %v2038, 1e-30
        %v2049 = vmax.f32 %v2041, 1e-30
        %v2050 = vrcp.pop %v2042
        %v2051 = vrcp.pop %v2043
        %v2052 = vrcp.pop %v2044
        %v2053 = vrcp.pop %v2045
        %v2054 = vrcp.pop %v2046
        %v2055 = vrcp.pop %v2047
        %v2056 = vrcp.pop %v2048
        %v2057 = vrcp.pop %v2049
        %v2058 = vmul.f32 %v2010, %v2050
        %v2059 = vmul.f32 %v2011, %v2051
        %v2060 = vmul.f32 %v2012, %v2052
        %v2061 = vmul.f32 %v2013, %v2053
        %v2062 = vmul.f32 %v2014, %v2054
        %v2063 = vmul.f32 %v2015, %v2055
        %v2064 = vmul.f32 %v2016, %v2056
        %v2065 = vmul.f32 %v2017, %v2057
        %v2066 = vmul.f32 %v2058, %v677
        %v2067 = vmul.f32 %v2059, %v678
        %v2068 = vmul.f32 %v2060, %v679
        %v2069 = vmul.f32 %v2061, %v680
        %v2070 = vmul.f32 %v2062, %v681
        %v2071 = vmul.f32 %v2063, %v682
        %v2072 = vmul.f32 %v2064, %v683
        %v2073 = vmul.f32 %v2065, %v684
        %v2074 = vsel %vm940, %v2066, 0.0
        %2075 = vadd.xlane.f32.xlu0 %v2074
        %v2076 = vpop.xlane.xlu0 %2075
        %v2077 = vsel %vm940, %v2067, 0.0
        %2078 = vadd.xlane.f32.xlu0 %v2077
        %v2079 = vpop.xlane.xlu0 %2078
        %v2080 = vsel %vm940, %v2068, 0.0
        %2081 = vadd.xlane.f32.xlu0 %v2080
        %v2082 = vpop.xlane.xlu0 %2081
        %v2083 = vsel %vm940, %v2069, 0.0
        %2084 = vadd.xlane.f32.xlu0 %v2083
        %v2085 = vpop.xlane.xlu0 %2084
        %v2086 = vsel %vm940, %v2070, 0.0
        %2087 = vadd.xlane.f32.xlu0 %v2086
        %v2088 = vpop.xlane.xlu0 %2087
        %v2089 = vsel %vm940, %v2071, 0.0
        %2090 = vadd.xlane.f32.xlu0 %v2089
        %v2091 = vpop.xlane.xlu0 %2090
        %v2092 = vsel %vm940, %v2072, 0.0
        %2093 = vadd.xlane.f32.xlu0 %v2092
        %v2094 = vpop.xlane.xlu0 %2093
        %v2095 = vsel %vm940, %v2073, 0.0
        %2096 = vadd.xlane.f32.xlu0 %v2095
        %v2097 = vpop.xlane.xlu0 %2096
        %v2098 = vmul.f32 %v2058, %v686
        %v2099 = vmul.f32 %v2059, %v687
        %v2100 = vmul.f32 %v2060, %v688
        %v2101 = vmul.f32 %v2061, %v689
        %v2102 = vmul.f32 %v2062, %v690
        %v2103 = vmul.f32 %v2063, %v691
        %v2104 = vmul.f32 %v2064, %v692
        %v2105 = vmul.f32 %v2065, %v693
        %v2106 = vsel %vm940, %v2098, 0.0
        %2107 = vadd.xlane.f32.xlu0 %v2106
        %v2108 = vpop.xlane.xlu0 %2107
        %v2109 = vsel %vm940, %v2099, 0.0
        %2110 = vadd.xlane.f32.xlu0 %v2109
        %v2111 = vpop.xlane.xlu0 %2110
        %v2112 = vsel %vm940, %v2100, 0.0
        %2113 = vadd.xlane.f32.xlu0 %v2112
        %v2114 = vpop.xlane.xlu0 %2113
        %v2115 = vsel %vm940, %v2101, 0.0
        %2116 = vadd.xlane.f32.xlu0 %v2115
        %v2117 = vpop.xlane.xlu0 %2116
        %v2118 = vsel %vm940, %v2102, 0.0
        %2119 = vadd.xlane.f32.xlu0 %v2118
        %v2120 = vpop.xlane.xlu0 %2119
        %v2121 = vsel %vm940, %v2103, 0.0
        %2122 = vadd.xlane.f32.xlu0 %v2121
        %v2123 = vpop.xlane.xlu0 %2122
        %v2124 = vsel %vm940, %v2104, 0.0
        %2125 = vadd.xlane.f32.xlu0 %v2124
        %v2126 = vpop.xlane.xlu0 %2125
        %v2127 = vsel %vm940, %v2105, 0.0
        %2128 = vadd.xlane.f32.xlu0 %v2127
        %v2129 = vpop.xlane.xlu0 %2128
        %s2130 = scalar_lea.vmem %s7, 4
        %v2131 = vld [vmem:[%s2130] sm:$0x1]
        %v2132 = vperm.slane %v2131, 0
        %v2133 = vmul.f32 %v2076, %v2132
        %v2134 = vmul.f32 %v2079, %v2132
        %v2135 = vmul.f32 %v2082, %v2132
        %v2136 = vmul.f32 %v2085, %v2132
        %v2137 = vmul.f32 %v2088, %v2132
        %v2138 = vmul.f32 %v2091, %v2132
        %v2139 = vmul.f32 %v2094, %v2132
        %v2140 = vmul.f32 %v2097, %v2132
        %v2142 = vsel %vm940, %v2058, 0
        %v2145 = vsel %vm940, %v2059, 0
        %v2148 = vsel %vm940, %v2060, 0
        %v2151 = vsel %vm940, %v2061, 0
        %v2154 = vsel %vm940, %v2062, 0
        %v2157 = vsel %vm940, %v2063, 0
        %v2160 = vsel %vm940, %v2064, 0
        %v2163 = vsel %vm940, %v2065, 0
        %2165 = vmatpush.msra.mxu0 0.0
        %2166 = vmatpush.msra.mxu0 0.0
        %2167 = vmatpush.msra.mxu0 0.0
        %2168 = vmatpush.msra.mxu0 0.0
        %2169 = vmatpush.msra.mxu0 0.0
        %2170 = vmatpush.msra.mxu0 0.0
        %2171 = vmatpush.msra.mxu0 0.0
        %2172 = vmatpush.msra.mxu0 0.0
        %2173 = vmatpush.msra.mxu0 %v1806
        %2174 = vmatpush.msra.mxu0 %v1803
        %2175 = vmatpush.msra.mxu0 %v1800
        %2176 = vmatpush.msra.mxu0 %v1797
        %2177 = vmatpush.msra.mxu0 %v1794
        %2178 = vmatpush.msra.mxu0 %v1791
        %2179 = vmatpush.msra.mxu0 %v1788
        %2180 = vmatpush.msra.mxu0 %v1785
        %2181 = vmatmul.f32.gmra.mxu0 %v2142
        %v2182 = vpop.f32.mrf.mxu0
        %v2183 = vadd.f32 %v2133, %v2182
        %2184 = vmatmul.f32.gmra.mxu0 %v2145
        %v2185 = vpop.f32.mrf.mxu0
        %v2186 = vadd.f32 %v2134, %v2185
        %2187 = vmatmul.f32.gmra.mxu0 %v2148
        %v2188 = vpop.f32.mrf.mxu0
        %v2189 = vadd.f32 %v2135, %v2188
        %2190 = vmatmul.f32.gmra.mxu0 %v2151
        %v2191 = vpop.f32.mrf.mxu0
        %v2192 = vadd.f32 %v2136, %v2191
        %2193 = vmatmul.f32.gmra.mxu0 %v2154
        %v2194 = vpop.f32.mrf.mxu0
        %v2195 = vadd.f32 %v2137, %v2194
        %2196 = vmatmul.f32.gmra.mxu0 %v2157
        %v2197 = vpop.f32.mrf.mxu0
        %v2198 = vadd.f32 %v2138, %v2197
        %2199 = vmatmul.f32.gmra.mxu0 %v2160
        %v2200 = vpop.f32.mrf.mxu0
        %v2201 = vadd.f32 %v2139, %v2200
        %2202 = vmatmul.f32.gmra.mxu0 %v2163
        %v2203 = vpop.f32.mrf.mxu0
        %v2204 = vadd.f32 %v2140, %v2203
        %2205 = vdwg.mxu0
        %v2206 = vld [vmem:[%s2130 + $0x1] sm:$0x1]
        %v2207 = vperm.slane %v2206, 0
        %v2208 = vmul.f32 %v2108, %v2207
        %v2209 = vmul.f32 %v2111, %v2207
        %v2210 = vmul.f32 %v2114, %v2207
        %v2211 = vmul.f32 %v2117, %v2207
        %v2212 = vmul.f32 %v2120, %v2207
        %v2213 = vmul.f32 %v2123, %v2207
        %v2214 = vmul.f32 %v2126, %v2207
        %v2215 = vmul.f32 %v2129, %v2207
        %v2216 = vadd.f32 %v2183, %v2208
        %v2217 = vadd.f32 %v2186, %v2209
        %v2218 = vadd.f32 %v2189, %v2210
        %v2219 = vadd.f32 %v2192, %v2211
        %v2220 = vadd.f32 %v2195, %v2212
        %v2221 = vadd.f32 %v2198, %v2213
        %v2222 = vadd.f32 %v2201, %v2214
        %v2223 = vadd.f32 %v2204, %v2215
        %2232 = vrot.lane.b32.xlu0 %v2216, 64
        %v2233 = vpop.permute.xlu0 %2232
        %2234 = vrot.lane.b32.xlu0 %v2217, 64
        %v2235 = vpop.permute.xlu0 %2234
        %2236 = vrot.lane.b32.xlu0 %v2218, 64
        %v2237 = vpop.permute.xlu0 %2236
        %2238 = vrot.lane.b32.xlu0 %v2219, 64
        %v2239 = vpop.permute.xlu0 %2238
        %2240 = vrot.lane.b32.xlu0 %v2220, 64
        %v2241 = vpop.permute.xlu0 %2240
        %2242 = vrot.lane.b32.xlu0 %v2221, 64
        %v2243 = vpop.permute.xlu0 %2242
        %2244 = vrot.lane.b32.xlu0 %v2222, 64
        %v2245 = vpop.permute.xlu0 %2244
        %2246 = vrot.lane.b32.xlu0 %v2223, 64
        %v2247 = vpop.permute.xlu0 %2246
        %v2256 = vadd.f32 %v1785, %v2233
        %v2257 = vadd.f32 %v1788, %v2235
        %v2258 = vadd.f32 %v1791, %v2237
        %v2259 = vadd.f32 %v1794, %v2239
        %v2260 = vadd.f32 %v1797, %v2241
        %v2261 = vadd.f32 %v1800, %v2243
        %v2262 = vadd.f32 %v1803, %v2245
        %v2263 = vadd.f32 %v1806, %v2247
        %s2264 = sld [smem:[#allocation3 + $0x6]]
        %s2265 = sld [smem:[#allocation3 + $0x7]]
        %2266 = vset.pattern.permute.xlu0 99
        %2267 = vperm.xlu0 %2266, %v1785
        %v2268 = vpop.permute.xlu0 %2267
        %2270 = vset.pattern.permute.xlu0 99
        %2271 = vperm.xlu0 %2270, %v1788
        %v2272 = vpop.permute.xlu0 %2271
        %2274 = vset.pattern.permute.xlu0 99
        %2275 = vperm.xlu0 %2274, %v1791
        %v2276 = vpop.permute.xlu0 %2275
        %2278 = vset.pattern.permute.xlu0 99
        %2279 = vperm.xlu0 %2278, %v1794
        %v2280 = vpop.permute.xlu0 %2279
        %2282 = vset.pattern.permute.xlu0 99
        %2283 = vperm.xlu0 %2282, %v1797
        %v2284 = vpop.permute.xlu0 %2283
        %2286 = vset.pattern.permute.xlu0 99
        %2287 = vperm.xlu0 %2286, %v1800
        %v2288 = vpop.permute.xlu0 %2287
        %2290 = vset.pattern.permute.xlu0 99
        %2291 = vperm.xlu0 %2290, %v1803
        %v2292 = vpop.permute.xlu0 %2291
        %2294 = vset.pattern.permute.xlu0 99
        %2295 = vperm.xlu0 %2294, %v1806
        %v2296 = vpop.permute.xlu0 %2295
        %2298 = vset.pattern.permute.xlu0 98
        %2299 = vperm.xlu0 %2298, %v1785
        %v2300 = vpop.permute.xlu0 %2299
        %2301 = vset.pattern.permute.xlu0 98
        %2302 = vperm.xlu0 %2301, %v1788
        %v2303 = vpop.permute.xlu0 %2302
        %2304 = vset.pattern.permute.xlu0 98
        %2305 = vperm.xlu0 %2304, %v1791
        %v2306 = vpop.permute.xlu0 %2305
        %2307 = vset.pattern.permute.xlu0 98
        %2308 = vperm.xlu0 %2307, %v1794
        %v2309 = vpop.permute.xlu0 %2308
        %2310 = vset.pattern.permute.xlu0 98
        %2311 = vperm.xlu0 %2310, %v1797
        %v2312 = vpop.permute.xlu0 %2311
        %2313 = vset.pattern.permute.xlu0 98
        %2314 = vperm.xlu0 %2313, %v1800
        %v2315 = vpop.permute.xlu0 %2314
        %2316 = vset.pattern.permute.xlu0 98
        %2317 = vperm.xlu0 %2316, %v1803
        %v2318 = vpop.permute.xlu0 %2317
        %2319 = vset.pattern.permute.xlu0 98
        %2320 = vperm.xlu0 %2319, %v1806
        %v2321 = vpop.permute.xlu0 %2320
        %v2322 = vperm.slane %v2300, %v831
        %v2323 = vperm.slane %v2303, %v833
        %v2324 = vsel %vm835, %v2323, %v2322
        %v2325 = vperm.slane %v2306, %v837
        %v2326 = vsel %vm839, %v2325, %v2324
        %v2327 = vperm.slane %v2309, %v841
        %v2328 = vsel %vm843, %v2327, %v2326
        %v2329 = vperm.slane %v2312, %v845
        %v2330 = vsel %vm847, %v2329, %v2328
        %v2331 = vperm.slane %v2315, %v849
        %v2332 = vsel %vm851, %v2331, %v2330
        %v2333 = vperm.slane %v2318, %v853
        %v2334 = vsel %vm855, %v2333, %v2332
        %v2335 = vperm.slane %v2321, %v857
        %v2336 = vsel %vm859, %v2335, %v2334
        %v2337 = vsel %vm861, %v2336, %v2336
        %v2338 = vsel %vm863, %v2336, %v2337
        %v2339 = vsel %vm865, %v2336, %v2338
        %v2340 = vsel %vm867, %v2336, %v2339
        %v2341 = vsel %vm869, %v2336, %v2340
        %v2342 = vsel %vm871, %v2336, %v2341
        %v2344 = vadd.f32 %v2268, %v2342
        %v2345 = vadd.f32 %v2272, %v2342
        %v2346 = vadd.f32 %v2276, %v2342
        %v2347 = vadd.f32 %v2280, %v2342
        %v2348 = vadd.f32 %v2284, %v2342
        %v2349 = vadd.f32 %v2288, %v2342
        %v2350 = vadd.f32 %v2292, %v2342
        %v2351 = vadd.f32 %v2296, %v2342
        %v2352 = vstv %s2264
        %v2353 = vmul.f32 %v677, %v2352
        %v2354 = vmul.f32 %v678, %v2352
        %v2355 = vmul.f32 %v679, %v2352
        %v2356 = vmul.f32 %v680, %v2352
        %v2357 = vmul.f32 %v681, %v2352
        %v2358 = vmul.f32 %v682, %v2352
        %v2359 = vmul.f32 %v683, %v2352
        %v2360 = vmul.f32 %v684, %v2352
        %v2361 = vadd.f32 %v2344, %v2353
        %v2362 = vadd.f32 %v2345, %v2354
        %v2363 = vadd.f32 %v2346, %v2355
        %v2364 = vadd.f32 %v2347, %v2356
        %v2365 = vadd.f32 %v2348, %v2357
        %v2366 = vadd.f32 %v2349, %v2358
        %v2367 = vadd.f32 %v2350, %v2359
        %v2368 = vadd.f32 %v2351, %v2360
        %v2369 = vstv %s2265
        %v2370 = vmul.f32 %v686, %v2369
        %v2371 = vmul.f32 %v687, %v2369
        %v2372 = vmul.f32 %v688, %v2369
        %v2373 = vmul.f32 %v689, %v2369
        %v2374 = vmul.f32 %v690, %v2369
        %v2375 = vmul.f32 %v691, %v2369
        %v2376 = vmul.f32 %v692, %v2369
        %v2377 = vmul.f32 %v693, %v2369
        %v2378 = vadd.f32 %v2361, %v2370
        %v2379 = vadd.f32 %v2362, %v2371
        %v2380 = vadd.f32 %v2363, %v2372
        %v2381 = vadd.f32 %v2364, %v2373
        %v2382 = vadd.f32 %v2365, %v2374
        %v2383 = vadd.f32 %v2366, %v2375
        %v2384 = vadd.f32 %v2367, %v2376
        %v2385 = vadd.f32 %v2368, %v2377
        %v2386 = vmul.f32 %v2378, 0.01
        %v2387 = vmul.f32 %v2379, 0.01
        %v2388 = vmul.f32 %v2380, 0.01
        %v2389 = vmul.f32 %v2381, 0.01
        %v2390 = vmul.f32 %v2382, 0.01
        %v2391 = vmul.f32 %v2383, 0.01
        %v2392 = vmul.f32 %v2384, 0.01
        %v2393 = vmul.f32 %v2385, 0.01
        %v2394 = vmax.f32 %v2378, %v2386
        %v2395 = vmax.f32 %v2379, %v2387
        %v2396 = vmax.f32 %v2380, %v2388
        %v2397 = vmax.f32 %v2381, %v2389
        %v2398 = vmax.f32 %v2382, %v2390
        %v2399 = vmax.f32 %v2383, %v2391
        %v2400 = vmax.f32 %v2384, %v2392
        %v2401 = vmax.f32 %v2385, %v2393
        %v2402 = vadd.f32 %v2394, %v669
        %v2403 = vadd.f32 %v2395, %v670
        %v2404 = vadd.f32 %v2396, %v671
        %v2405 = vadd.f32 %v2397, %v672
        %v2406 = vadd.f32 %v2398, %v673
        %v2407 = vadd.f32 %v2399, %v674
        %v2408 = vadd.f32 %v2400, %v675
        %v2409 = vadd.f32 %v2401, %v676
        %v2410 = vsel %vm940, %v2402, -inf
        %2411 = vmax.xlane.f32.xlu0 %v2410
        %v2412 = vpop.xlane.xlu0 %2411
        %v2413 = vsel %vm940, %v2403, -inf
        %2414 = vmax.xlane.f32.xlu0 %v2413
        %v2415 = vpop.xlane.xlu0 %2414
        %v2416 = vsel %vm940, %v2404, -inf
        %2417 = vmax.xlane.f32.xlu0 %v2416
        %v2418 = vpop.xlane.xlu0 %2417
        %v2419 = vsel %vm940, %v2405, -inf
        %2420 = vmax.xlane.f32.xlu0 %v2419
        %v2421 = vpop.xlane.xlu0 %2420
        %v2422 = vsel %vm940, %v2406, -inf
        %2423 = vmax.xlane.f32.xlu0 %v2422
        %v2424 = vpop.xlane.xlu0 %2423
        %v2425 = vsel %vm940, %v2407, -inf
        %2426 = vmax.xlane.f32.xlu0 %v2425
        %v2427 = vpop.xlane.xlu0 %2426
        %v2428 = vsel %vm940, %v2408, -inf
        %2429 = vmax.xlane.f32.xlu0 %v2428
        %v2430 = vpop.xlane.xlu0 %2429
        %v2431 = vsel %vm940, %v2409, -inf
        %2432 = vmax.xlane.f32.xlu0 %v2431
        %v2433 = vpop.xlane.xlu0 %2432
        %v2434 = vsub.f32 %v2402, %v2412
        %v2435 = vsub.f32 %v2403, %v2415
        %v2436 = vsub.f32 %v2404, %v2418
        %v2437 = vsub.f32 %v2405, %v2421
        %v2438 = vsub.f32 %v2406, %v2424
        %v2439 = vsub.f32 %v2407, %v2427
        %v2440 = vsub.f32 %v2408, %v2430
        %v2441 = vsub.f32 %v2409, %v2433
        %v2442 = vmul.f32 %v2434, 1.442695
        %v2443 = vpow.pop %v2442
        %v2444 = vmul.f32 %v2435, 1.442695
        %v2445 = vpow.pop %v2444
        %v2446 = vmul.f32 %v2436, 1.442695
        %v2447 = vpow.pop %v2446
        %v2448 = vmul.f32 %v2437, 1.442695
        %v2449 = vpow.pop %v2448
        %v2450 = vmul.f32 %v2438, 1.442695
        %v2451 = vpow.pop %v2450
        %v2452 = vmul.f32 %v2439, 1.442695
        %v2453 = vpow.pop %v2452
        %v2454 = vmul.f32 %v2440, 1.442695
        %v2455 = vpow.pop %v2454
        %v2456 = vmul.f32 %v2441, 1.442695
        %v2457 = vpow.pop %v2456
        %v2458 = vmul.f32 %v2443, %v653
        %v2459 = vmul.f32 %v2445, %v654
        %v2460 = vmul.f32 %v2447, %v655
        %v2461 = vmul.f32 %v2449, %v656
        %v2462 = vmul.f32 %v2451, %v657
        %v2463 = vmul.f32 %v2453, %v658
        %v2464 = vmul.f32 %v2455, %v659
        %v2465 = vmul.f32 %v2457, %v660
        %v2466 = vsel %vm940, %v2458, 0.0
        %2467 = vadd.xlane.f32.xlu0 %v2466
        %v2468 = vpop.xlane.xlu0 %2467
        %v2469 = vsel %vm940, %v2459, 0.0
        %2470 = vadd.xlane.f32.xlu0 %v2469
        %v2471 = vpop.xlane.xlu0 %2470
        %v2472 = vsel %vm940, %v2460, 0.0
        %2473 = vadd.xlane.f32.xlu0 %v2472
        %v2474 = vpop.xlane.xlu0 %2473
        %v2475 = vsel %vm940, %v2461, 0.0
        %2476 = vadd.xlane.f32.xlu0 %v2475
        %v2477 = vpop.xlane.xlu0 %2476
        %v2478 = vsel %vm940, %v2462, 0.0
        %2479 = vadd.xlane.f32.xlu0 %v2478
        %v2480 = vpop.xlane.xlu0 %2479
        %v2481 = vsel %vm940, %v2463, 0.0
        %2482 = vadd.xlane.f32.xlu0 %v2481
        %v2483 = vpop.xlane.xlu0 %2482
        %v2484 = vsel %vm940, %v2464, 0.0
        %2485 = vadd.xlane.f32.xlu0 %v2484
        %v2486 = vpop.xlane.xlu0 %2485
        %v2487 = vsel %vm940, %v2465, 0.0
        %2488 = vadd.xlane.f32.xlu0 %v2487
        %v2489 = vpop.xlane.xlu0 %2488
        %v2490 = vmax.f32 %v2468, 1e-30
        %v2491 = vmax.f32 %v2471, 1e-30
        %v2492 = vmax.f32 %v2474, 1e-30
        %v2493 = vmax.f32 %v2477, 1e-30
        %v2494 = vmax.f32 %v2480, 1e-30
        %v2495 = vmax.f32 %v2483, 1e-30
        %v2496 = vmax.f32 %v2486, 1e-30
        %v2497 = vmax.f32 %v2489, 1e-30
        %v2498 = vrcp.pop %v2490
        %v2499 = vrcp.pop %v2491
        %v2500 = vrcp.pop %v2492
        %v2501 = vrcp.pop %v2493
        %v2502 = vrcp.pop %v2494
        %v2503 = vrcp.pop %v2495
        %v2504 = vrcp.pop %v2496
        %v2505 = vrcp.pop %v2497
        %v2506 = vmul.f32 %v2458, %v2498
        %v2507 = vmul.f32 %v2459, %v2499
        %v2508 = vmul.f32 %v2460, %v2500
        %v2509 = vmul.f32 %v2461, %v2501
        %v2510 = vmul.f32 %v2462, %v2502
        %v2511 = vmul.f32 %v2463, %v2503
        %v2512 = vmul.f32 %v2464, %v2504
        %v2513 = vmul.f32 %v2465, %v2505
        %v2514 = vmul.f32 %v2506, %v677
        %v2515 = vmul.f32 %v2507, %v678
        %v2516 = vmul.f32 %v2508, %v679
        %v2517 = vmul.f32 %v2509, %v680
        %v2518 = vmul.f32 %v2510, %v681
        %v2519 = vmul.f32 %v2511, %v682
        %v2520 = vmul.f32 %v2512, %v683
        %v2521 = vmul.f32 %v2513, %v684
        %v2522 = vsel %vm940, %v2514, 0.0
        %2523 = vadd.xlane.f32.xlu0 %v2522
        %v2524 = vpop.xlane.xlu0 %2523
        %v2525 = vsel %vm940, %v2515, 0.0
        %2526 = vadd.xlane.f32.xlu0 %v2525
        %v2527 = vpop.xlane.xlu0 %2526
        %v2528 = vsel %vm940, %v2516, 0.0
        %2529 = vadd.xlane.f32.xlu0 %v2528
        %v2530 = vpop.xlane.xlu0 %2529
        %v2531 = vsel %vm940, %v2517, 0.0
        %2532 = vadd.xlane.f32.xlu0 %v2531
        %v2533 = vpop.xlane.xlu0 %2532
        %v2534 = vsel %vm940, %v2518, 0.0
        %2535 = vadd.xlane.f32.xlu0 %v2534
        %v2536 = vpop.xlane.xlu0 %2535
        %v2537 = vsel %vm940, %v2519, 0.0
        %2538 = vadd.xlane.f32.xlu0 %v2537
        %v2539 = vpop.xlane.xlu0 %2538
        %v2540 = vsel %vm940, %v2520, 0.0
        %2541 = vadd.xlane.f32.xlu0 %v2540
        %v2542 = vpop.xlane.xlu0 %2541
        %v2543 = vsel %vm940, %v2521, 0.0
        %2544 = vadd.xlane.f32.xlu0 %v2543
        %v2545 = vpop.xlane.xlu0 %2544
        %v2546 = vmul.f32 %v2506, %v686
        %v2547 = vmul.f32 %v2507, %v687
        %v2548 = vmul.f32 %v2508, %v688
        %v2549 = vmul.f32 %v2509, %v689
        %v2550 = vmul.f32 %v2510, %v690
        %v2551 = vmul.f32 %v2511, %v691
        %v2552 = vmul.f32 %v2512, %v692
        %v2553 = vmul.f32 %v2513, %v693
        %v2554 = vsel %vm940, %v2546, 0.0
        %2555 = vadd.xlane.f32.xlu0 %v2554
        %v2556 = vpop.xlane.xlu0 %2555
        %v2557 = vsel %vm940, %v2547, 0.0
        %2558 = vadd.xlane.f32.xlu0 %v2557
        %v2559 = vpop.xlane.xlu0 %2558
        %v2560 = vsel %vm940, %v2548, 0.0
        %2561 = vadd.xlane.f32.xlu0 %v2560
        %v2562 = vpop.xlane.xlu0 %2561
        %v2563 = vsel %vm940, %v2549, 0.0
        %2564 = vadd.xlane.f32.xlu0 %v2563
        %v2565 = vpop.xlane.xlu0 %2564
        %v2566 = vsel %vm940, %v2550, 0.0
        %2567 = vadd.xlane.f32.xlu0 %v2566
        %v2568 = vpop.xlane.xlu0 %2567
        %v2569 = vsel %vm940, %v2551, 0.0
        %2570 = vadd.xlane.f32.xlu0 %v2569
        %v2571 = vpop.xlane.xlu0 %2570
        %v2572 = vsel %vm940, %v2552, 0.0
        %2573 = vadd.xlane.f32.xlu0 %v2572
        %v2574 = vpop.xlane.xlu0 %2573
        %v2575 = vsel %vm940, %v2553, 0.0
        %2576 = vadd.xlane.f32.xlu0 %v2575
        %v2577 = vpop.xlane.xlu0 %2576
        %s2578 = scalar_lea.vmem %s7, 6
        %v2579 = vld [vmem:[%s2578] sm:$0x1]
        %v2580 = vperm.slane %v2579, 0
        %v2581 = vmul.f32 %v2524, %v2580
        %v2582 = vmul.f32 %v2527, %v2580
        %v2583 = vmul.f32 %v2530, %v2580
        %v2584 = vmul.f32 %v2533, %v2580
        %v2585 = vmul.f32 %v2536, %v2580
        %v2586 = vmul.f32 %v2539, %v2580
        %v2587 = vmul.f32 %v2542, %v2580
        %v2588 = vmul.f32 %v2545, %v2580
        %2589 = vrot.lane.b32.xlu0 %v1785, 96
        %v2590 = vpop.permute.xlu0 %2589
        %2591 = vrot.lane.b32.xlu0 %v1788, 96
        %v2592 = vpop.permute.xlu0 %2591
        %2593 = vrot.lane.b32.xlu0 %v1791, 96
        %v2594 = vpop.permute.xlu0 %2593
        %2595 = vrot.lane.b32.xlu0 %v1794, 96
        %v2596 = vpop.permute.xlu0 %2595
        %2597 = vrot.lane.b32.xlu0 %v1797, 96
        %v2598 = vpop.permute.xlu0 %2597
        %2599 = vrot.lane.b32.xlu0 %v1800, 96
        %v2600 = vpop.permute.xlu0 %2599
        %2601 = vrot.lane.b32.xlu0 %v1803, 96
        %v2602 = vpop.permute.xlu0 %2601
        %2603 = vrot.lane.b32.xlu0 %v1806, 96
        %v2604 = vpop.permute.xlu0 %2603
        %v2614 = vsel %vm940, %v2506, 0
        %v2617 = vsel %vm940, %v2507, 0
        %v2620 = vsel %vm940, %v2508, 0
        %v2623 = vsel %vm940, %v2509, 0
        %v2626 = vsel %vm940, %v2510, 0
        %v2629 = vsel %vm940, %v2511, 0
        %v2632 = vsel %vm940, %v2512, 0
        %v2635 = vsel %vm940, %v2513, 0
        %2637 = vmatpush.msra.mxu0 0.0
        %2638 = vmatpush.msra.mxu0 0.0
        %2639 = vmatpush.msra.mxu0 0.0
        %2640 = vmatpush.msra.mxu0 0.0
        %2641 = vmatpush.msra.mxu0 0.0
        %2642 = vmatpush.msra.mxu0 0.0
        %2643 = vmatpush.msra.mxu0 0.0
        %2644 = vmatpush.msra.mxu0 0.0
        %2645 = vmatpush.msra.mxu0 %v2604
        %2646 = vmatpush.msra.mxu0 %v2602
        %2647 = vmatpush.msra.mxu0 %v2600
        %2648 = vmatpush.msra.mxu0 %v2598
        %2649 = vmatpush.msra.mxu0 %v2596
        %2650 = vmatpush.msra.mxu0 %v2594
        %2651 = vmatpush.msra.mxu0 %v2592
        %2652 = vmatpush.msra.mxu0 %v2590
        %2653 = vmatmul.f32.gmra.mxu0 %v2614
        %v2654 = vpop.f32.mrf.mxu0
        %v2655 = vadd.f32 %v2581, %v2654
        %2656 = vmatmul.f32.gmra.mxu0 %v2617
        %v2657 = vpop.f32.mrf.mxu0
        %v2658 = vadd.f32 %v2582, %v2657
        %2659 = vmatmul.f32.gmra.mxu0 %v2620
        %v2660 = vpop.f32.mrf.mxu0
        %v2661 = vadd.f32 %v2583, %v2660
        %2662 = vmatmul.f32.gmra.mxu0 %v2623
        %v2663 = vpop.f32.mrf.mxu0
        %v2664 = vadd.f32 %v2584, %v2663
        %2665 = vmatmul.f32.gmra.mxu0 %v2626
        %v2666 = vpop.f32.mrf.mxu0
        %v2667 = vadd.f32 %v2585, %v2666
        %2668 = vmatmul.f32.gmra.mxu0 %v2629
        %v2669 = vpop.f32.mrf.mxu0
        %v2670 = vadd.f32 %v2586, %v2669
        %2671 = vmatmul.f32.gmra.mxu0 %v2632
        %v2672 = vpop.f32.mrf.mxu0
        %v2673 = vadd.f32 %v2587, %v2672
        %2674 = vmatmul.f32.gmra.mxu0 %v2635
        %v2675 = vpop.f32.mrf.mxu0
        %v2676 = vadd.f32 %v2588, %v2675
        %2677 = vdwg.mxu0
        %v2678 = vld [vmem:[%s2578 + $0x1] sm:$0x1]
        %v2679 = vperm.slane %v2678, 0
        %v2680 = vmul.f32 %v2556, %v2679
        %v2681 = vmul.f32 %v2559, %v2679
        %v2682 = vmul.f32 %v2562, %v2679
        %v2683 = vmul.f32 %v2565, %v2679
        %v2684 = vmul.f32 %v2568, %v2679
        %v2685 = vmul.f32 %v2571, %v2679
        %v2686 = vmul.f32 %v2574, %v2679
        %v2687 = vmul.f32 %v2577, %v2679
        %v2688 = vadd.f32 %v2655, %v2680
        %v2689 = vadd.f32 %v2658, %v2681
        %v2690 = vadd.f32 %v2661, %v2682
        %v2691 = vadd.f32 %v2664, %v2683
        %v2692 = vadd.f32 %v2667, %v2684
        %v2693 = vadd.f32 %v2670, %v2685
        %v2694 = vadd.f32 %v2673, %v2686
        %v2695 = vadd.f32 %v2676, %v2687
        %2704 = vrot.lane.b32.xlu0 %v2688, 64
        %v2705 = vpop.permute.xlu0 %2704
        %2706 = vrot.lane.b32.xlu0 %v2689, 64
        %v2707 = vpop.permute.xlu0 %2706
        %2708 = vrot.lane.b32.xlu0 %v2690, 64
        %v2709 = vpop.permute.xlu0 %2708
        %2710 = vrot.lane.b32.xlu0 %v2691, 64
        %v2711 = vpop.permute.xlu0 %2710
        %2712 = vrot.lane.b32.xlu0 %v2692, 64
        %v2713 = vpop.permute.xlu0 %2712
        %2714 = vrot.lane.b32.xlu0 %v2693, 64
        %v2715 = vpop.permute.xlu0 %2714
        %2716 = vrot.lane.b32.xlu0 %v2694, 64
        %v2717 = vpop.permute.xlu0 %2716
        %2718 = vrot.lane.b32.xlu0 %v2695, 64
        %v2719 = vpop.permute.xlu0 %2718
        %v2728 = vadd.f32 %v2256, %v2705
        %v2729 = vadd.f32 %v2257, %v2707
        %v2730 = vadd.f32 %v2258, %v2709
        %v2731 = vadd.f32 %v2259, %v2711
        %v2732 = vadd.f32 %v2260, %v2713
        %v2733 = vadd.f32 %v2261, %v2715
        %v2734 = vadd.f32 %v2262, %v2717
        %v2735 = vadd.f32 %v2263, %v2719
        %v2736 = vmul.f32 %v2728, 0.5
        %v2737 = vmul.f32 %v2729, 0.5
        %v2738 = vmul.f32 %v2730, 0.5
        %v2739 = vmul.f32 %v2731, 0.5
        %v2740 = vmul.f32 %v2732, 0.5
        %v2741 = vmul.f32 %v2733, 0.5
        %v2742 = vmul.f32 %v2734, 0.5
        %v2743 = vmul.f32 %v2735, 0.5
        %2744 = vrot.lane.b32.xlu0 %v2506, 64
        %v2745 = vpop.permute.xlu0 %2744
        %2746 = vrot.lane.b32.xlu0 %v2507, 64
        %v2747 = vpop.permute.xlu0 %2746
        %2748 = vrot.lane.b32.xlu0 %v2508, 64
        %v2749 = vpop.permute.xlu0 %2748
        %2750 = vrot.lane.b32.xlu0 %v2509, 64
        %v2751 = vpop.permute.xlu0 %2750
        %2752 = vrot.lane.b32.xlu0 %v2510, 64
        %v2753 = vpop.permute.xlu0 %2752
        %2754 = vrot.lane.b32.xlu0 %v2511, 64
        %v2755 = vpop.permute.xlu0 %2754
        %2756 = vrot.lane.b32.xlu0 %v2512, 64
        %v2757 = vpop.permute.xlu0 %2756
        %2758 = vrot.lane.b32.xlu0 %v2513, 64
        %v2759 = vpop.permute.xlu0 %2758
        %v2768 = vsel %vm940, %v2058, %v2745
        %v2769 = vsel %vm940, %v2059, %v2747
        %v2770 = vsel %vm940, %v2060, %v2749
        %v2771 = vsel %vm940, %v2061, %v2751
        %v2772 = vsel %vm940, %v2062, %v2753
        %v2773 = vsel %vm940, %v2063, %v2755
        %v2774 = vsel %vm940, %v2064, %v2757
        %v2775 = vsel %vm940, %v2065, %v2759
        %2776 = vst [vmem:[%s402] sm:$0xff] %v2768
        %2777 = vst [vmem:[%s402 + $0x8] sm:$0xff] %v2769
        %2778 = vst [vmem:[%s402 + $0x10] sm:$0xff] %v2770
        %2779 = vst [vmem:[%s402 + $0x18] sm:$0xff] %v2771
        %2780 = vst [vmem:[%s402 + $0x20] sm:$0xff] %v2772
        %2781 = vst [vmem:[%s402 + $0x28] sm:$0xff] %v2773
        %2782 = vst [vmem:[%s402 + $0x30] sm:$0xff] %v2774
        %2783 = vst [vmem:[%s402 + $0x38] sm:$0xff] %v2775
        %2792 = vrot.lane.b32.xlu0 %v2736, 64
        %v2793 = vpop.permute.xlu0 %2792
        %2794 = vrot.lane.b32.xlu0 %v2737, 64
        %v2795 = vpop.permute.xlu0 %2794
        %2796 = vrot.lane.b32.xlu0 %v2738, 64
        %v2797 = vpop.permute.xlu0 %2796
        %2798 = vrot.lane.b32.xlu0 %v2739, 64
        %v2799 = vpop.permute.xlu0 %2798
        %2800 = vrot.lane.b32.xlu0 %v2740, 64
        %v2801 = vpop.permute.xlu0 %2800
        %2802 = vrot.lane.b32.xlu0 %v2741, 64
        %v2803 = vpop.permute.xlu0 %2802
        %2804 = vrot.lane.b32.xlu0 %v2742, 64
        %v2805 = vpop.permute.xlu0 %2804
        %2806 = vrot.lane.b32.xlu0 %v2743, 64
        %v2807 = vpop.permute.xlu0 %2806
        %2816 = vrot.lane.b32.xlu0 %v645, 32
        %v2817 = vpop.permute.xlu0 %2816
        %2818 = vrot.lane.b32.xlu0 %v646, 32
        %v2819 = vpop.permute.xlu0 %2818
        %2820 = vrot.lane.b32.xlu0 %v647, 32
        %v2821 = vpop.permute.xlu0 %2820
        %2822 = vrot.lane.b32.xlu0 %v648, 32
        %v2823 = vpop.permute.xlu0 %2822
        %2824 = vrot.lane.b32.xlu0 %v649, 32
        %v2825 = vpop.permute.xlu0 %2824
        %2826 = vrot.lane.b32.xlu0 %v650, 32
        %v2827 = vpop.permute.xlu0 %2826
        %2828 = vrot.lane.b32.xlu0 %v651, 32
        %v2829 = vpop.permute.xlu0 %2828
        %2830 = vrot.lane.b32.xlu0 %v652, 32
        %v2831 = vpop.permute.xlu0 %2830
        %v2840 = vsel %vm698, %v2793, %v2817
        %v2841 = vsel %vm698, %v2795, %v2819
        %v2842 = vsel %vm698, %v2797, %v2821
        %v2843 = vsel %vm698, %v2799, %v2823
        %v2844 = vsel %vm698, %v2801, %v2825
        %v2845 = vsel %vm698, %v2803, %v2827
        %v2846 = vsel %vm698, %v2805, %v2829
        %v2847 = vsel %vm698, %v2807, %v2831
        %2848 = vst.msk [vmem:[%s395] sm:$0xff] %vm940, %v2840
        %2849 = vst.msk [vmem:[%s395 + $0x8] sm:$0xff] %vm940, %v2841
        %2850 = vst.msk [vmem:[%s395 + $0x10] sm:$0xff] %vm940, %v2842
        %2851 = vst.msk [vmem:[%s395 + $0x18] sm:$0xff] %vm940, %v2843
        %2852 = vst.msk [vmem:[%s395 + $0x20] sm:$0xff] %vm940, %v2844
        %2853 = vst.msk [vmem:[%s395 + $0x28] sm:$0xff] %vm940, %v2845
        %2854 = vst.msk [vmem:[%s395 + $0x30] sm:$0xff] %vm940, %v2846
        %2855 = vst.msk [vmem:[%s395 + $0x38] sm:$0xff] %vm940, %v2847
        %s2856 = sand.u32 %s211, 1
        %s2857 = scalar_lea.sflag [#allocation6], %s2856
        %s2858 = sand.u32 %s211, 1
        %s2859 = smul.addr %s2858, 64
        %s2860 = scalar_lea.vmem [#allocation9], %s2859
        %s2861 = sand.u32 %s237, 1
        %s2862 = scalar_lea.sflag [#allocation11], %s2861
        %s2863 = sand.u32 %s237, 1
        %s2864 = smul.addr %s2863, 64
        %s2865 = scalar_lea.vmem [#allocation10], %s2864
        // Predicated region
        $region57: #{tpu_custom_call.1} parent=47 // pred_check
          %p2866 = pneg %p221
        $region58: #{tpu_custom_call.1} parent=47 // pred_check_branch
          %2868 = sbr.rel (%p2866) target = $region60
        $region59: #{tpu_custom_call.1} parent=47 // pred_region
          %2870 = vsyncadd %s2857, 0
          %s2871 = smul.addr %s41, 8
          %s2872 = smul.addr %s2871, 8
          %s2873 = scalar_lea.hbm %s8, %s2872
          %s2874 = sshll.u32 %s2860, 4
          %s2875 = int_to_ptr.vmem [resolvable:$true] %s2874
          %s2876 = sshll.u32 %s2873, 4
          %s2877 = int_to_ptr.hbm [resolvable:$true] %s2876
          %2882 = dma.vmem_to_hbm [thread:$0]  %s2875, 1024, %s2877, %s2857, 128, 128, 8
        $region60: #{tpu_custom_call.1} parent=47 // pred_fallthru
          _
        // Predicated region
        $region61: #{tpu_custom_call.1} parent=47 // pred_check
          %p2883 = pneg %p247
        $region62: #{tpu_custom_call.1} parent=47 // pred_check_branch
          %2885 = sbr.rel (%p2883) target = $region64
        $region63: #{tpu_custom_call.1} parent=47 // pred_region
          %2887 = vsyncadd %s2862, 0
          %s2888 = smul.addr %s41, 8
          %s2889 = smul.addr %s2888, 8
          %s2890 = scalar_lea.hbm %s9, %s2889
          %s2891 = sshll.u32 %s2865, 4
          %s2892 = int_to_ptr.vmem [resolvable:$true] %s2891
          %s2893 = sshll.u32 %s2890, 4
          %s2894 = int_to_ptr.hbm [resolvable:$true] %s2893
          %2899 = dma.vmem_to_hbm [thread:$0]  %s2892, 1024, %s2894, %s2862, 128, 128, 8
        $region64: #{tpu_custom_call.1} parent=47 // pred_fallthru
          _
      $region48: #{tpu_custom_call.1} parent=5 // pred_fallthru
        _
      %p2900 = scmp.le.s32.totalorder 2, %s36
      // Predicated region
      $region65: #{tpu_custom_call.1} parent=5 // pred_check
        %p2901 = pneg %p2900
      $region66: #{tpu_custom_call.1} parent=5 // pred_check_branch
        %2903 = sbr.rel (%p2901) target = $region68
      $region67: #{tpu_custom_call.1} parent=5 // pred_region
        %s2904 = ssub.s32 %s36, 2
        // Predicated region
        $region69: #{tpu_custom_call.1} parent=67 // pred_check
          %p2905 = pneg %p227
        $region70: #{tpu_custom_call.1} parent=67 // pred_check_branch
          %2907 = sbr.rel (%p2905) target = $region72
        $region71: #{tpu_custom_call.1} parent=67 // pred_region
          %s2908 = sand.u32 %s212, 1
          %s2909 = scalar_lea.sflag [#allocation6], %s2908
          %s2910 = sand.u32 %s212, 1
          %s2911 = smul.addr %s2910, 64
          %s2912 = scalar_lea.vmem [#allocation9], %s2911
          %2914 = dma.done %s2909, 1024
        $region72: #{tpu_custom_call.1} parent=67 // pred_fallthru
          _
        // Predicated region
        $region73: #{tpu_custom_call.1} parent=67 // pred_check
          %p2915 = pneg %p253
        $region74: #{tpu_custom_call.1} parent=67 // pred_check_branch
          %2917 = sbr.rel (%p2915) target = $region76
        $region75: #{tpu_custom_call.1} parent=67 // pred_region
          %s2918 = sand.u32 %s238, 1
          %s2919 = scalar_lea.sflag [#allocation11], %s2918
          %s2920 = sand.u32 %s238, 1
          %s2921 = smul.addr %s2920, 64
          %s2922 = scalar_lea.vmem [#allocation10], %s2921
          %2924 = dma.done %s2919, 1024
        $region76: #{tpu_custom_call.1} parent=67 // pred_fallthru
          _
      $region68: #{tpu_custom_call.1} parent=5 // pred_fallthru
        _
    $region6: #{tpu_custom_call.1} parent=1 // loop_footer
      %s40 = sadd.s32 1, %s36
    $region7: #{tpu_custom_call.1} parent=1 // loop_footer_branch
      %35 = sbr.rel target = $region3
    $region8: #{tpu_custom_call.1} parent=1 // loop_exit
      _
    %2925 = vsyncpa [#allocation5], 1
    %s2926 = scalar_lea.sflag [#allocation5], 1
    %2927 = vsyncpa %s2926, 1
    %2928 = vsyncpa [#allocation8], 1
    %s2929 = scalar_lea.sflag [#allocation8], 1
    %2930 = vsyncpa %s2929, 1
    %2931 = vsyncpa [#allocation6], 1
    %s2932 = scalar_lea.sflag [#allocation6], 1
    %2933 = vsyncpa %s2932, 1
    %2934 = vsyncpa [#allocation11], 1
    %s2935 = scalar_lea.sflag [#allocation11], 1
    %2936 = vsyncpa %s2935, 1

</llo_original>
